<compile_context>
chip_gen: v5e
topology: v5e:2x2
jax: 0.10.0
libtpu: 0.0.40
codegen_flags: <defaults>
</compile_context>

<pallas_src>
import functools

import numpy as np
import jax
import jax.numpy as jnp
from jax import lax
from jax.experimental import pallas as pl
from jax.experimental.pallas import tpu as pltpu


# ----------------------------------------------------------------------------
# Pallas kernel: one fused block-complex GEMM per row tile.
#   A (P, K)       bf16 : im2col'ed input, columns ordered (tap, channel, re/im)
#   B (K, 2*Cout)  bf16 : [[kr, -ki], [ki, kr]] rows in the matching order
#   O (P, 2*Cout)  f32  : [:, :Cout] = real part, [:, Cout:] = imag part
# ----------------------------------------------------------------------------
def _block_complex_gemm_kernel(a_ref, b_ref, o_ref):
    o_ref[...] = jnp.dot(a_ref[...], b_ref[...],
                         preferred_element_type=jnp.float32)


def _round_up(x, m):
    return ((x + m - 1) // m) * m


def _choose_tile_p(P, K):
    """Row tile for the streaming GEMM.

    Sized for a ~4 MiB A block (x2 pipeline buffers ~8 MiB) so it fits the
    default scoped VMEM on v5e (16 MiB) and v6e/v7x (32 MiB) with headroom,
    while being large (256..2048 rows) to amortize per-step grid overhead and
    run big DMAs near the HBM roofline.  Keeps >= 2 row tiles when P allows so
    the 'parallel' grid axis can be sharded across v7x's two TensorCores.
    """
    bytes_per_row = 2 * K                                  # bf16
    t = (4 * 1024 * 1024) // max(1, bytes_per_row)
    t = min(2048, max(256, (t // 256) * 256))
    t = min(t, _round_up(P, 256))                          # don't over-DMA tiny P
    if P > 512:
        t = min(t, _round_up((P + 1) // 2, 256))           # >= 2 grid tiles
    return max(t, 256)


def block_complex_gemm(a, b):
    """a: (P, K) bf16, b: (K, 2*Cout) bf16 -> (P, 2*Cout) f32 via Pallas."""
    P, K = a.shape
    cout2 = b.shape[1]
    tile_p = _choose_tile_p(P, K)
    grid = (P + tile_p - 1) // tile_p
    # Ragged P tail: the last block's OOB input rows are undefined and its OOB
    # output rows are masked on store; every valid output row depends only on
    # its own A row, so no padding copy of A is needed.
    return pl.pallas_call(
        _block_complex_gemm_kernel,
        out_shape=jax.ShapeDtypeStruct((P, cout2), jnp.float32),
        grid_spec=pltpu.PrefetchScalarGridSpec(
            num_scalar_prefetch=0,
            grid=(grid,),
            in_specs=[pl.BlockSpec((tile_p, K), lambda i: (i, 0)),
                      pl.BlockSpec((K, cout2), lambda i: (0, 0))],  # resident B
            out_specs=pl.BlockSpec((tile_p, cout2), lambda i: (i, 0))),
        compiler_params=pltpu.CompilerParams(
            dimension_semantics=("parallel",)),
    )(a, b)


# ----------------------------------------------------------------------------
# Sub-pixel phase geometry: a stride-`s` transposed conv, restricted to output
# positions o = s*q + phase along one dim, is a stride-1 VALID conv on the
# UN-dilated input using only the kernel taps b with (phase + b - (k-1)) % s == 0,
# reading input index j = q + (phase + b - (k-1)) // s.
# ----------------------------------------------------------------------------
def _phase_dim(k, s, phase, out_len, in_len):
    b0 = (k - 1 - phase) % s                 # first contributing kernel tap
    T = len(range(b0, k, s))                 # number of taps for this phase
    n_out = (out_len - phase + s - 1) // s   # outputs of this phase
    if T == 0 or n_out <= 0:
        return None
    pad_left = (k - 1 - phase) // s          # == -(smallest input offset)
    need = n_out + T - 1                     # padded input length
    pad_right = max(0, need - pad_left - in_len)
    return b0, T, pad_left, pad_right, need, n_out


# ----------------------------------------------------------------------------
# Plain-JAX glue: weight blurring, symmetric pad-transpose.
# ----------------------------------------------------------------------------
def _blur_kernel():
    k = jnp.asarray([1.0, 4.0, 6.0, 4.0, 1.0], jnp.float32)[:, None]
    k = k @ k.T
    k = k / k.sum()
    return k.reshape(1, 1, 5, 5)


def _fold_symmetric(y, axis, p):
    """Adjoint of symmetric padding with p elements on each side of `axis`."""
    # TODO(synk): merlinth's complex_pad3d / complex_pad3d_transpose (optox) are
    # assumed to use 'symmetric' padding mode; this is its exact adjoint.
    if p == 0:
        return y
    L = y.shape[axis]
    n = L - 2 * p

    def sl(lo, hi):
        s = [slice(None)] * y.ndim
        s[axis] = slice(lo, hi)
        return tuple(s)

    core = y[sl(p, p + n)]
    left = jnp.flip(y[sl(0, p)], axis=axis)
    right = jnp.flip(y[sl(p + n, p + n + p)], axis=axis)
    head = core[sl(0, p)] + left
    mid = core[sl(p, n - p)]
    tail = core[sl(n - p, n)] + right
    return jnp.concatenate([head, mid, tail], axis=axis)


# ----------------------------------------------------------------------------
# The module
# ----------------------------------------------------------------------------
class ComplexPadConvScaleTranspose3D:
    def __init__(self, in_channels, filters, kernel_size=3, stride=(1, 2, 2),
                 key=None):
        self.in_channels = in_channels
        self.filters = filters
        self.kernel_size = ((kernel_size,) * 3 if isinstance(kernel_size, int)
                            else tuple(kernel_size))
        self.stride = tuple(stride)
        assert self.kernel_size[1] == self.kernel_size[2] and self.kernel_size[1] > 1
        assert self.stride[1] == self.stride[2] and self.stride[1] > 1
        self.bias = None  # bias=False (module default)
        # Deterministic synthetic init (stand-in for complex_independent_filters_init)
        kD, kH, kW = self.kernel_size
        fan_in = in_channels * kD * kH * kW
        fan_out = filters * kD * kH * kW
        scale = jnp.sqrt(1.0 / (fan_in + fan_out)).astype(jnp.float32)
        key = jax.random.PRNGKey(0) if key is None else key
        self.weight = scale * jax.random.normal(
            key, (filters, in_channels, kD, kH, kW, 2), jnp.float32)
        self.blur = _blur_kernel()

    # -- ComplexPadConvScale3D.get_weight ------------------------------------
    def _get_weight(self):
        kD, kH, kW = self.kernel_size
        s = self.stride[1]
        w = jnp.transpose(self.weight, (0, 1, 5, 2, 3, 4))      # (f, c, 2, kD, kH, kW)
        w = w.reshape(-1, 1, kH, kW)
        for _ in range(s // 2):
            w = lax.conv_general_dilated(
                w, self.blur, window_strides=(1, 1), padding=((4, 4), (4, 4)),
                dimension_numbers=('NCHW', 'OIHW', 'NCHW'))
        kH2 = kH + 2 * s
        kW2 = kW + 2 * s
        w = w.reshape(self.filters, self.in_channels, 2, kD, kH2, kW2)
        w = jnp.transpose(w, (0, 1, 3, 4, 5, 2))                # (f, c, kD, kH2, kW2, 2)
        return w

    def _output_padding(self, x_shape, output_shape):
        sD, sH, sW = self.stride
        return (output_shape[-4] - ((x_shape[-4] - 1) * sD + 1),
                output_shape[-3] - ((x_shape[-3] - 1) * sH + 1),
                output_shape[-2] - ((x_shape[-2] - 1) * sW + 1))

    def _pad_transpose(self, y, kshape):
        kD, kH2, kW2 = kshape
        y = _fold_symmetric(y, 2, kD // 2)
        y = _fold_symmetric(y, 3, kH2 // 2)
        y = _fold_symmetric(y, 4, kW2 // 2)
        return y

    # -- forward = ComplexPadConv3D.backward (complex conv transpose) --------
    def forward(self, x, output_shape):
        w = self._get_weight()                        # (F, Cout, kD, kH2, kW2, 2)
        kD, kH2, kW2 = w.shape[2:5]
        sD, sH, sW = self.stride
        opD, opH, opW = self._output_padding(x.shape, output_shape)

        N, F, D, H, W = x.shape[:5]
        Cout = self.in_channels
        OutD = (D - 1) * sD + kD + opD
        OutH = (H - 1) * sH + kH2 + opH
        OutW = (W - 1) * sW + kW2 + opW

        # Equivalent stride-1 forward-conv kernel: flipped + channel-swapped.
        w_eq = jnp.transpose(jnp.flip(w, (2, 3, 4)), (1, 0, 2, 3, 4, 5))
        # (Cout, F, kD, kH2, kW2, 2)

        # Channels-last bf16 copy of the SMALL input: one cheap relayout instead
        # of transposing the ~kD*kH2*kW2 x larger im2col tensor afterwards.
        x_cl = jnp.transpose(x, (0, 2, 3, 4, 1, 5)).astype(jnp.bfloat16)
        # (N, D, H, W, F, 2)

        y = jnp.zeros((N, Cout, OutD, OutH, OutW, 2), jnp.float32)

        for pd in range(sD):
            gd = _phase_dim(kD, sD, pd, OutD, D)
            if gd is None:
                continue
            b0_d, Td, padl_d, padr_d, need_d, n_d = gd
            for ph in range(sH):
                gh = _phase_dim(kH2, sH, ph, OutH, H)
                if gh is None:
                    continue
                b0_h, Th, padl_h, padr_h, need_h, n_h = gh
                for pw in range(sW):
                    gw = _phase_dim(kW2, sW, pw, OutW, W)
                    if gw is None:
                        continue
                    b0_w, Tw, padl_w, padr_w, need_w, n_w = gw

                    # Pad the small input for this phase's tap window.
                    xp = jnp.pad(x_cl, ((0, 0), (padl_d, padr_d),
                                        (padl_h, padr_h), (padl_w, padr_w),
                                        (0, 0), (0, 0)))
                    xp = xp[:, :need_d, :need_h, :need_w]

                    # im2col with NO structural zeros; contiguous reshape to (P, K).
                    slices = []
                    for ud in range(Td):
                        for uh in range(Th):
                            for uw in range(Tw):
                                slices.append(
                                    xp[:, ud:ud + n_d, uh:uh + n_h, uw:uw + n_w])
                    pat = jnp.stack(slices, axis=4)   # (N, n_d, n_h, n_w, T, F, 2)
                    T = Td * Th * Tw
                    P = N * n_d * n_h * n_w
                    K = T * F * 2
                    A = pat.reshape(P, K)             # bf16, cols = (tap, chan, re/im)

                    # Matching block-complex RHS (K, 2*Cout) for this phase.
                    wp = w_eq[:, :, b0_d::sD, b0_h::sH, b0_w::sW, :]
                    wp = jnp.transpose(wp, (2, 3, 4, 1, 5, 0))  # (Td,Th,Tw,F,2,Cout)
                    kr = wp[..., 0, :].reshape(T * F, Cout)
                    ki = wp[..., 1, :].reshape(T * F, Cout)
                    B = jnp.stack(
                        [jnp.concatenate([kr, -ki], axis=-1),   # rows hit by xr
                         jnp.concatenate([ki, kr], axis=-1)],   # rows hit by xi
                        axis=1).reshape(K, 2 * Cout).astype(jnp.bfloat16)

                    O = block_complex_gemm(A, B)                # (P, 2*Cout) f32
                    o = O.reshape(N, n_d, n_h, n_w, 2, Cout)
                    o = jnp.transpose(o, (0, 5, 1, 2, 3, 4))    # (N, Cout, ..., 2)
                    y = y.at[:, :, pd::sD, ph::sH, pw::sW, :].set(o)

        return self._pad_transpose(y, (kD, kH2, kW2))

    # -- pure-JAX reference (XLA conv with lhs_dilation) for validation ------
    def forward_reference(self, x, output_shape):
        w = self._get_weight()
        op = self._output_padding(x.shape, output_shape)
        xr, xi = x[..., 0], x[..., 1]
        wr, wi = w[..., 0], w[..., 1]

        def convT(inp, ker):
            w_eq = jnp.transpose(jnp.flip(ker, (2, 3, 4)), (1, 0, 2, 3, 4))
            kD, kH, kW = ker.shape[2:5]
            pads = [(kD - 1, kD - 1 + op[0]),
                    (kH - 1, kH - 1 + op[1]),
                    (kW - 1, kW - 1 + op[2])]
            return lax.conv_general_dilated(
                inp, w_eq, window_strides=(1, 1, 1), padding=pads,
                lhs_dilation=self.stride, rhs_dilation=(1, 1, 1),
                dimension_numbers=('NCDHW', 'OIDHW', 'NCDHW'))

        re = convT(xr, wr) + convT(xi, wi)
        im = convT(xi, wr) - convT(xr, wi)
        y = jnp.stack([re, im], axis=-1)
        return self._pad_transpose(y, w.shape[2:5])


# ----------------------------------------------------------------------------
if __name__ == "__main__":
    key = jax.random.PRNGKey(0)
    k_w, k_x = jax.random.split(key)

    in_channels, filters = 2, 4
    N, D_in, H_in, W_in = 2, 4, 8, 8

    model = ComplexPadConvScaleTranspose3D(in_channels, filters,
                                           kernel_size=3, stride=(1, 2, 2),
                                           key=k_w)

    # Transposed-conv input has `filters` channels; output has `in_channels`.
    x = jax.random.normal(k_x, (N, filters, D_in, H_in, W_in, 2), jnp.float32)
    # Target output shape (what the paired forward conv consumed): (N, C, D, H, W, 2)
    output_shape = (N, in_channels, D_in, 2 * H_in, 2 * W_in, 2)

    fwd = jax.jit(functools.partial(model.forward, output_shape=output_shape))
    y = jax.block_until_ready(fwd(x))

    assert y.shape == output_shape, (y.shape, output_shape)

    y_ref = model.forward_reference(x, output_shape)
    np.testing.assert_allclose(np.asarray(y), np.asarray(y_ref),
                               rtol=1e-2, atol=1e-2)

    print("KERNEL_OK")
</pallas_src>

<mosaic_0001>
module attributes {stable_mosaic.version = 11 : i64} {
  func.func @_block_complex_gemm_kernel(%arg0: i32, %arg1: memref<768x384xbf16, #tpu.memory_space<vmem>>, %arg2: memref<384x4xbf16, #tpu.memory_space<vmem>>, %arg3: memref<768x4xf32, #tpu.memory_space<vmem>>) attributes {dimension_semantics = [#tpu.dimension_semantics<parallel>], iteration_bounds = array<i64: 2>, scalar_prefetch = 0 : i64, scratch_operands = 0 : i64, tpu.core_type = #tpu.core_type<tc>, window_params = [{transform_indices = @transform_0, window_bounds = array<i64: 768, 384>}, {pipeline_mode = #tpu.pipeline_mode<synchronous>, transform_indices = @transform_1, window_bounds = array<i64: 384, 4>}, {transform_indices = @transform_2, window_bounds = array<i64: 768, 4>}]} {
    %c0 = arith.constant 0 : index
    %c0_0 = arith.constant 0 : index
    %0 = vector.load %arg1[%c0, %c0_0] : memref<768x384xbf16, #tpu.memory_space<vmem>>, vector<768x384xbf16>
    %c0_1 = arith.constant 0 : index
    %c0_2 = arith.constant 0 : index
    %1 = vector.load %arg2[%c0_1, %c0_2] : memref<384x4xbf16, #tpu.memory_space<vmem>>, vector<384x4xbf16>
    %cst = arith.constant dense<0.000000e+00> : vector<768x4xf32>
    %2 = tpu.matmul %0, %1, %cst {dimension_numbers = #tpu.dot_dimension_numbers<[1], [0], [0], [1], [0, 0, 1, 1], [], []>} : vector<768x384xbf16>, vector<384x4xbf16>, vector<768x4xf32> -> vector<768x4xf32>
    %c0_3 = arith.constant 0 : index
    %c0_4 = arith.constant 0 : index
    %3 = vector.load %arg3[%c0_3, %c0_4] : memref<768x4xf32, #tpu.memory_space<vmem>>, vector<768x4xf32>
    tpu.vector_store %arg3[%c0_3, %c0_4], %2 {strides = array<i32>} : memref<768x4xf32, #tpu.memory_space<vmem>>, vector<768x4xf32>,
    return
  }
  func.func @transform_0(%arg0: i32) -> (i32, i32) {
    %c0_i32 = arith.constant 0 : i32
    %c0_i32_0 = arith.constant 0 : i32
    return %arg0, %c0_i32 : i32, i32
  }
  func.func @transform_1(%arg0: i32) -> (i32, i32) {
    %c0_i32 = arith.constant 0 : i32
    %c0_i32_0 = arith.constant 0 : i32
    %c0_i32_1 = arith.constant 0 : i32
    return %c0_i32, %c0_i32_0 : i32, i32
  }
  func.func @transform_2(%arg0: i32) -> (i32, i32) {
    %c0_i32 = arith.constant 0 : i32
    %c0_i32_0 = arith.constant 0 : i32
    return %arg0, %c0_i32 : i32, i32
  }
}

module attributes {stable_mosaic.version = 11 : i64} {
  func.func @_block_complex_gemm_kernel(%arg0: i32, %arg1: memref<768x288xbf16, #tpu.memory_space<vmem>>, %arg2: memref<288x4xbf16, #tpu.memory_space<vmem>>, %arg3: memref<768x4xf32, #tpu.memory_space<vmem>>) attributes {dimension_semantics = [#tpu.dimension_semantics<parallel>], iteration_bounds = array<i64: 2>, scalar_prefetch = 0 : i64, scratch_operands = 0 : i64, tpu.core_type = #tpu.core_type<tc>, window_params = [{transform_indices = @transform_0, window_bounds = array<i64: 768, 288>}, {pipeline_mode = #tpu.pipeline_mode<synchronous>, transform_indices = @transform_1, window_bounds = array<i64: 288, 4>}, {transform_indices = @transform_2, window_bounds = array<i64: 768, 4>}]} {
    %c0 = arith.constant 0 : index
    %c0_0 = arith.constant 0 : index
    %0 = vector.load %arg1[%c0, %c0_0] : memref<768x288xbf16, #tpu.memory_space<vmem>>, vector<768x288xbf16>
    %c0_1 = arith.constant 0 : index
    %c0_2 = arith.constant 0 : index
    %1 = vector.load %arg2[%c0_1, %c0_2] : memref<288x4xbf16, #tpu.memory_space<vmem>>, vector<288x4xbf16>
    %cst = arith.constant dense<0.000000e+00> : vector<768x4xf32>
    %2 = tpu.matmul %0, %1, %cst {dimension_numbers = #tpu.dot_dimension_numbers<[1], [0], [0], [1], [0, 0, 1, 1], [], []>} : vector<768x288xbf16>, vector<288x4xbf16>, vector<768x4xf32> -> vector<768x4xf32>
    %c0_3 = arith.constant 0 : index
    %c0_4 = arith.constant 0 : index
    %3 = vector.load %arg3[%c0_3, %c0_4] : memref<768x4xf32, #tpu.memory_space<vmem>>, vector<768x4xf32>
    tpu.vector_store %arg3[%c0_3, %c0_4], %2 {strides = array<i32>} : memref<768x4xf32, #tpu.memory_space<vmem>>, vector<768x4xf32>,
    return
  }
  func.func @transform_0(%arg0: i32) -> (i32, i32) {
    %c0_i32 = arith.constant 0 : i32
    %c0_i32_0 = arith.constant 0 : i32
    return %arg0, %c0_i32 : i32, i32
  }
  func.func @transform_1(%arg0: i32) -> (i32, i32) {
    %c0_i32 = arith.constant 0 : i32
    %c0_i32_0 = arith.constant 0 : i32
    %c0_i32_1 = arith.constant 0 : i32
    return %c0_i32, %c0_i32_0 : i32, i32
  }
  func.func @transform_2(%arg0: i32) -> (i32, i32) {
    %c0_i32 = arith.constant 0 : i32
    %c0_i32_0 = arith.constant 0 : i32
    return %arg0, %c0_i32 : i32, i32
  }
}

module attributes {stable_mosaic.version = 11 : i64} {
  func.func @_block_complex_gemm_kernel(%arg0: i32, %arg1: memref<768x216xbf16, #tpu.memory_space<vmem>>, %arg2: memref<216x4xbf16, #tpu.memory_space<vmem>>, %arg3: memref<768x4xf32, #tpu.memory_space<vmem>>) attributes {dimension_semantics = [#tpu.dimension_semantics<parallel>], iteration_bounds = array<i64: 2>, scalar_prefetch = 0 : i64, scratch_operands = 0 : i64, tpu.core_type = #tpu.core_type<tc>, window_params = [{transform_indices = @transform_0, window_bounds = array<i64: 768, 216>}, {pipeline_mode = #tpu.pipeline_mode<synchronous>, transform_indices = @transform_1, window_bounds = array<i64: 216, 4>}, {transform_indices = @transform_2, window_bounds = array<i64: 768, 4>}]} {
    %c0 = arith.constant 0 : index
    %c0_0 = arith.constant 0 : index
    %0 = vector.load %arg1[%c0, %c0_0] : memref<768x216xbf16, #tpu.memory_space<vmem>>, vector<768x216xbf16>
    %c0_1 = arith.constant 0 : index
    %c0_2 = arith.constant 0 : index
    %1 = vector.load %arg2[%c0_1, %c0_2] : memref<216x4xbf16, #tpu.memory_space<vmem>>, vector<216x4xbf16>
    %cst = arith.constant dense<0.000000e+00> : vector<768x4xf32>
    %2 = tpu.matmul %0, %1, %cst {dimension_numbers = #tpu.dot_dimension_numbers<[1], [0], [0], [1], [0, 0, 1, 1], [], []>} : vector<768x216xbf16>, vector<216x4xbf16>, vector<768x4xf32> -> vector<768x4xf32>
    %c0_3 = arith.constant 0 : index
    %c0_4 = arith.constant 0 : index
    %3 = vector.load %arg3[%c0_3, %c0_4] : memref<768x4xf32, #tpu.memory_space<vmem>>, vector<768x4xf32>
    tpu.vector_store %arg3[%c0_3, %c0_4], %2 {strides = array<i32>} : memref<768x4xf32, #tpu.memory_space<vmem>>, vector<768x4xf32>,
    return
  }
  func.func @transform_0(%arg0: i32) -> (i32, i32) {
    %c0_i32 = arith.constant 0 : i32
    %c0_i32_0 = arith.constant 0 : i32
    return %arg0, %c0_i32 : i32, i32
  }
  func.func @transform_1(%arg0: i32) -> (i32, i32) {
    %c0_i32 = arith.constant 0 : i32
    %c0_i32_0 = arith.constant 0 : i32
    %c0_i32_1 = arith.constant 0 : i32
    return %c0_i32, %c0_i32_0 : i32, i32
  }
  func.func @transform_2(%arg0: i32) -> (i32, i32) {
    %c0_i32 = arith.constant 0 : i32
    %c0_i32_0 = arith.constant 0 : i32
    return %arg0, %c0_i32 : i32, i32
  }
}

</mosaic_0001>

<llo_original>
// kernel: forward.4
$region0: #{forward.4}
  #allocation0 [shape = 'u32[]', space=smem, size = 0x4, offset = 0x4, fixed_abs, tag = 'smem constant byte address 0x4 - core index']
  #allocation1 [shape = 'u32[72,128]{1,0:T(1,128)}', space=vmem, size = 0x9000, scoped, tag = 'internal scratch']
  %s0 = inlined_call_operand.vmem [shape: bf16[1452,384], index: 0, kind: input, shape index: {}]
  %s1 = inlined_call_operand.vmem [shape: bf16[384,4], index: 1, kind: input, shape index: {}]
  %s2 = inlined_call_operand.vmem [shape: f32[1452,4], index: 2, kind: output, shape index: {}]
  %s3 = sld [smem:[#allocation0]]
  $region89: #{forward.4} parent=0
    _
  %s5 = ssub.s32 1, %s3
  %s6 = scalar_select 0, %s5, %s3
  $region1: #{forward.4} parent=0
    #allocation2 [shape = 'u8[786432]{0}', space=vmem, size = 0xc0000, scoped, tag = 'output window, operand 0']
    loop: start=0, step=1, limit=4
    $region2: #{forward.4} parent=1 // loop_pre_header
      _
    $region3: #{forward.4} parent=1 // loop_header
      %s8 = sphi 0, %s12
      %p9 = scmp.ge.s32.totalorder %s8, 4
      %s18 = sphi 0, %s20
      %s21 = sphi 0, %s18
      %s22 = sphi 0, %s21
      %s38 = sphi 0, %s22
      %s42 = sphi 0, %s42
      %s44 = sphi 0, %s42
      %s45 = sphi 0, %s44
      %s59 = sphi 0, %s45
      %s65 = sphi 0, %s67
      %s68 = sphi 0, %s65
      %s69 = sphi 0, %s68
      %s85 = sphi 0, %s69
    $region4: #{forward.4} parent=1 // loop_header_branch
      %11 = sbr.rel (%p9) target = $region8
    $region5: #{forward.4} parent=1 // loop_body
      %s13 = ssub.s32 %s8, 1
      %s14 = ssub.s32 %s8, 2
      %s15 = sadd.s32 %s8, 1
      %s16 = ssub.s32 %s8, %s15
      %p17 = scmp.eq.s32.totalorder %s16, 0
      %s19 = sadd.s32 %s18, 1
      %s20 = scalar_select %p17, %s18, %s19
      %p23 = pneg %p17
      %p24 = scmp.eq.s32.totalorder %s8, 1
      %p25 = por %p23, %p24
      %p26 = scmp.ne.s32.totalorder %s18, %s21
      %p27 = scmp.eq.s32.totalorder %s8, 0
      %p28 = por %p26, %p27
      %p29 = scmp.ne.s32.totalorder %s18, %s21
      %p30 = scmp.eq.s32.totalorder %s13, 1
      %p31 = por %p29, %p30
      %p32 = scmp.ne.s32.totalorder %s21, %s22
      %p33 = scmp.eq.s32.totalorder %s13, 0
      %p34 = por %p32, %p33
      %p35 = scmp.ne.s32.totalorder %s21, %s22
      %p36 = scmp.eq.s32.totalorder %s14, 1
      %p37 = por %p35, %p36
      %p39 = scmp.ne.s32.totalorder %s22, %s38
      %p40 = scmp.eq.s32.totalorder %s14, 0
      %p41 = por %p39, %p40
      %s43 = sadd.s32 %s42, 1
      %p46 = scmp.eq.s32.totalorder %s8, 1
      %p47 = scmp.ne.s32.totalorder %s42, %s44
      %p48 = scmp.eq.s32.totalorder %s8, 0
      %p49 = por %p47, %p48
      %p50 = scmp.ne.s32.totalorder %s42, %s44
      %p51 = scmp.eq.s32.totalorder %s13, 1
      %p52 = por %p50, %p51
      %p53 = scmp.ne.s32.totalorder %s44, %s45
      %p54 = scmp.eq.s32.totalorder %s13, 0
      %p55 = por %p53, %p54
      %p56 = scmp.ne.s32.totalorder %s44, %s45
      %p57 = scmp.eq.s32.totalorder %s14, 1
      %p58 = por %p56, %p57
      %p60 = scmp.ne.s32.totalorder %s45, %s59
      %p61 = scmp.eq.s32.totalorder %s14, 0
      %p62 = por %p60, %p61
      %s63 = ssub.s32 %s8, %s15
      %p64 = scmp.eq.s32.totalorder %s63, 0
      %s66 = sadd.s32 %s65, 1
      %s67 = scalar_select %p64, %s65, %s66
      %p70 = pneg %p64
      %p71 = scmp.eq.s32.totalorder %s8, 1
      %p72 = por %p70, %p71
      %p73 = scmp.ne.s32.totalorder %s65, %s68
      %p74 = scmp.eq.s32.totalorder %s8, 0
      %p75 = por %p73, %p74
      %p76 = scmp.ne.s32.totalorder %s65, %s68
      %p77 = scmp.eq.s32.totalorder %s13, 1
      %p78 = por %p76, %p77
      %p79 = scmp.ne.s32.totalorder %s68, %s69
      %p80 = scmp.eq.s32.totalorder %s13, 0
      %p81 = por %p79, %p80
      %p82 = scmp.ne.s32.totalorder %s68, %s69
      %p83 = scmp.eq.s32.totalorder %s14, 1
      %p84 = por %p82, %p83
      %p86 = scmp.ne.s32.totalorder %s69, %s85
      %p87 = scmp.eq.s32.totalorder %s14, 0
      %p88 = por %p86, %p87
      %p89 = scmp.le.s32.totalorder 1, %s8
      %p90 = scmp.lt.s32.totalorder %s8, 3
      %p91 = pnand %p89, %p90
      %p92 = pneg %p91
      // Predicated region
      $region9: #{forward.4} parent=5 // pred_check
        _
      $region10: #{forward.4} parent=5 // pred_check_branch
        %94 = sbr.rel (%p91) target = $region12
      $region11: #{forward.4} parent=5 // pred_region
        %s95 = ssub.s32 %s8, 1
        // Predicated region
        $region13: #{forward.4} parent=11 // pred_check
          %p96 = pneg %p55
        $region14: #{forward.4} parent=11 // pred_check_branch
          %98 = sbr.rel (%p96) target = $region16
        $region15: #{forward.4} parent=11 // pred_region
          _
        $region16: #{forward.4} parent=11 // pred_fallthru
          _
      $region12: #{forward.4} parent=5 // pred_fallthru
        _
      %p99 = scmp.lt.s32.totalorder %s8, 2
      // Predicated region
      $region17: #{forward.4} parent=5 // pred_check
        %p100 = pneg %p99
      $region18: #{forward.4} parent=5 // pred_check_branch
        %102 = sbr.rel (%p100) target = $region20
      $region19: #{forward.4} parent=5 // pred_region
        // Predicated region
        $region21: #{forward.4} parent=19 // pred_check
          %p103 = pneg %p28
        $region22: #{forward.4} parent=19 // pred_check_branch
          %105 = sbr.rel (%p103) target = $region24
        $region23: #{forward.4} parent=19 // pred_region
          %s106 = smul.u32 96, %s8
          %s107 = ssub.s32 182, %s106
          %p108 = scmp.lt.s32.totalorder %s107, 96
          %s109 = scalar_select %p108, %s107, 96
          %s110 = smul.u32 4, %s109
          %s111 = smul.u32 %s110, 3
          %p112 = scmp.lt.s32.totalorder %s106, 181
          %s113 = scalar_select %p112, %s106, 181
          %s114 = smul.addr %s113, 3
          %s115 = smul.addr %s114, 4
          %s116 = scalar_lea.vmem %s0, %s115
          %s117 = smul.u32 96, %s8
          %s118 = ssub.s32 182, %s117
          %p119 = scmp.lt.s32.totalorder %s118, 96
          %s120 = scalar_select %p119, %s118, 96
          %s121 = smul.u32 4, %s120
          %s122 = smul.u32 %s121, 3
        $region24: #{forward.4} parent=19 // pred_fallthru
          _
      $region20: #{forward.4} parent=5 // pred_fallthru
        _
      %p123 = scmp.le.s32.totalorder 1, %s8
      %p124 = scmp.lt.s32.totalorder %s8, 3
      %p125 = pnand %p123, %p124
      %p126 = pneg %p125
      // Predicated region
      $region25: #{forward.4} parent=5 // pred_check
        _
      $region26: #{forward.4} parent=5 // pred_check_branch
        %128 = sbr.rel (%p125) target = $region28
      $region27: #{forward.4} parent=5 // pred_region
        %s129 = ssub.s32 %s8, 1
        %s130 = smul.u32 96, %s13
        %s131 = ssub.s32 182, %s130
        %p132 = scmp.lt.s32.totalorder %s131, 96
        %s133 = scalar_select %p132, %s131, 96
        %s134 = smul.u32 4, %s133
        %s135 = smul.u32 %s134, 3
        %p136 = scmp.lt.s32.totalorder %s130, 181
        %s137 = scalar_select %p136, %s130, 181
        %s138 = smul.addr %s137, 3
        %s139 = smul.addr %s138, 4
        %s140 = scalar_lea.vmem %s0, %s139
        %p141 = pneg %p34
        %p142 = pneg %p31
        %p143 = pneg %p55
        %p144 = pneg %p52
        %p145 = pneg %p81
        %p146 = pneg %p78
        %s147 = sand.u32 %s68, 1
        %s148 = sand.u32 %s68, 1
        %s149 = smul.addr %s148, 768
        %s150 = scalar_lea.vmem [#allocation2], %s149
        %s151 = smul.u32 96, %s13
        %s152 = ssub.s32 182, %s151
        %p153 = scmp.lt.s32.totalorder %s152, 96
        %s154 = scalar_select %p153, %s152, 96
        %s155 = smul.u32 4, %s154
        %s156 = smul.u32 %s155, 3
        %p157 = scmp.lt.s32.totalorder %s151, 181
        %s158 = scalar_select %p157, %s151, 181
        %s159 = smul.addr %s158, 3
        %s160 = smul.addr %s159, 4
        %s161 = scalar_lea.vmem %s0, %s160
        %s162 = smul.u32 96, %s13
        %s163 = ssub.s32 182, %s162
        %p164 = scmp.lt.s32.totalorder %s163, 96
        %s165 = scalar_select %p164, %s163, 96
        %s166 = smul.u32 4, %s165
        %s167 = smul.u32 %s166, 3
        %s168 = smul.u32 96, %s13
        %s169 = ssub.s32 182, %s168
        %p170 = scmp.lt.s32.totalorder %s169, 96
        %s171 = scalar_select %p170, %s169, 96
        %s172 = smul.u32 8, %s171
        %v173 = vld [vmem:[%s161] sm:$0xff]
        %v174 = vld [vmem:[%s161 + $0x8] sm:$0xf]
        %v175 = vld [vmem:[%s161 + $0xc] sm:$0xff]
        %v176 = vld [vmem:[%s161 + $0x14] sm:$0xf]
        %v177 = vld [vmem:[%s161 + $0x18] sm:$0xff]
        %v178 = vld [vmem:[%s161 + $0x20] sm:$0xf]
        %v179 = vld [vmem:[%s161 + $0x24] sm:$0xff]
        %v180 = vld [vmem:[%s161 + $0x2c] sm:$0xf]
        %v181 = vld [vmem:[%s161 + $0x30] sm:$0xff]
        %v182 = vld [vmem:[%s161 + $0x38] sm:$0xf]
        %v183 = vld [vmem:[%s161 + $0x3c] sm:$0xff]
        %v184 = vld [vmem:[%s161 + $0x44] sm:$0xf]
        %v185 = vld [vmem:[%s161 + $0x48] sm:$0xff]
        %v186 = vld [vmem:[%s161 + $0x50] sm:$0xf]
        %v187 = vld [vmem:[%s161 + $0x54] sm:$0xff]
        %v188 = vld [vmem:[%s161 + $0x5c] sm:$0xf]
        %v189 = vld [vmem:[%s161 + $0x60] sm:$0xff]
        %v190 = vld [vmem:[%s161 + $0x68] sm:$0xf]
        %v191 = vld [vmem:[%s161 + $0x6c] sm:$0xff]
        %v192 = vld [vmem:[%s161 + $0x74] sm:$0xf]
        %v193 = vld [vmem:[%s161 + $0x78] sm:$0xff]
        %v194 = vld [vmem:[%s161 + $0x80] sm:$0xf]
        %v195 = vld [vmem:[%s161 + $0x84] sm:$0xff]
        %v196 = vld [vmem:[%s161 + $0x8c] sm:$0xf]
        %v197 = vld [vmem:[%s161 + $0x90] sm:$0xff]
        %v198 = vld [vmem:[%s161 + $0x98] sm:$0xf]
        %v199 = vld [vmem:[%s161 + $0x9c] sm:$0xff]
        %v200 = vld [vmem:[%s161 + $0xa4] sm:$0xf]
        %v201 = vld [vmem:[%s161 + $0xa8] sm:$0xff]
        %v202 = vld [vmem:[%s161 + $0xb0] sm:$0xf]
        %v203 = vld [vmem:[%s161 + $0xb4] sm:$0xff]
        %v204 = vld [vmem:[%s161 + $0xbc] sm:$0xf]
        %v205 = vld [vmem:[%s161 + $0xc0] sm:$0xff]
        %v206 = vld [vmem:[%s161 + $0xc8] sm:$0xf]
        %v207 = vld [vmem:[%s161 + $0xcc] sm:$0xff]
        %v208 = vld [vmem:[%s161 + $0xd4] sm:$0xf]
        %v209 = vld [vmem:[%s161 + $0xd8] sm:$0xff]
        %v210 = vld [vmem:[%s161 + $0xe0] sm:$0xf]
        %v211 = vld [vmem:[%s161 + $0xe4] sm:$0xff]
        %v212 = vld [vmem:[%s161 + $0xec] sm:$0xf]
        %v213 = vld [vmem:[%s161 + $0xf0] sm:$0xff]
        %v214 = vld [vmem:[%s161 + $0xf8] sm:$0xf]
        %v215 = vld [vmem:[%s161 + $0xfc] sm:$0xff]
        %v216 = vld [vmem:[%s161 + $0x104] sm:$0xf]
        %v217 = vld [vmem:[%s161 + $0x108] sm:$0xff]
        %v218 = vld [vmem:[%s161 + $0x110] sm:$0xf]
        %v219 = vld [vmem:[%s161 + $0x114] sm:$0xff]
        %v220 = vld [vmem:[%s161 + $0x11c] sm:$0xf]
        %v221 = vld [vmem:[%s161 + $0x120] sm:$0xff]
        %v222 = vld [vmem:[%s161 + $0x128] sm:$0xf]
        %v223 = vld [vmem:[%s161 + $0x12c] sm:$0xff]
        %v224 = vld [vmem:[%s161 + $0x134] sm:$0xf]
        %v225 = vld [vmem:[%s161 + $0x138] sm:$0xff]
        %v226 = vld [vmem:[%s161 + $0x140] sm:$0xf]
        %v227 = vld [vmem:[%s161 + $0x144] sm:$0xff]
        %v228 = vld [vmem:[%s161 + $0x14c] sm:$0xf]
        %v229 = vld [vmem:[%s161 + $0x150] sm:$0xff]
        %v230 = vld [vmem:[%s161 + $0x158] sm:$0xf]
        %v231 = vld [vmem:[%s161 + $0x15c] sm:$0xff]
        %v232 = vld [vmem:[%s161 + $0x164] sm:$0xf]
        %v233 = vld [vmem:[%s161 + $0x168] sm:$0xff]
        %v234 = vld [vmem:[%s161 + $0x170] sm:$0xf]
        %v235 = vld [vmem:[%s161 + $0x174] sm:$0xff]
        %v236 = vld [vmem:[%s161 + $0x17c] sm:$0xf]
        %v237 = vld [vmem:[%s161 + $0x180] sm:$0xff]
        %v238 = vld [vmem:[%s161 + $0x188] sm:$0xf]
        %v239 = vld [vmem:[%s161 + $0x18c] sm:$0xff]
        %v240 = vld [vmem:[%s161 + $0x194] sm:$0xf]
        %v241 = vld [vmem:[%s161 + $0x198] sm:$0xff]
        %v242 = vld [vmem:[%s161 + $0x1a0] sm:$0xf]
        %v243 = vld [vmem:[%s161 + $0x1a4] sm:$0xff]
        %v244 = vld [vmem:[%s161 + $0x1ac] sm:$0xf]
        %v245 = vld [vmem:[%s161 + $0x1b0] sm:$0xff]
        %v246 = vld [vmem:[%s161 + $0x1b8] sm:$0xf]
        %v247 = vld [vmem:[%s161 + $0x1bc] sm:$0xff]
        %v248 = vld [vmem:[%s161 + $0x1c4] sm:$0xf]
        %v249 = vld [vmem:[%s161 + $0x1c8] sm:$0xff]
        %v250 = vld [vmem:[%s161 + $0x1d0] sm:$0xf]
        %v251 = vld [vmem:[%s161 + $0x1d4] sm:$0xff]
        %v252 = vld [vmem:[%s161 + $0x1dc] sm:$0xf]
        %v253 = vld [vmem:[%s161 + $0x1e0] sm:$0xff]
        %v254 = vld [vmem:[%s161 + $0x1e8] sm:$0xf]
        %v255 = vld [vmem:[%s161 + $0x1ec] sm:$0xff]
        %v256 = vld [vmem:[%s161 + $0x1f4] sm:$0xf]
        %v257 = vld [vmem:[%s161 + $0x1f8] sm:$0xff]
        %v258 = vld [vmem:[%s161 + $0x200] sm:$0xf]
        %v259 = vld [vmem:[%s161 + $0x204] sm:$0xff]
        %v260 = vld [vmem:[%s161 + $0x20c] sm:$0xf]
        %v261 = vld [vmem:[%s161 + $0x210] sm:$0xff]
        %v262 = vld [vmem:[%s161 + $0x218] sm:$0xf]
        %v263 = vld [vmem:[%s161 + $0x21c] sm:$0xff]
        %v264 = vld [vmem:[%s161 + $0x224] sm:$0xf]
        %v265 = vld [vmem:[%s161 + $0x228] sm:$0xff]
        %v266 = vld [vmem:[%s161 + $0x230] sm:$0xf]
        %v267 = vld [vmem:[%s161 + $0x234] sm:$0xff]
        %v268 = vld [vmem:[%s161 + $0x23c] sm:$0xf]
        %v269 = vld [vmem:[%s161 + $0x240] sm:$0xff]
        %v270 = vld [vmem:[%s161 + $0x248] sm:$0xf]
        %v271 = vld [vmem:[%s161 + $0x24c] sm:$0xff]
        %v272 = vld [vmem:[%s161 + $0x254] sm:$0xf]
        %v273 = vld [vmem:[%s161 + $0x258] sm:$0xff]
        %v274 = vld [vmem:[%s161 + $0x260] sm:$0xf]
        %v275 = vld [vmem:[%s161 + $0x264] sm:$0xff]
        %v276 = vld [vmem:[%s161 + $0x26c] sm:$0xf]
        %v277 = vld [vmem:[%s161 + $0x270] sm:$0xff]
        %v278 = vld [vmem:[%s161 + $0x278] sm:$0xf]
        %v279 = vld [vmem:[%s161 + $0x27c] sm:$0xff]
        %v280 = vld [vmem:[%s161 + $0x284] sm:$0xf]
        %v281 = vld [vmem:[%s161 + $0x288] sm:$0xff]
        %v282 = vld [vmem:[%s161 + $0x290] sm:$0xf]
        %v283 = vld [vmem:[%s161 + $0x294] sm:$0xff]
        %v284 = vld [vmem:[%s161 + $0x29c] sm:$0xf]
        %v285 = vld [vmem:[%s161 + $0x2a0] sm:$0xff]
        %v286 = vld [vmem:[%s161 + $0x2a8] sm:$0xf]
        %v287 = vld [vmem:[%s161 + $0x2ac] sm:$0xff]
        %v288 = vld [vmem:[%s161 + $0x2b4] sm:$0xf]
        %v289 = vld [vmem:[%s161 + $0x2b8] sm:$0xff]
        %v290 = vld [vmem:[%s161 + $0x2c0] sm:$0xf]
        %v291 = vld [vmem:[%s161 + $0x2c4] sm:$0xff]
        %v292 = vld [vmem:[%s161 + $0x2cc] sm:$0xf]
        %v293 = vld [vmem:[%s161 + $0x2d0] sm:$0xff]
        %v294 = vld [vmem:[%s161 + $0x2d8] sm:$0xf]
        %v295 = vld [vmem:[%s161 + $0x2dc] sm:$0xff]
        %v296 = vld [vmem:[%s161 + $0x2e4] sm:$0xf]
        %v297 = vld [vmem:[%s161 + $0x2e8] sm:$0xff]
        %v298 = vld [vmem:[%s161 + $0x2f0] sm:$0xf]
        %v299 = vld [vmem:[%s161 + $0x2f4] sm:$0xff]
        %v300 = vld [vmem:[%s161 + $0x2fc] sm:$0xf]
        %v301 = vld [vmem:[%s161 + $0x300] sm:$0xff]
        %v302 = vld [vmem:[%s161 + $0x308] sm:$0xf]
        %v303 = vld [vmem:[%s161 + $0x30c] sm:$0xff]
        %v304 = vld [vmem:[%s161 + $0x314] sm:$0xf]
        %v305 = vld [vmem:[%s161 + $0x318] sm:$0xff]
        %v306 = vld [vmem:[%s161 + $0x320] sm:$0xf]
        %v307 = vld [vmem:[%s161 + $0x324] sm:$0xff]
        %v308 = vld [vmem:[%s161 + $0x32c] sm:$0xf]
        %v309 = vld [vmem:[%s161 + $0x330] sm:$0xff]
        %v310 = vld [vmem:[%s161 + $0x338] sm:$0xf]
        %v311 = vld [vmem:[%s161 + $0x33c] sm:$0xff]
        %v312 = vld [vmem:[%s161 + $0x344] sm:$0xf]
        %v313 = vld [vmem:[%s161 + $0x348] sm:$0xff]
        %v314 = vld [vmem:[%s161 + $0x350] sm:$0xf]
        %v315 = vld [vmem:[%s161 + $0x354] sm:$0xff]
        %v316 = vld [vmem:[%s161 + $0x35c] sm:$0xf]
        %v317 = vld [vmem:[%s161 + $0x360] sm:$0xff]
        %v318 = vld [vmem:[%s161 + $0x368] sm:$0xf]
        %v319 = vld [vmem:[%s161 + $0x36c] sm:$0xff]
        %v320 = vld [vmem:[%s161 + $0x374] sm:$0xf]
        %v321 = vld [vmem:[%s161 + $0x378] sm:$0xff]
        %v322 = vld [vmem:[%s161 + $0x380] sm:$0xf]
        %v323 = vld [vmem:[%s161 + $0x384] sm:$0xff]
        %v324 = vld [vmem:[%s161 + $0x38c] sm:$0xf]
        %v325 = vld [vmem:[%s161 + $0x390] sm:$0xff]
        %v326 = vld [vmem:[%s161 + $0x398] sm:$0xf]
        %v327 = vld [vmem:[%s161 + $0x39c] sm:$0xff]
        %v328 = vld [vmem:[%s161 + $0x3a4] sm:$0xf]
        %v329 = vld [vmem:[%s161 + $0x3a8] sm:$0xff]
        %v330 = vld [vmem:[%s161 + $0x3b0] sm:$0xf]
        %v331 = vld [vmem:[%s161 + $0x3b4] sm:$0xff]
        %v332 = vld [vmem:[%s161 + $0x3bc] sm:$0xf]
        %v333 = vld [vmem:[%s161 + $0x3c0] sm:$0xff]
        %v334 = vld [vmem:[%s161 + $0x3c8] sm:$0xf]
        %v335 = vld [vmem:[%s161 + $0x3cc] sm:$0xff]
        %v336 = vld [vmem:[%s161 + $0x3d4] sm:$0xf]
        %v337 = vld [vmem:[%s161 + $0x3d8] sm:$0xff]
        %v338 = vld [vmem:[%s161 + $0x3e0] sm:$0xf]
        %v339 = vld [vmem:[%s161 + $0x3e4] sm:$0xff]
        %v340 = vld [vmem:[%s161 + $0x3ec] sm:$0xf]
        %v341 = vld [vmem:[%s161 + $0x3f0] sm:$0xff]
        %v342 = vld [vmem:[%s161 + $0x3f8] sm:$0xf]
        %v343 = vld [vmem:[%s161 + $0x3fc] sm:$0xff]
        %v344 = vld [vmem:[%s161 + $0x404] sm:$0xf]
        %v345 = vld [vmem:[%s161 + $0x408] sm:$0xff]
        %v346 = vld [vmem:[%s161 + $0x410] sm:$0xf]
        %v347 = vld [vmem:[%s161 + $0x414] sm:$0xff]
        %v348 = vld [vmem:[%s161 + $0x41c] sm:$0xf]
        %v349 = vld [vmem:[%s161 + $0x420] sm:$0xff]
        %v350 = vld [vmem:[%s161 + $0x428] sm:$0xf]
        %v351 = vld [vmem:[%s161 + $0x42c] sm:$0xff]
        %v352 = vld [vmem:[%s161 + $0x434] sm:$0xf]
        %v353 = vld [vmem:[%s161 + $0x438] sm:$0xff]
        %v354 = vld [vmem:[%s161 + $0x440] sm:$0xf]
        %v355 = vld [vmem:[%s161 + $0x444] sm:$0xff]
        %v356 = vld [vmem:[%s161 + $0x44c] sm:$0xf]
        %v357 = vld [vmem:[%s161 + $0x450] sm:$0xff]
        %v358 = vld [vmem:[%s161 + $0x458] sm:$0xf]
        %v359 = vld [vmem:[%s161 + $0x45c] sm:$0xff]
        %v360 = vld [vmem:[%s161 + $0x464] sm:$0xf]
        %v361 = vld [vmem:[%s161 + $0x468] sm:$0xff]
        %v362 = vld [vmem:[%s161 + $0x470] sm:$0xf]
        %v363 = vld [vmem:[%s161 + $0x474] sm:$0xff]
        %v364 = vld [vmem:[%s161 + $0x47c] sm:$0xf]
        %v365 = vld [vmem:[%s1] sm:$0xf]
        %v366 = vld [vmem:[%s1 + $0x4] sm:$0xf]
        %v367 = vld [vmem:[%s1 + $0x8] sm:$0xf]
        %v368 = vld [vmem:[%s1 + $0xc] sm:$0xf]
        %v369 = vld [vmem:[%s1 + $0x10] sm:$0xf]
        %v370 = vld [vmem:[%s1 + $0x14] sm:$0xf]
        %v371 = vld [vmem:[%s1 + $0x18] sm:$0xf]
        %v372 = vld [vmem:[%s1 + $0x1c] sm:$0xf]
        %v373 = vld [vmem:[%s1 + $0x20] sm:$0xf]
        %v374 = vld [vmem:[%s1 + $0x24] sm:$0xf]
        %v375 = vld [vmem:[%s1 + $0x28] sm:$0xf]
        %v376 = vld [vmem:[%s1 + $0x2c] sm:$0xf]
        %v377 = vld [vmem:[%s1 + $0x30] sm:$0xf]
        %v378 = vld [vmem:[%s1 + $0x34] sm:$0xf]
        %v379 = vld [vmem:[%s1 + $0x38] sm:$0xf]
        %v380 = vld [vmem:[%s1 + $0x3c] sm:$0xf]
        %v381 = vld [vmem:[%s1 + $0x40] sm:$0xf]
        %v382 = vld [vmem:[%s1 + $0x44] sm:$0xf]
        %v383 = vld [vmem:[%s1 + $0x48] sm:$0xf]
        %v384 = vld [vmem:[%s1 + $0x4c] sm:$0xf]
        %v385 = vld [vmem:[%s1 + $0x50] sm:$0xf]
        %v386 = vld [vmem:[%s1 + $0x54] sm:$0xf]
        %v387 = vld [vmem:[%s1 + $0x58] sm:$0xf]
        %v388 = vld [vmem:[%s1 + $0x5c] sm:$0xf]
        %v389 = vld [vmem:[%s1 + $0x60] sm:$0xf]
        %v390 = vld [vmem:[%s1 + $0x64] sm:$0xf]
        %v391 = vld [vmem:[%s1 + $0x68] sm:$0xf]
        %v392 = vld [vmem:[%s1 + $0x6c] sm:$0xf]
        %v393 = vld [vmem:[%s1 + $0x70] sm:$0xf]
        %v394 = vld [vmem:[%s1 + $0x74] sm:$0xf]
        %v395 = vld [vmem:[%s1 + $0x78] sm:$0xf]
        %v396 = vld [vmem:[%s1 + $0x7c] sm:$0xf]
        %v397 = vld [vmem:[%s1 + $0x80] sm:$0xf]
        %v398 = vld [vmem:[%s1 + $0x84] sm:$0xf]
        %v399 = vld [vmem:[%s1 + $0x88] sm:$0xf]
        %v400 = vld [vmem:[%s1 + $0x8c] sm:$0xf]
        %v401 = vld [vmem:[%s1 + $0x90] sm:$0xf]
        %v402 = vld [vmem:[%s1 + $0x94] sm:$0xf]
        %v403 = vld [vmem:[%s1 + $0x98] sm:$0xf]
        %v404 = vld [vmem:[%s1 + $0x9c] sm:$0xf]
        %v405 = vld [vmem:[%s1 + $0xa0] sm:$0xf]
        %v406 = vld [vmem:[%s1 + $0xa4] sm:$0xf]
        %v407 = vld [vmem:[%s1 + $0xa8] sm:$0xf]
        %v408 = vld [vmem:[%s1 + $0xac] sm:$0xf]
        %v409 = vld [vmem:[%s1 + $0xb0] sm:$0xf]
        %v410 = vld [vmem:[%s1 + $0xb4] sm:$0xf]
        %v411 = vld [vmem:[%s1 + $0xb8] sm:$0xf]
        %v412 = vld [vmem:[%s1 + $0xbc] sm:$0xf]
        %v605 = vunpack.c.l.b16 %v173
        %v606 = vunpack.c.h.b16 %v173
        %v607 = vunpack.c.l.b16 %v174
        %v608 = vunpack.c.l.b16 %v175
        %v609 = vunpack.c.h.b16 %v175
        %v610 = vunpack.c.l.b16 %v176
        %v611 = vunpack.c.l.b16 %v177
        %v612 = vunpack.c.h.b16 %v177
        %v613 = vunpack.c.l.b16 %v178
        %v614 = vunpack.c.l.b16 %v179
        %v615 = vunpack.c.h.b16 %v179
        %v616 = vunpack.c.l.b16 %v180
        %v617 = vunpack.c.l.b16 %v181
        %v618 = vunpack.c.h.b16 %v181
        %v619 = vunpack.c.l.b16 %v182
        %v620 = vunpack.c.l.b16 %v183
        %v621 = vunpack.c.h.b16 %v183
        %v622 = vunpack.c.l.b16 %v184
        %v623 = vunpack.c.l.b16 %v185
        %v624 = vunpack.c.h.b16 %v185
        %v625 = vunpack.c.l.b16 %v186
        %v626 = vunpack.c.l.b16 %v187
        %v627 = vunpack.c.h.b16 %v187
        %v628 = vunpack.c.l.b16 %v188
        %v629 = vunpack.c.l.b16 %v189
        %v630 = vunpack.c.h.b16 %v189
        %v631 = vunpack.c.l.b16 %v190
        %v632 = vunpack.c.l.b16 %v191
        %v633 = vunpack.c.h.b16 %v191
        %v634 = vunpack.c.l.b16 %v192
        %v635 = vunpack.c.l.b16 %v193
        %v636 = vunpack.c.h.b16 %v193
        %v637 = vunpack.c.l.b16 %v194
        %v638 = vunpack.c.l.b16 %v195
        %v639 = vunpack.c.h.b16 %v195
        %v640 = vunpack.c.l.b16 %v196
        %v641 = vunpack.c.l.b16 %v197
        %v642 = vunpack.c.h.b16 %v197
        %v643 = vunpack.c.l.b16 %v198
        %v644 = vunpack.c.l.b16 %v199
        %v645 = vunpack.c.h.b16 %v199
        %v646 = vunpack.c.l.b16 %v200
        %v647 = vunpack.c.l.b16 %v201
        %v648 = vunpack.c.h.b16 %v201
        %v649 = vunpack.c.l.b16 %v202
        %v650 = vunpack.c.l.b16 %v203
        %v651 = vunpack.c.h.b16 %v203
        %v652 = vunpack.c.l.b16 %v204
        %v653 = vunpack.c.l.b16 %v205
        %v654 = vunpack.c.h.b16 %v205
        %v655 = vunpack.c.l.b16 %v206
        %v656 = vunpack.c.l.b16 %v207
        %v657 = vunpack.c.h.b16 %v207
        %v658 = vunpack.c.l.b16 %v208
        %v659 = vunpack.c.l.b16 %v209
        %v660 = vunpack.c.h.b16 %v209
        %v661 = vunpack.c.l.b16 %v210
        %v662 = vunpack.c.l.b16 %v211
        %v663 = vunpack.c.h.b16 %v211
        %v664 = vunpack.c.l.b16 %v212
        %v665 = vunpack.c.l.b16 %v213
        %v666 = vunpack.c.h.b16 %v213
        %v667 = vunpack.c.l.b16 %v214
        %v668 = vunpack.c.l.b16 %v215
        %v669 = vunpack.c.h.b16 %v215
        %v670 = vunpack.c.l.b16 %v216
        %v671 = vunpack.c.l.b16 %v217
        %v672 = vunpack.c.h.b16 %v217
        %v673 = vunpack.c.l.b16 %v218
        %v674 = vunpack.c.l.b16 %v219
        %v675 = vunpack.c.h.b16 %v219
        %v676 = vunpack.c.l.b16 %v220
        %v677 = vunpack.c.l.b16 %v221
        %v678 = vunpack.c.h.b16 %v221
        %v679 = vunpack.c.l.b16 %v222
        %v680 = vunpack.c.l.b16 %v223
        %v681 = vunpack.c.h.b16 %v223
        %v682 = vunpack.c.l.b16 %v224
        %v683 = vunpack.c.l.b16 %v225
        %v684 = vunpack.c.h.b16 %v225
        %v685 = vunpack.c.l.b16 %v226
        %v686 = vunpack.c.l.b16 %v227
        %v687 = vunpack.c.h.b16 %v227
        %v688 = vunpack.c.l.b16 %v228
        %v689 = vunpack.c.l.b16 %v229
        %v690 = vunpack.c.h.b16 %v229
        %v691 = vunpack.c.l.b16 %v230
        %v692 = vunpack.c.l.b16 %v231
        %v693 = vunpack.c.h.b16 %v231
        %v694 = vunpack.c.l.b16 %v232
        %v695 = vunpack.c.l.b16 %v233
        %v696 = vunpack.c.h.b16 %v233
        %v697 = vunpack.c.l.b16 %v234
        %v698 = vunpack.c.l.b16 %v235
        %v699 = vunpack.c.h.b16 %v235
        %v700 = vunpack.c.l.b16 %v236
        %v701 = vunpack.c.l.b16 %v237
        %v702 = vunpack.c.h.b16 %v237
        %v703 = vunpack.c.l.b16 %v238
        %v704 = vunpack.c.l.b16 %v239
        %v705 = vunpack.c.h.b16 %v239
        %v706 = vunpack.c.l.b16 %v240
        %v707 = vunpack.c.l.b16 %v241
        %v708 = vunpack.c.h.b16 %v241
        %v709 = vunpack.c.l.b16 %v242
        %v710 = vunpack.c.l.b16 %v243
        %v711 = vunpack.c.h.b16 %v243
        %v712 = vunpack.c.l.b16 %v244
        %v713 = vunpack.c.l.b16 %v245
        %v714 = vunpack.c.h.b16 %v245
        %v715 = vunpack.c.l.b16 %v246
        %v716 = vunpack.c.l.b16 %v247
        %v717 = vunpack.c.h.b16 %v247
        %v718 = vunpack.c.l.b16 %v248
        %v719 = vunpack.c.l.b16 %v249
        %v720 = vunpack.c.h.b16 %v249
        %v721 = vunpack.c.l.b16 %v250
        %v722 = vunpack.c.l.b16 %v251
        %v723 = vunpack.c.h.b16 %v251
        %v724 = vunpack.c.l.b16 %v252
        %v725 = vunpack.c.l.b16 %v253
        %v726 = vunpack.c.h.b16 %v253
        %v727 = vunpack.c.l.b16 %v254
        %v728 = vunpack.c.l.b16 %v255
        %v729 = vunpack.c.h.b16 %v255
        %v730 = vunpack.c.l.b16 %v256
        %v731 = vunpack.c.l.b16 %v257
        %v732 = vunpack.c.h.b16 %v257
        %v733 = vunpack.c.l.b16 %v258
        %v734 = vunpack.c.l.b16 %v259
        %v735 = vunpack.c.h.b16 %v259
        %v736 = vunpack.c.l.b16 %v260
        %v737 = vunpack.c.l.b16 %v261
        %v738 = vunpack.c.h.b16 %v261
        %v739 = vunpack.c.l.b16 %v262
        %v740 = vunpack.c.l.b16 %v263
        %v741 = vunpack.c.h.b16 %v263
        %v742 = vunpack.c.l.b16 %v264
        %v743 = vunpack.c.l.b16 %v265
        %v744 = vunpack.c.h.b16 %v265
        %v745 = vunpack.c.l.b16 %v266
        %v746 = vunpack.c.l.b16 %v267
        %v747 = vunpack.c.h.b16 %v267
        %v748 = vunpack.c.l.b16 %v268
        %v749 = vunpack.c.l.b16 %v269
        %v750 = vunpack.c.h.b16 %v269
        %v751 = vunpack.c.l.b16 %v270
        %v752 = vunpack.c.l.b16 %v271
        %v753 = vunpack.c.h.b16 %v271
        %v754 = vunpack.c.l.b16 %v272
        %v755 = vunpack.c.l.b16 %v273
        %v756 = vunpack.c.h.b16 %v273
        %v757 = vunpack.c.l.b16 %v274
        %v758 = vunpack.c.l.b16 %v275
        %v759 = vunpack.c.h.b16 %v275
        %v760 = vunpack.c.l.b16 %v276
        %v761 = vunpack.c.l.b16 %v277
        %v762 = vunpack.c.h.b16 %v277
        %v763 = vunpack.c.l.b16 %v278
        %v764 = vunpack.c.l.b16 %v279
        %v765 = vunpack.c.h.b16 %v279
        %v766 = vunpack.c.l.b16 %v280
        %v767 = vunpack.c.l.b16 %v281
        %v768 = vunpack.c.h.b16 %v281
        %v769 = vunpack.c.l.b16 %v282
        %v770 = vunpack.c.l.b16 %v283
        %v771 = vunpack.c.h.b16 %v283
        %v772 = vunpack.c.l.b16 %v284
        %v773 = vunpack.c.l.b16 %v285
        %v774 = vunpack.c.h.b16 %v285
        %v775 = vunpack.c.l.b16 %v286
        %v776 = vunpack.c.l.b16 %v287
        %v777 = vunpack.c.h.b16 %v287
        %v778 = vunpack.c.l.b16 %v288
        %v779 = vunpack.c.l.b16 %v289
        %v780 = vunpack.c.h.b16 %v289
        %v781 = vunpack.c.l.b16 %v290
        %v782 = vunpack.c.l.b16 %v291
        %v783 = vunpack.c.h.b16 %v291
        %v784 = vunpack.c.l.b16 %v292
        %v785 = vunpack.c.l.b16 %v293
        %v786 = vunpack.c.h.b16 %v293
        %v787 = vunpack.c.l.b16 %v294
        %v788 = vunpack.c.l.b16 %v295
        %v789 = vunpack.c.h.b16 %v295
        %v790 = vunpack.c.l.b16 %v296
        %v791 = vunpack.c.l.b16 %v297
        %v792 = vunpack.c.h.b16 %v297
        %v793 = vunpack.c.l.b16 %v298
        %v794 = vunpack.c.l.b16 %v299
        %v795 = vunpack.c.h.b16 %v299
        %v796 = vunpack.c.l.b16 %v300
        %v797 = vunpack.c.l.b16 %v301
        %v798 = vunpack.c.h.b16 %v301
        %v799 = vunpack.c.l.b16 %v302
        %v800 = vunpack.c.l.b16 %v303
        %v801 = vunpack.c.h.b16 %v303
        %v802 = vunpack.c.l.b16 %v304
        %v803 = vunpack.c.l.b16 %v305
        %v804 = vunpack.c.h.b16 %v305
        %v805 = vunpack.c.l.b16 %v306
        %v806 = vunpack.c.l.b16 %v307
        %v807 = vunpack.c.h.b16 %v307
        %v808 = vunpack.c.l.b16 %v308
        %v809 = vunpack.c.l.b16 %v309
        %v810 = vunpack.c.h.b16 %v309
        %v811 = vunpack.c.l.b16 %v310
        %v812 = vunpack.c.l.b16 %v311
        %v813 = vunpack.c.h.b16 %v311
        %v814 = vunpack.c.l.b16 %v312
        %v815 = vunpack.c.l.b16 %v313
        %v816 = vunpack.c.h.b16 %v313
        %v817 = vunpack.c.l.b16 %v314
        %v818 = vunpack.c.l.b16 %v315
        %v819 = vunpack.c.h.b16 %v315
        %v820 = vunpack.c.l.b16 %v316
        %v821 = vunpack.c.l.b16 %v317
        %v822 = vunpack.c.h.b16 %v317
        %v823 = vunpack.c.l.b16 %v318
        %v824 = vunpack.c.l.b16 %v319
        %v825 = vunpack.c.h.b16 %v319
        %v826 = vunpack.c.l.b16 %v320
        %v827 = vunpack.c.l.b16 %v321
        %v828 = vunpack.c.h.b16 %v321
        %v829 = vunpack.c.l.b16 %v322
        %v830 = vunpack.c.l.b16 %v323
        %v831 = vunpack.c.h.b16 %v323
        %v832 = vunpack.c.l.b16 %v324
        %v833 = vunpack.c.l.b16 %v325
        %v834 = vunpack.c.h.b16 %v325
        %v835 = vunpack.c.l.b16 %v326
        %v836 = vunpack.c.l.b16 %v327
        %v837 = vunpack.c.h.b16 %v327
        %v838 = vunpack.c.l.b16 %v328
        %v839 = vunpack.c.l.b16 %v329
        %v840 = vunpack.c.h.b16 %v329
        %v841 = vunpack.c.l.b16 %v330
        %v842 = vunpack.c.l.b16 %v331
        %v843 = vunpack.c.h.b16 %v331
        %v844 = vunpack.c.l.b16 %v332
        %v845 = vunpack.c.l.b16 %v333
        %v846 = vunpack.c.h.b16 %v333
        %v847 = vunpack.c.l.b16 %v334
        %v848 = vunpack.c.l.b16 %v335
        %v849 = vunpack.c.h.b16 %v335
        %v850 = vunpack.c.l.b16 %v336
        %v851 = vunpack.c.l.b16 %v337
        %v852 = vunpack.c.h.b16 %v337
        %v853 = vunpack.c.l.b16 %v338
        %v854 = vunpack.c.l.b16 %v339
        %v855 = vunpack.c.h.b16 %v339
        %v856 = vunpack.c.l.b16 %v340
        %v857 = vunpack.c.l.b16 %v341
        %v858 = vunpack.c.h.b16 %v341
        %v859 = vunpack.c.l.b16 %v342
        %v860 = vunpack.c.l.b16 %v343
        %v861 = vunpack.c.h.b16 %v343
        %v862 = vunpack.c.l.b16 %v344
        %v863 = vunpack.c.l.b16 %v345
        %v864 = vunpack.c.h.b16 %v345
        %v865 = vunpack.c.l.b16 %v346
        %v866 = vunpack.c.l.b16 %v347
        %v867 = vunpack.c.h.b16 %v347
        %v868 = vunpack.c.l.b16 %v348
        %v869 = vunpack.c.l.b16 %v349
        %v870 = vunpack.c.h.b16 %v349
        %v871 = vunpack.c.l.b16 %v350
        %v872 = vunpack.c.l.b16 %v351
        %v873 = vunpack.c.h.b16 %v351
        %v874 = vunpack.c.l.b16 %v352
        %v875 = vunpack.c.l.b16 %v353
        %v876 = vunpack.c.h.b16 %v353
        %v877 = vunpack.c.l.b16 %v354
        %v878 = vunpack.c.l.b16 %v355
        %v879 = vunpack.c.h.b16 %v355
        %v880 = vunpack.c.l.b16 %v356
        %v881 = vunpack.c.l.b16 %v357
        %v882 = vunpack.c.h.b16 %v357
        %v883 = vunpack.c.l.b16 %v358
        %v884 = vunpack.c.l.b16 %v359
        %v885 = vunpack.c.h.b16 %v359
        %v886 = vunpack.c.l.b16 %v360
        %v887 = vunpack.c.l.b16 %v361
        %v888 = vunpack.c.h.b16 %v361
        %v889 = vunpack.c.l.b16 %v362
        %v890 = vunpack.c.l.b16 %v363
        %v891 = vunpack.c.h.b16 %v363
        %v892 = vunpack.c.l.b16 %v364
        %v893 = vpack.c.b16 %v608, %v605
        %v894 = vpack.c.b16 %v609, %v606
        %v895 = vpack.c.b16 %v610, %v607
        %v896 = vpack.c.b16 %v614, %v611
        %v897 = vpack.c.b16 %v615, %v612
        %v898 = vpack.c.b16 %v616, %v613
        %v899 = vpack.c.b16 %v620, %v617
        %v900 = vpack.c.b16 %v621, %v618
        %v901 = vpack.c.b16 %v622, %v619
        %v902 = vpack.c.b16 %v626, %v623
        %v903 = vpack.c.b16 %v627, %v624
        %v904 = vpack.c.b16 %v628, %v625
        %v905 = vpack.c.b16 %v632, %v629
        %v906 = vpack.c.b16 %v633, %v630
        %v907 = vpack.c.b16 %v634, %v631
        %v908 = vpack.c.b16 %v638, %v635
        %v909 = vpack.c.b16 %v639, %v636
        %v910 = vpack.c.b16 %v640, %v637
        %v911 = vpack.c.b16 %v644, %v641
        %v912 = vpack.c.b16 %v645, %v642
        %v913 = vpack.c.b16 %v646, %v643
        %v914 = vpack.c.b16 %v650, %v647
        %v915 = vpack.c.b16 %v651, %v648
        %v916 = vpack.c.b16 %v652, %v649
        %v917 = vpack.c.b16 %v656, %v653
        %v918 = vpack.c.b16 %v657, %v654
        %v919 = vpack.c.b16 %v658, %v655
        %v920 = vpack.c.b16 %v662, %v659
        %v921 = vpack.c.b16 %v663, %v660
        %v922 = vpack.c.b16 %v664, %v661
        %v923 = vpack.c.b16 %v668, %v665
        %v924 = vpack.c.b16 %v669, %v666
        %v925 = vpack.c.b16 %v670, %v667
        %v926 = vpack.c.b16 %v674, %v671
        %v927 = vpack.c.b16 %v675, %v672
        %v928 = vpack.c.b16 %v676, %v673
        %v929 = vpack.c.b16 %v680, %v677
        %v930 = vpack.c.b16 %v681, %v678
        %v931 = vpack.c.b16 %v682, %v679
        %v932 = vpack.c.b16 %v686, %v683
        %v933 = vpack.c.b16 %v687, %v684
        %v934 = vpack.c.b16 %v688, %v685
        %v935 = vpack.c.b16 %v692, %v689
        %v936 = vpack.c.b16 %v693, %v690
        %v937 = vpack.c.b16 %v694, %v691
        %v938 = vpack.c.b16 %v698, %v695
        %v939 = vpack.c.b16 %v699, %v696
        %v940 = vpack.c.b16 %v700, %v697
        %v941 = vpack.c.b16 %v704, %v701
        %v942 = vpack.c.b16 %v705, %v702
        %v943 = vpack.c.b16 %v706, %v703
        %v944 = vpack.c.b16 %v710, %v707
        %v945 = vpack.c.b16 %v711, %v708
        %v946 = vpack.c.b16 %v712, %v709
        %v947 = vpack.c.b16 %v716, %v713
        %v948 = vpack.c.b16 %v717, %v714
        %v949 = vpack.c.b16 %v718, %v715
        %v950 = vpack.c.b16 %v722, %v719
        %v951 = vpack.c.b16 %v723, %v720
        %v952 = vpack.c.b16 %v724, %v721
        %v953 = vpack.c.b16 %v728, %v725
        %v954 = vpack.c.b16 %v729, %v726
        %v955 = vpack.c.b16 %v730, %v727
        %v956 = vpack.c.b16 %v734, %v731
        %v957 = vpack.c.b16 %v735, %v732
        %v958 = vpack.c.b16 %v736, %v733
        %v959 = vpack.c.b16 %v740, %v737
        %v960 = vpack.c.b16 %v741, %v738
        %v961 = vpack.c.b16 %v742, %v739
        %v962 = vpack.c.b16 %v746, %v743
        %v963 = vpack.c.b16 %v747, %v744
        %v964 = vpack.c.b16 %v748, %v745
        %v965 = vpack.c.b16 %v752, %v749
        %v966 = vpack.c.b16 %v753, %v750
        %v967 = vpack.c.b16 %v754, %v751
        %v968 = vpack.c.b16 %v758, %v755
        %v969 = vpack.c.b16 %v759, %v756
        %v970 = vpack.c.b16 %v760, %v757
        %v971 = vpack.c.b16 %v764, %v761
        %v972 = vpack.c.b16 %v765, %v762
        %v973 = vpack.c.b16 %v766, %v763
        %v974 = vpack.c.b16 %v770, %v767
        %v975 = vpack.c.b16 %v771, %v768
        %v976 = vpack.c.b16 %v772, %v769
        %v977 = vpack.c.b16 %v776, %v773
        %v978 = vpack.c.b16 %v777, %v774
        %v979 = vpack.c.b16 %v778, %v775
        %v980 = vpack.c.b16 %v782, %v779
        %v981 = vpack.c.b16 %v783, %v780
        %v982 = vpack.c.b16 %v784, %v781
        %v983 = vpack.c.b16 %v788, %v785
        %v984 = vpack.c.b16 %v789, %v786
        %v985 = vpack.c.b16 %v790, %v787
        %v986 = vpack.c.b16 %v794, %v791
        %v987 = vpack.c.b16 %v795, %v792
        %v988 = vpack.c.b16 %v796, %v793
        %v989 = vpack.c.b16 %v800, %v797
        %v990 = vpack.c.b16 %v801, %v798
        %v991 = vpack.c.b16 %v802, %v799
        %v992 = vpack.c.b16 %v806, %v803
        %v993 = vpack.c.b16 %v807, %v804
        %v994 = vpack.c.b16 %v808, %v805
        %v995 = vpack.c.b16 %v812, %v809
        %v996 = vpack.c.b16 %v813, %v810
        %v997 = vpack.c.b16 %v814, %v811
        %v998 = vpack.c.b16 %v818, %v815
        %v999 = vpack.c.b16 %v819, %v816
        %v1000 = vpack.c.b16 %v820, %v817
        %v1001 = vpack.c.b16 %v824, %v821
        %v1002 = vpack.c.b16 %v825, %v822
        %v1003 = vpack.c.b16 %v826, %v823
        %v1004 = vpack.c.b16 %v830, %v827
        %v1005 = vpack.c.b16 %v831, %v828
        %v1006 = vpack.c.b16 %v832, %v829
        %v1007 = vpack.c.b16 %v836, %v833
        %v1008 = vpack.c.b16 %v837, %v834
        %v1009 = vpack.c.b16 %v838, %v835
        %v1010 = vpack.c.b16 %v842, %v839
        %v1011 = vpack.c.b16 %v843, %v840
        %v1012 = vpack.c.b16 %v844, %v841
        %v1013 = vpack.c.b16 %v848, %v845
        %v1014 = vpack.c.b16 %v849, %v846
        %v1015 = vpack.c.b16 %v850, %v847
        %v1016 = vpack.c.b16 %v854, %v851
        %v1017 = vpack.c.b16 %v855, %v852
        %v1018 = vpack.c.b16 %v856, %v853
        %v1019 = vpack.c.b16 %v860, %v857
        %v1020 = vpack.c.b16 %v861, %v858
        %v1021 = vpack.c.b16 %v862, %v859
        %v1022 = vpack.c.b16 %v866, %v863
        %v1023 = vpack.c.b16 %v867, %v864
        %v1024 = vpack.c.b16 %v868, %v865
        %v1025 = vpack.c.b16 %v872, %v869
        %v1026 = vpack.c.b16 %v873, %v870
        %v1027 = vpack.c.b16 %v874, %v871
        %v1028 = vpack.c.b16 %v878, %v875
        %v1029 = vpack.c.b16 %v879, %v876
        %v1030 = vpack.c.b16 %v880, %v877
        %v1031 = vpack.c.b16 %v884, %v881
        %v1032 = vpack.c.b16 %v885, %v882
        %v1033 = vpack.c.b16 %v886, %v883
        %v1034 = vpack.c.b16 %v890, %v887
        %v1035 = vpack.c.b16 %v891, %v888
        %v1036 = vpack.c.b16 %v892, %v889
        %v1229 = vunpack.c.l.b16 %v365
        %v1230 = vunpack.c.l.b16 %v366
        %v1231 = vunpack.c.l.b16 %v367
        %v1232 = vunpack.c.l.b16 %v368
        %v1233 = vunpack.c.l.b16 %v369
        %v1234 = vunpack.c.l.b16 %v370
        %v1235 = vunpack.c.l.b16 %v371
        %v1236 = vunpack.c.l.b16 %v372
        %v1237 = vunpack.c.l.b16 %v373
        %v1238 = vunpack.c.l.b16 %v374
        %v1239 = vunpack.c.l.b16 %v375
        %v1240 = vunpack.c.l.b16 %v376
        %v1241 = vunpack.c.l.b16 %v377
        %v1242 = vunpack.c.l.b16 %v378
        %v1243 = vunpack.c.l.b16 %v379
        %v1244 = vunpack.c.l.b16 %v380
        %v1245 = vunpack.c.l.b16 %v381
        %v1246 = vunpack.c.l.b16 %v382
        %v1247 = vunpack.c.l.b16 %v383
        %v1248 = vunpack.c.l.b16 %v384
        %v1249 = vunpack.c.l.b16 %v385
        %v1250 = vunpack.c.l.b16 %v386
        %v1251 = vunpack.c.l.b16 %v387
        %v1252 = vunpack.c.l.b16 %v388
        %v1253 = vunpack.c.l.b16 %v389
        %v1254 = vunpack.c.l.b16 %v390
        %v1255 = vunpack.c.l.b16 %v391
        %v1256 = vunpack.c.l.b16 %v392
        %v1257 = vunpack.c.l.b16 %v393
        %v1258 = vunpack.c.l.b16 %v394
        %v1259 = vunpack.c.l.b16 %v395
        %v1260 = vunpack.c.l.b16 %v396
        %v1261 = vunpack.c.l.b16 %v397
        %v1262 = vunpack.c.l.b16 %v398
        %v1263 = vunpack.c.l.b16 %v399
        %v1264 = vunpack.c.l.b16 %v400
        %v1265 = vunpack.c.l.b16 %v401
        %v1266 = vunpack.c.l.b16 %v402
        %v1267 = vunpack.c.l.b16 %v403
        %v1268 = vunpack.c.l.b16 %v404
        %v1269 = vunpack.c.l.b16 %v405
        %v1270 = vunpack.c.l.b16 %v406
        %v1271 = vunpack.c.l.b16 %v407
        %v1272 = vunpack.c.l.b16 %v408
        %v1273 = vunpack.c.l.b16 %v409
        %v1274 = vunpack.c.l.b16 %v410
        %v1275 = vunpack.c.l.b16 %v411
        %v1276 = vunpack.c.l.b16 %v412
        %v1277 = vpack.c.b16 %v1230, %v1229
        %v1278 = vpack.c.b16 %v1232, %v1231
        %v1279 = vpack.c.b16 %v1234, %v1233
        %v1280 = vpack.c.b16 %v1236, %v1235
        %v1281 = vpack.c.b16 %v1238, %v1237
        %v1282 = vpack.c.b16 %v1240, %v1239
        %v1283 = vpack.c.b16 %v1242, %v1241
        %v1284 = vpack.c.b16 %v1244, %v1243
        %v1285 = vpack.c.b16 %v1246, %v1245
        %v1286 = vpack.c.b16 %v1248, %v1247
        %v1287 = vpack.c.b16 %v1250, %v1249
        %v1288 = vpack.c.b16 %v1252, %v1251
        %v1289 = vpack.c.b16 %v1254, %v1253
        %v1290 = vpack.c.b16 %v1256, %v1255
        %v1291 = vpack.c.b16 %v1258, %v1257
        %v1292 = vpack.c.b16 %v1260, %v1259
        %v1293 = vpack.c.b16 %v1262, %v1261
        %v1294 = vpack.c.b16 %v1264, %v1263
        %v1295 = vpack.c.b16 %v1266, %v1265
        %v1296 = vpack.c.b16 %v1268, %v1267
        %v1297 = vpack.c.b16 %v1270, %v1269
        %v1298 = vpack.c.b16 %v1272, %v1271
        %v1299 = vpack.c.b16 %v1274, %v1273
        %v1300 = vpack.c.b16 %v1276, %v1275
        %1325 = vmatpush.bf16.msra.mxu0 %v1284
        %1326 = vmatpush.bf16.msra.mxu0 %v1283
        %1327 = vmatpush.bf16.msra.mxu0 %v1282
        %1328 = vmatpush.bf16.msra.mxu0 %v1281
        %1329 = vmatpush.bf16.msra.mxu0 %v1280
        %1330 = vmatpush.bf16.msra.mxu0 %v1279
        %1331 = vmatpush.bf16.msra.mxu0 %v1278
        %1332 = vmatpush.bf16.msra.mxu0 %v1277
        %1333 = vmatmul.bf16.gmra.mxu0 %v893
        %v1334 = vpop.f32.mrf.mxu0
        %v1335 = vadd.f32 0.0, %v1334
        %v1336 = vpop.f32.mrf.mxu0
        %v1337 = vadd.f32 0.0, %v1336
        %1338 = vmatmul.bf16.gmra.mxu0 %v896
        %v1339 = vpop.f32.mrf.mxu0
        %v1340 = vadd.f32 0.0, %v1339
        %v1341 = vpop.f32.mrf.mxu0
        %v1342 = vadd.f32 0.0, %v1341
        %1343 = vmatmul.bf16.gmra.mxu0 %v899
        %v1344 = vpop.f32.mrf.mxu0
        %v1345 = vadd.f32 0.0, %v1344
        %v1346 = vpop.f32.mrf.mxu0
        %v1347 = vadd.f32 0.0, %v1346
        %1348 = vmatmul.bf16.gmra.mxu0 %v902
        %v1349 = vpop.f32.mrf.mxu0
        %v1350 = vadd.f32 0.0, %v1349
        %v1351 = vpop.f32.mrf.mxu0
        %v1352 = vadd.f32 0.0, %v1351
        %1353 = vmatmul.bf16.gmra.mxu0 %v905
        %v1354 = vpop.f32.mrf.mxu0
        %v1355 = vadd.f32 0.0, %v1354
        %v1356 = vpop.f32.mrf.mxu0
        %v1357 = vadd.f32 0.0, %v1356
        %1358 = vmatmul.bf16.gmra.mxu0 %v908
        %v1359 = vpop.f32.mrf.mxu0
        %v1360 = vadd.f32 0.0, %v1359
        %v1361 = vpop.f32.mrf.mxu0
        %v1362 = vadd.f32 0.0, %v1361
        %1363 = vmatmul.bf16.gmra.mxu0 %v911
        %v1364 = vpop.f32.mrf.mxu0
        %v1365 = vadd.f32 0.0, %v1364
        %v1366 = vpop.f32.mrf.mxu0
        %v1367 = vadd.f32 0.0, %v1366
        %1368 = vmatmul.bf16.gmra.mxu0 %v914
        %v1369 = vpop.f32.mrf.mxu0
        %v1370 = vadd.f32 0.0, %v1369
        %v1371 = vpop.f32.mrf.mxu0
        %v1372 = vadd.f32 0.0, %v1371
        %1373 = vmatmul.bf16.gmra.mxu0 %v917
        %v1374 = vpop.f32.mrf.mxu0
        %v1375 = vadd.f32 0.0, %v1374
        %v1376 = vpop.f32.mrf.mxu0
        %v1377 = vadd.f32 0.0, %v1376
        %1378 = vmatmul.bf16.gmra.mxu0 %v920
        %v1379 = vpop.f32.mrf.mxu0
        %v1380 = vadd.f32 0.0, %v1379
        %v1381 = vpop.f32.mrf.mxu0
        %v1382 = vadd.f32 0.0, %v1381
        %1383 = vmatmul.bf16.gmra.mxu0 %v923
        %v1384 = vpop.f32.mrf.mxu0
        %v1385 = vadd.f32 0.0, %v1384
        %v1386 = vpop.f32.mrf.mxu0
        %v1387 = vadd.f32 0.0, %v1386
        %1388 = vmatmul.bf16.gmra.mxu0 %v926
        %v1389 = vpop.f32.mrf.mxu0
        %v1390 = vadd.f32 0.0, %v1389
        %v1391 = vpop.f32.mrf.mxu0
        %v1392 = vadd.f32 0.0, %v1391
        %1393 = vmatmul.bf16.gmra.mxu0 %v929
        %v1394 = vpop.f32.mrf.mxu0
        %v1395 = vadd.f32 0.0, %v1394
        %v1396 = vpop.f32.mrf.mxu0
        %v1397 = vadd.f32 0.0, %v1396
        %1398 = vmatmul.bf16.gmra.mxu0 %v932
        %v1399 = vpop.f32.mrf.mxu0
        %v1400 = vadd.f32 0.0, %v1399
        %v1401 = vpop.f32.mrf.mxu0
        %v1402 = vadd.f32 0.0, %v1401
        %1403 = vmatmul.bf16.gmra.mxu0 %v935
        %v1404 = vpop.f32.mrf.mxu0
        %v1405 = vadd.f32 0.0, %v1404
        %v1406 = vpop.f32.mrf.mxu0
        %v1407 = vadd.f32 0.0, %v1406
        %1408 = vmatmul.bf16.gmra.mxu0 %v938
        %v1409 = vpop.f32.mrf.mxu0
        %v1410 = vadd.f32 0.0, %v1409
        %v1411 = vpop.f32.mrf.mxu0
        %v1412 = vadd.f32 0.0, %v1411
        %1413 = vmatmul.bf16.gmra.mxu0 %v941
        %v1414 = vpop.f32.mrf.mxu0
        %v1415 = vadd.f32 0.0, %v1414
        %v1416 = vpop.f32.mrf.mxu0
        %v1417 = vadd.f32 0.0, %v1416
        %1418 = vmatmul.bf16.gmra.mxu0 %v944
        %v1419 = vpop.f32.mrf.mxu0
        %v1420 = vadd.f32 0.0, %v1419
        %v1421 = vpop.f32.mrf.mxu0
        %v1422 = vadd.f32 0.0, %v1421
        %1423 = vmatmul.bf16.gmra.mxu0 %v947
        %v1424 = vpop.f32.mrf.mxu0
        %v1425 = vadd.f32 0.0, %v1424
        %v1426 = vpop.f32.mrf.mxu0
        %v1427 = vadd.f32 0.0, %v1426
        %1428 = vmatmul.bf16.gmra.mxu0 %v950
        %v1429 = vpop.f32.mrf.mxu0
        %v1430 = vadd.f32 0.0, %v1429
        %v1431 = vpop.f32.mrf.mxu0
        %v1432 = vadd.f32 0.0, %v1431
        %1433 = vmatmul.bf16.gmra.mxu0 %v953
        %v1434 = vpop.f32.mrf.mxu0
        %v1435 = vadd.f32 0.0, %v1434
        %v1436 = vpop.f32.mrf.mxu0
        %v1437 = vadd.f32 0.0, %v1436
        %1438 = vmatmul.bf16.gmra.mxu0 %v956
        %v1439 = vpop.f32.mrf.mxu0
        %v1440 = vadd.f32 0.0, %v1439
        %v1441 = vpop.f32.mrf.mxu0
        %v1442 = vadd.f32 0.0, %v1441
        %1443 = vmatmul.bf16.gmra.mxu0 %v959
        %v1444 = vpop.f32.mrf.mxu0
        %v1445 = vadd.f32 0.0, %v1444
        %v1446 = vpop.f32.mrf.mxu0
        %v1447 = vadd.f32 0.0, %v1446
        %1448 = vmatmul.bf16.gmra.mxu0 %v962
        %v1449 = vpop.f32.mrf.mxu0
        %v1450 = vadd.f32 0.0, %v1449
        %v1451 = vpop.f32.mrf.mxu0
        %v1452 = vadd.f32 0.0, %v1451
        %1453 = vmatmul.bf16.gmra.mxu0 %v965
        %v1454 = vpop.f32.mrf.mxu0
        %v1455 = vadd.f32 0.0, %v1454
        %v1456 = vpop.f32.mrf.mxu0
        %v1457 = vadd.f32 0.0, %v1456
        %1458 = vmatmul.bf16.gmra.mxu0 %v968
        %v1459 = vpop.f32.mrf.mxu0
        %v1460 = vadd.f32 0.0, %v1459
        %v1461 = vpop.f32.mrf.mxu0
        %v1462 = vadd.f32 0.0, %v1461
        %1463 = vmatmul.bf16.gmra.mxu0 %v971
        %v1464 = vpop.f32.mrf.mxu0
        %v1465 = vadd.f32 0.0, %v1464
        %v1466 = vpop.f32.mrf.mxu0
        %v1467 = vadd.f32 0.0, %v1466
        %1468 = vmatmul.bf16.gmra.mxu0 %v974
        %v1469 = vpop.f32.mrf.mxu0
        %v1470 = vadd.f32 0.0, %v1469
        %v1471 = vpop.f32.mrf.mxu0
        %v1472 = vadd.f32 0.0, %v1471
        %1473 = vmatmul.bf16.gmra.mxu0 %v977
        %v1474 = vpop.f32.mrf.mxu0
        %v1475 = vadd.f32 0.0, %v1474
        %v1476 = vpop.f32.mrf.mxu0
        %v1477 = vadd.f32 0.0, %v1476
        %1478 = vmatmul.bf16.gmra.mxu0 %v980
        %v1479 = vpop.f32.mrf.mxu0
        %v1480 = vadd.f32 0.0, %v1479
        %v1481 = vpop.f32.mrf.mxu0
        %v1482 = vadd.f32 0.0, %v1481
        %1483 = vmatmul.bf16.gmra.mxu0 %v983
        %v1484 = vpop.f32.mrf.mxu0
        %v1485 = vadd.f32 0.0, %v1484
        %v1486 = vpop.f32.mrf.mxu0
        %v1487 = vadd.f32 0.0, %v1486
        %1488 = vmatmul.bf16.gmra.mxu0 %v986
        %v1489 = vpop.f32.mrf.mxu0
        %v1490 = vadd.f32 0.0, %v1489
        %v1491 = vpop.f32.mrf.mxu0
        %v1492 = vadd.f32 0.0, %v1491
        %1493 = vmatmul.bf16.gmra.mxu0 %v989
        %v1494 = vpop.f32.mrf.mxu0
        %v1495 = vadd.f32 0.0, %v1494
        %v1496 = vpop.f32.mrf.mxu0
        %v1497 = vadd.f32 0.0, %v1496
        %1498 = vmatmul.bf16.gmra.mxu0 %v992
        %v1499 = vpop.f32.mrf.mxu0
        %v1500 = vadd.f32 0.0, %v1499
        %v1501 = vpop.f32.mrf.mxu0
        %v1502 = vadd.f32 0.0, %v1501
        %1503 = vmatmul.bf16.gmra.mxu0 %v995
        %v1504 = vpop.f32.mrf.mxu0
        %v1505 = vadd.f32 0.0, %v1504
        %v1506 = vpop.f32.mrf.mxu0
        %v1507 = vadd.f32 0.0, %v1506
        %1508 = vmatmul.bf16.gmra.mxu0 %v998
        %v1509 = vpop.f32.mrf.mxu0
        %v1510 = vadd.f32 0.0, %v1509
        %v1511 = vpop.f32.mrf.mxu0
        %v1512 = vadd.f32 0.0, %v1511
        %1513 = vmatmul.bf16.gmra.mxu0 %v1001
        %v1514 = vpop.f32.mrf.mxu0
        %v1515 = vadd.f32 0.0, %v1514
        %v1516 = vpop.f32.mrf.mxu0
        %v1517 = vadd.f32 0.0, %v1516
        %1518 = vmatmul.bf16.gmra.mxu0 %v1004
        %v1519 = vpop.f32.mrf.mxu0
        %v1520 = vadd.f32 0.0, %v1519
        %v1521 = vpop.f32.mrf.mxu0
        %v1522 = vadd.f32 0.0, %v1521
        %1523 = vmatmul.bf16.gmra.mxu0 %v1007
        %v1524 = vpop.f32.mrf.mxu0
        %v1525 = vadd.f32 0.0, %v1524
        %v1526 = vpop.f32.mrf.mxu0
        %v1527 = vadd.f32 0.0, %v1526
        %1528 = vmatmul.bf16.gmra.mxu0 %v1010
        %v1529 = vpop.f32.mrf.mxu0
        %v1530 = vadd.f32 0.0, %v1529
        %v1531 = vpop.f32.mrf.mxu0
        %v1532 = vadd.f32 0.0, %v1531
        %1533 = vmatmul.bf16.gmra.mxu0 %v1013
        %v1534 = vpop.f32.mrf.mxu0
        %v1535 = vadd.f32 0.0, %v1534
        %v1536 = vpop.f32.mrf.mxu0
        %v1537 = vadd.f32 0.0, %v1536
        %1538 = vmatmul.bf16.gmra.mxu0 %v1016
        %v1539 = vpop.f32.mrf.mxu0
        %v1540 = vadd.f32 0.0, %v1539
        %v1541 = vpop.f32.mrf.mxu0
        %v1542 = vadd.f32 0.0, %v1541
        %1543 = vmatmul.bf16.gmra.mxu0 %v1019
        %v1544 = vpop.f32.mrf.mxu0
        %v1545 = vadd.f32 0.0, %v1544
        %v1546 = vpop.f32.mrf.mxu0
        %v1547 = vadd.f32 0.0, %v1546
        %1548 = vmatmul.bf16.gmra.mxu0 %v1022
        %v1549 = vpop.f32.mrf.mxu0
        %v1550 = vadd.f32 0.0, %v1549
        %v1551 = vpop.f32.mrf.mxu0
        %v1552 = vadd.f32 0.0, %v1551
        %1553 = vmatmul.bf16.gmra.mxu0 %v1025
        %v1554 = vpop.f32.mrf.mxu0
        %v1555 = vadd.f32 0.0, %v1554
        %v1556 = vpop.f32.mrf.mxu0
        %v1557 = vadd.f32 0.0, %v1556
        %1558 = vmatmul.bf16.gmra.mxu0 %v1028
        %v1559 = vpop.f32.mrf.mxu0
        %v1560 = vadd.f32 0.0, %v1559
        %v1561 = vpop.f32.mrf.mxu0
        %v1562 = vadd.f32 0.0, %v1561
        %1563 = vmatmul.bf16.gmra.mxu0 %v1031
        %v1564 = vpop.f32.mrf.mxu0
        %v1565 = vadd.f32 0.0, %v1564
        %v1566 = vpop.f32.mrf.mxu0
        %v1567 = vadd.f32 0.0, %v1566
        %1568 = vmatmul.bf16.gmra.mxu0 %v1034
        %v1569 = vpop.f32.mrf.mxu0
        %v1570 = vadd.f32 0.0, %v1569
        %v1571 = vpop.f32.mrf.mxu0
        %v1572 = vadd.f32 0.0, %v1571
        %1573 = vdwg.mxu0
        %1574 = vmatpush.bf16.msra.mxu0 %v1292
        %1575 = vmatpush.bf16.msra.mxu0 %v1291
        %1576 = vmatpush.bf16.msra.mxu0 %v1290
        %1577 = vmatpush.bf16.msra.mxu0 %v1289
        %1578 = vmatpush.bf16.msra.mxu0 %v1288
        %1579 = vmatpush.bf16.msra.mxu0 %v1287
        %1580 = vmatpush.bf16.msra.mxu0 %v1286
        %1581 = vmatpush.bf16.msra.mxu0 %v1285
        %1582 = vmatmul.bf16.gmra.mxu0 %v894
        %v1583 = vpop.f32.mrf.mxu0
        %v1584 = vadd.f32 %v1335, %v1583
        %v1585 = vpop.f32.mrf.mxu0
        %v1586 = vadd.f32 %v1337, %v1585
        %1587 = vmatmul.bf16.gmra.mxu0 %v897
        %v1588 = vpop.f32.mrf.mxu0
        %v1589 = vadd.f32 %v1340, %v1588
        %v1590 = vpop.f32.mrf.mxu0
        %v1591 = vadd.f32 %v1342, %v1590
        %1592 = vmatmul.bf16.gmra.mxu0 %v900
        %v1593 = vpop.f32.mrf.mxu0
        %v1594 = vadd.f32 %v1345, %v1593
        %v1595 = vpop.f32.mrf.mxu0
        %v1596 = vadd.f32 %v1347, %v1595
        %1597 = vmatmul.bf16.gmra.mxu0 %v903
        %v1598 = vpop.f32.mrf.mxu0
        %v1599 = vadd.f32 %v1350, %v1598
        %v1600 = vpop.f32.mrf.mxu0
        %v1601 = vadd.f32 %v1352, %v1600
        %1602 = vmatmul.bf16.gmra.mxu0 %v906
        %v1603 = vpop.f32.mrf.mxu0
        %v1604 = vadd.f32 %v1355, %v1603
        %v1605 = vpop.f32.mrf.mxu0
        %v1606 = vadd.f32 %v1357, %v1605
        %1607 = vmatmul.bf16.gmra.mxu0 %v909
        %v1608 = vpop.f32.mrf.mxu0
        %v1609 = vadd.f32 %v1360, %v1608
        %v1610 = vpop.f32.mrf.mxu0
        %v1611 = vadd.f32 %v1362, %v1610
        %1612 = vmatmul.bf16.gmra.mxu0 %v912
        %v1613 = vpop.f32.mrf.mxu0
        %v1614 = vadd.f32 %v1365, %v1613
        %v1615 = vpop.f32.mrf.mxu0
        %v1616 = vadd.f32 %v1367, %v1615
        %1617 = vmatmul.bf16.gmra.mxu0 %v915
        %v1618 = vpop.f32.mrf.mxu0
        %v1619 = vadd.f32 %v1370, %v1618
        %v1620 = vpop.f32.mrf.mxu0
        %v1621 = vadd.f32 %v1372, %v1620
        %1622 = vmatmul.bf16.gmra.mxu0 %v918
        %v1623 = vpop.f32.mrf.mxu0
        %v1624 = vadd.f32 %v1375, %v1623
        %v1625 = vpop.f32.mrf.mxu0
        %v1626 = vadd.f32 %v1377, %v1625
        %1627 = vmatmul.bf16.gmra.mxu0 %v921
        %v1628 = vpop.f32.mrf.mxu0
        %v1629 = vadd.f32 %v1380, %v1628
        %v1630 = vpop.f32.mrf.mxu0
        %v1631 = vadd.f32 %v1382, %v1630
        %1632 = vmatmul.bf16.gmra.mxu0 %v924
        %v1633 = vpop.f32.mrf.mxu0
        %v1634 = vadd.f32 %v1385, %v1633
        %v1635 = vpop.f32.mrf.mxu0
        %v1636 = vadd.f32 %v1387, %v1635
        %1637 = vmatmul.bf16.gmra.mxu0 %v927
        %v1638 = vpop.f32.mrf.mxu0
        %v1639 = vadd.f32 %v1390, %v1638
        %v1640 = vpop.f32.mrf.mxu0
        %v1641 = vadd.f32 %v1392, %v1640
        %1642 = vmatmul.bf16.gmra.mxu0 %v930
        %v1643 = vpop.f32.mrf.mxu0
        %v1644 = vadd.f32 %v1395, %v1643
        %v1645 = vpop.f32.mrf.mxu0
        %v1646 = vadd.f32 %v1397, %v1645
        %1647 = vmatmul.bf16.gmra.mxu0 %v933
        %v1648 = vpop.f32.mrf.mxu0
        %v1649 = vadd.f32 %v1400, %v1648
        %v1650 = vpop.f32.mrf.mxu0
        %v1651 = vadd.f32 %v1402, %v1650
        %1652 = vmatmul.bf16.gmra.mxu0 %v936
        %v1653 = vpop.f32.mrf.mxu0
        %v1654 = vadd.f32 %v1405, %v1653
        %v1655 = vpop.f32.mrf.mxu0
        %v1656 = vadd.f32 %v1407, %v1655
        %1657 = vmatmul.bf16.gmra.mxu0 %v939
        %v1658 = vpop.f32.mrf.mxu0
        %v1659 = vadd.f32 %v1410, %v1658
        %v1660 = vpop.f32.mrf.mxu0
        %v1661 = vadd.f32 %v1412, %v1660
        %1662 = vmatmul.bf16.gmra.mxu0 %v942
        %v1663 = vpop.f32.mrf.mxu0
        %v1664 = vadd.f32 %v1415, %v1663
        %v1665 = vpop.f32.mrf.mxu0
        %v1666 = vadd.f32 %v1417, %v1665
        %1667 = vmatmul.bf16.gmra.mxu0 %v945
        %v1668 = vpop.f32.mrf.mxu0
        %v1669 = vadd.f32 %v1420, %v1668
        %v1670 = vpop.f32.mrf.mxu0
        %v1671 = vadd.f32 %v1422, %v1670
        %1672 = vmatmul.bf16.gmra.mxu0 %v948
        %v1673 = vpop.f32.mrf.mxu0
        %v1674 = vadd.f32 %v1425, %v1673
        %v1675 = vpop.f32.mrf.mxu0
        %v1676 = vadd.f32 %v1427, %v1675
        %1677 = vmatmul.bf16.gmra.mxu0 %v951
        %v1678 = vpop.f32.mrf.mxu0
        %v1679 = vadd.f32 %v1430, %v1678
        %v1680 = vpop.f32.mrf.mxu0
        %v1681 = vadd.f32 %v1432, %v1680
        %1682 = vmatmul.bf16.gmra.mxu0 %v954
        %v1683 = vpop.f32.mrf.mxu0
        %v1684 = vadd.f32 %v1435, %v1683
        %v1685 = vpop.f32.mrf.mxu0
        %v1686 = vadd.f32 %v1437, %v1685
        %1687 = vmatmul.bf16.gmra.mxu0 %v957
        %v1688 = vpop.f32.mrf.mxu0
        %v1689 = vadd.f32 %v1440, %v1688
        %v1690 = vpop.f32.mrf.mxu0
        %v1691 = vadd.f32 %v1442, %v1690
        %1692 = vmatmul.bf16.gmra.mxu0 %v960
        %v1693 = vpop.f32.mrf.mxu0
        %v1694 = vadd.f32 %v1445, %v1693
        %v1695 = vpop.f32.mrf.mxu0
        %v1696 = vadd.f32 %v1447, %v1695
        %1697 = vmatmul.bf16.gmra.mxu0 %v963
        %v1698 = vpop.f32.mrf.mxu0
        %v1699 = vadd.f32 %v1450, %v1698
        %v1700 = vpop.f32.mrf.mxu0
        %v1701 = vadd.f32 %v1452, %v1700
        %1702 = vmatmul.bf16.gmra.mxu0 %v966
        %v1703 = vpop.f32.mrf.mxu0
        %v1704 = vadd.f32 %v1455, %v1703
        %v1705 = vpop.f32.mrf.mxu0
        %v1706 = vadd.f32 %v1457, %v1705
        %1707 = vmatmul.bf16.gmra.mxu0 %v969
        %v1708 = vpop.f32.mrf.mxu0
        %v1709 = vadd.f32 %v1460, %v1708
        %v1710 = vpop.f32.mrf.mxu0
        %v1711 = vadd.f32 %v1462, %v1710
        %1712 = vmatmul.bf16.gmra.mxu0 %v972
        %v1713 = vpop.f32.mrf.mxu0
        %v1714 = vadd.f32 %v1465, %v1713
        %v1715 = vpop.f32.mrf.mxu0
        %v1716 = vadd.f32 %v1467, %v1715
        %1717 = vmatmul.bf16.gmra.mxu0 %v975
        %v1718 = vpop.f32.mrf.mxu0
        %v1719 = vadd.f32 %v1470, %v1718
        %v1720 = vpop.f32.mrf.mxu0
        %v1721 = vadd.f32 %v1472, %v1720
        %1722 = vmatmul.bf16.gmra.mxu0 %v978
        %v1723 = vpop.f32.mrf.mxu0
        %v1724 = vadd.f32 %v1475, %v1723
        %v1725 = vpop.f32.mrf.mxu0
        %v1726 = vadd.f32 %v1477, %v1725
        %1727 = vmatmul.bf16.gmra.mxu0 %v981
        %v1728 = vpop.f32.mrf.mxu0
        %v1729 = vadd.f32 %v1480, %v1728
        %v1730 = vpop.f32.mrf.mxu0
        %v1731 = vadd.f32 %v1482, %v1730
        %1732 = vmatmul.bf16.gmra.mxu0 %v984
        %v1733 = vpop.f32.mrf.mxu0
        %v1734 = vadd.f32 %v1485, %v1733
        %v1735 = vpop.f32.mrf.mxu0
        %v1736 = vadd.f32 %v1487, %v1735
        %1737 = vmatmul.bf16.gmra.mxu0 %v987
        %v1738 = vpop.f32.mrf.mxu0
        %v1739 = vadd.f32 %v1490, %v1738
        %v1740 = vpop.f32.mrf.mxu0
        %v1741 = vadd.f32 %v1492, %v1740
        %1742 = vmatmul.bf16.gmra.mxu0 %v990
        %v1743 = vpop.f32.mrf.mxu0
        %v1744 = vadd.f32 %v1495, %v1743
        %v1745 = vpop.f32.mrf.mxu0
        %v1746 = vadd.f32 %v1497, %v1745
        %1747 = vmatmul.bf16.gmra.mxu0 %v993
        %v1748 = vpop.f32.mrf.mxu0
        %v1749 = vadd.f32 %v1500, %v1748
        %v1750 = vpop.f32.mrf.mxu0
        %v1751 = vadd.f32 %v1502, %v1750
        %1752 = vmatmul.bf16.gmra.mxu0 %v996
        %v1753 = vpop.f32.mrf.mxu0
        %v1754 = vadd.f32 %v1505, %v1753
        %v1755 = vpop.f32.mrf.mxu0
        %v1756 = vadd.f32 %v1507, %v1755
        %1757 = vmatmul.bf16.gmra.mxu0 %v999
        %v1758 = vpop.f32.mrf.mxu0
        %v1759 = vadd.f32 %v1510, %v1758
        %v1760 = vpop.f32.mrf.mxu0
        %v1761 = vadd.f32 %v1512, %v1760
        %1762 = vmatmul.bf16.gmra.mxu0 %v1002
        %v1763 = vpop.f32.mrf.mxu0
        %v1764 = vadd.f32 %v1515, %v1763
        %v1765 = vpop.f32.mrf.mxu0
        %v1766 = vadd.f32 %v1517, %v1765
        %1767 = vmatmul.bf16.gmra.mxu0 %v1005
        %v1768 = vpop.f32.mrf.mxu0
        %v1769 = vadd.f32 %v1520, %v1768
        %v1770 = vpop.f32.mrf.mxu0
        %v1771 = vadd.f32 %v1522, %v1770
        %1772 = vmatmul.bf16.gmra.mxu0 %v1008
        %v1773 = vpop.f32.mrf.mxu0
        %v1774 = vadd.f32 %v1525, %v1773
        %v1775 = vpop.f32.mrf.mxu0
        %v1776 = vadd.f32 %v1527, %v1775
        %1777 = vmatmul.bf16.gmra.mxu0 %v1011
        %v1778 = vpop.f32.mrf.mxu0
        %v1779 = vadd.f32 %v1530, %v1778
        %v1780 = vpop.f32.mrf.mxu0
        %v1781 = vadd.f32 %v1532, %v1780
        %1782 = vmatmul.bf16.gmra.mxu0 %v1014
        %v1783 = vpop.f32.mrf.mxu0
        %v1784 = vadd.f32 %v1535, %v1783
        %v1785 = vpop.f32.mrf.mxu0
        %v1786 = vadd.f32 %v1537, %v1785
        %1787 = vmatmul.bf16.gmra.mxu0 %v1017
        %v1788 = vpop.f32.mrf.mxu0
        %v1789 = vadd.f32 %v1540, %v1788
        %v1790 = vpop.f32.mrf.mxu0
        %v1791 = vadd.f32 %v1542, %v1790
        %1792 = vmatmul.bf16.gmra.mxu0 %v1020
        %v1793 = vpop.f32.mrf.mxu0
        %v1794 = vadd.f32 %v1545, %v1793
        %v1795 = vpop.f32.mrf.mxu0
        %v1796 = vadd.f32 %v1547, %v1795
        %1797 = vmatmul.bf16.gmra.mxu0 %v1023
        %v1798 = vpop.f32.mrf.mxu0
        %v1799 = vadd.f32 %v1550, %v1798
        %v1800 = vpop.f32.mrf.mxu0
        %v1801 = vadd.f32 %v1552, %v1800
        %1802 = vmatmul.bf16.gmra.mxu0 %v1026
        %v1803 = vpop.f32.mrf.mxu0
        %v1804 = vadd.f32 %v1555, %v1803
        %v1805 = vpop.f32.mrf.mxu0
        %v1806 = vadd.f32 %v1557, %v1805
        %1807 = vmatmul.bf16.gmra.mxu0 %v1029
        %v1808 = vpop.f32.mrf.mxu0
        %v1809 = vadd.f32 %v1560, %v1808
        %v1810 = vpop.f32.mrf.mxu0
        %v1811 = vadd.f32 %v1562, %v1810
        %1812 = vmatmul.bf16.gmra.mxu0 %v1032
        %v1813 = vpop.f32.mrf.mxu0
        %v1814 = vadd.f32 %v1565, %v1813
        %v1815 = vpop.f32.mrf.mxu0
        %v1816 = vadd.f32 %v1567, %v1815
        %1817 = vmatmul.bf16.gmra.mxu0 %v1035
        %v1818 = vpop.f32.mrf.mxu0
        %v1819 = vadd.f32 %v1570, %v1818
        %v1820 = vpop.f32.mrf.mxu0
        %v1821 = vadd.f32 %v1572, %v1820
        %1822 = vdwg.mxu0
        %1823 = vmatpush.bf16.msra.mxu0 %v1300
        %1824 = vmatpush.bf16.msra.mxu0 %v1299
        %1825 = vmatpush.bf16.msra.mxu0 %v1298
        %1826 = vmatpush.bf16.msra.mxu0 %v1297
        %1827 = vmatpush.bf16.msra.mxu0 %v1296
        %1828 = vmatpush.bf16.msra.mxu0 %v1295
        %1829 = vmatpush.bf16.msra.mxu0 %v1294
        %1830 = vmatpush.bf16.msra.mxu0 %v1293
        %1831 = vmatmul.bf16.gmra.mxu0 %v895
        %v1832 = vpop.f32.mrf.mxu0
        %v1833 = vadd.f32 %v1584, %v1832
        %v1834 = vpop.f32.mrf.mxu0
        %v1835 = vadd.f32 %v1586, %v1834
        %1836 = vmatmul.bf16.gmra.mxu0 %v898
        %v1837 = vpop.f32.mrf.mxu0
        %v1838 = vadd.f32 %v1589, %v1837
        %v1839 = vpop.f32.mrf.mxu0
        %v1840 = vadd.f32 %v1591, %v1839
        %1841 = vmatmul.bf16.gmra.mxu0 %v901
        %v1842 = vpop.f32.mrf.mxu0
        %v1843 = vadd.f32 %v1594, %v1842
        %v1844 = vpop.f32.mrf.mxu0
        %v1845 = vadd.f32 %v1596, %v1844
        %1846 = vmatmul.bf16.gmra.mxu0 %v904
        %v1847 = vpop.f32.mrf.mxu0
        %v1848 = vadd.f32 %v1599, %v1847
        %v1849 = vpop.f32.mrf.mxu0
        %v1850 = vadd.f32 %v1601, %v1849
        %1851 = vmatmul.bf16.gmra.mxu0 %v907
        %v1852 = vpop.f32.mrf.mxu0
        %v1853 = vadd.f32 %v1604, %v1852
        %v1854 = vpop.f32.mrf.mxu0
        %v1855 = vadd.f32 %v1606, %v1854
        %1856 = vmatmul.bf16.gmra.mxu0 %v910
        %v1857 = vpop.f32.mrf.mxu0
        %v1858 = vadd.f32 %v1609, %v1857
        %v1859 = vpop.f32.mrf.mxu0
        %v1860 = vadd.f32 %v1611, %v1859
        %1861 = vmatmul.bf16.gmra.mxu0 %v913
        %v1862 = vpop.f32.mrf.mxu0
        %v1863 = vadd.f32 %v1614, %v1862
        %v1864 = vpop.f32.mrf.mxu0
        %v1865 = vadd.f32 %v1616, %v1864
        %1866 = vmatmul.bf16.gmra.mxu0 %v916
        %v1867 = vpop.f32.mrf.mxu0
        %v1868 = vadd.f32 %v1619, %v1867
        %v1869 = vpop.f32.mrf.mxu0
        %v1870 = vadd.f32 %v1621, %v1869
        %1871 = vmatmul.bf16.gmra.mxu0 %v919
        %v1872 = vpop.f32.mrf.mxu0
        %v1873 = vadd.f32 %v1624, %v1872
        %v1874 = vpop.f32.mrf.mxu0
        %v1875 = vadd.f32 %v1626, %v1874
        %1876 = vmatmul.bf16.gmra.mxu0 %v922
        %v1877 = vpop.f32.mrf.mxu0
        %v1878 = vadd.f32 %v1629, %v1877
        %v1879 = vpop.f32.mrf.mxu0
        %v1880 = vadd.f32 %v1631, %v1879
        %1881 = vmatmul.bf16.gmra.mxu0 %v925
        %v1882 = vpop.f32.mrf.mxu0
        %v1883 = vadd.f32 %v1634, %v1882
        %v1884 = vpop.f32.mrf.mxu0
        %v1885 = vadd.f32 %v1636, %v1884
        %1886 = vmatmul.bf16.gmra.mxu0 %v928
        %v1887 = vpop.f32.mrf.mxu0
        %v1888 = vadd.f32 %v1639, %v1887
        %v1889 = vpop.f32.mrf.mxu0
        %v1890 = vadd.f32 %v1641, %v1889
        %1891 = vmatmul.bf16.gmra.mxu0 %v931
        %v1892 = vpop.f32.mrf.mxu0
        %v1893 = vadd.f32 %v1644, %v1892
        %v1894 = vpop.f32.mrf.mxu0
        %v1895 = vadd.f32 %v1646, %v1894
        %1896 = vmatmul.bf16.gmra.mxu0 %v934
        %v1897 = vpop.f32.mrf.mxu0
        %v1898 = vadd.f32 %v1649, %v1897
        %v1899 = vpop.f32.mrf.mxu0
        %v1900 = vadd.f32 %v1651, %v1899
        %1901 = vmatmul.bf16.gmra.mxu0 %v937
        %v1902 = vpop.f32.mrf.mxu0
        %v1903 = vadd.f32 %v1654, %v1902
        %v1904 = vpop.f32.mrf.mxu0
        %v1905 = vadd.f32 %v1656, %v1904
        %1906 = vmatmul.bf16.gmra.mxu0 %v940
        %v1907 = vpop.f32.mrf.mxu0
        %v1908 = vadd.f32 %v1659, %v1907
        %v1909 = vpop.f32.mrf.mxu0
        %v1910 = vadd.f32 %v1661, %v1909
        %1911 = vmatmul.bf16.gmra.mxu0 %v943
        %v1912 = vpop.f32.mrf.mxu0
        %v1913 = vadd.f32 %v1664, %v1912
        %v1914 = vpop.f32.mrf.mxu0
        %v1915 = vadd.f32 %v1666, %v1914
        %1916 = vmatmul.bf16.gmra.mxu0 %v946
        %v1917 = vpop.f32.mrf.mxu0
        %v1918 = vadd.f32 %v1669, %v1917
        %v1919 = vpop.f32.mrf.mxu0
        %v1920 = vadd.f32 %v1671, %v1919
        %1921 = vmatmul.bf16.gmra.mxu0 %v949
        %v1922 = vpop.f32.mrf.mxu0
        %v1923 = vadd.f32 %v1674, %v1922
        %v1924 = vpop.f32.mrf.mxu0
        %v1925 = vadd.f32 %v1676, %v1924
        %1926 = vmatmul.bf16.gmra.mxu0 %v952
        %v1927 = vpop.f32.mrf.mxu0
        %v1928 = vadd.f32 %v1679, %v1927
        %v1929 = vpop.f32.mrf.mxu0
        %v1930 = vadd.f32 %v1681, %v1929
        %1931 = vmatmul.bf16.gmra.mxu0 %v955
        %v1932 = vpop.f32.mrf.mxu0
        %v1933 = vadd.f32 %v1684, %v1932
        %v1934 = vpop.f32.mrf.mxu0
        %v1935 = vadd.f32 %v1686, %v1934
        %1936 = vmatmul.bf16.gmra.mxu0 %v958
        %v1937 = vpop.f32.mrf.mxu0
        %v1938 = vadd.f32 %v1689, %v1937
        %v1939 = vpop.f32.mrf.mxu0
        %v1940 = vadd.f32 %v1691, %v1939
        %1941 = vmatmul.bf16.gmra.mxu0 %v961
        %v1942 = vpop.f32.mrf.mxu0
        %v1943 = vadd.f32 %v1694, %v1942
        %v1944 = vpop.f32.mrf.mxu0
        %v1945 = vadd.f32 %v1696, %v1944
        %1946 = vmatmul.bf16.gmra.mxu0 %v964
        %v1947 = vpop.f32.mrf.mxu0
        %v1948 = vadd.f32 %v1699, %v1947
        %v1949 = vpop.f32.mrf.mxu0
        %v1950 = vadd.f32 %v1701, %v1949
        %1951 = vmatmul.bf16.gmra.mxu0 %v967
        %v1952 = vpop.f32.mrf.mxu0
        %v1953 = vadd.f32 %v1704, %v1952
        %v1954 = vpop.f32.mrf.mxu0
        %v1955 = vadd.f32 %v1706, %v1954
        %1956 = vmatmul.bf16.gmra.mxu0 %v970
        %v1957 = vpop.f32.mrf.mxu0
        %v1958 = vadd.f32 %v1709, %v1957
        %v1959 = vpop.f32.mrf.mxu0
        %v1960 = vadd.f32 %v1711, %v1959
        %1961 = vmatmul.bf16.gmra.mxu0 %v973
        %v1962 = vpop.f32.mrf.mxu0
        %v1963 = vadd.f32 %v1714, %v1962
        %v1964 = vpop.f32.mrf.mxu0
        %v1965 = vadd.f32 %v1716, %v1964
        %1966 = vmatmul.bf16.gmra.mxu0 %v976
        %v1967 = vpop.f32.mrf.mxu0
        %v1968 = vadd.f32 %v1719, %v1967
        %v1969 = vpop.f32.mrf.mxu0
        %v1970 = vadd.f32 %v1721, %v1969
        %1971 = vmatmul.bf16.gmra.mxu0 %v979
        %v1972 = vpop.f32.mrf.mxu0
        %v1973 = vadd.f32 %v1724, %v1972
        %v1974 = vpop.f32.mrf.mxu0
        %v1975 = vadd.f32 %v1726, %v1974
        %1976 = vmatmul.bf16.gmra.mxu0 %v982
        %v1977 = vpop.f32.mrf.mxu0
        %v1978 = vadd.f32 %v1729, %v1977
        %v1979 = vpop.f32.mrf.mxu0
        %v1980 = vadd.f32 %v1731, %v1979
        %1981 = vmatmul.bf16.gmra.mxu0 %v985
        %v1982 = vpop.f32.mrf.mxu0
        %v1983 = vadd.f32 %v1734, %v1982
        %v1984 = vpop.f32.mrf.mxu0
        %v1985 = vadd.f32 %v1736, %v1984
        %1986 = vmatmul.bf16.gmra.mxu0 %v988
        %v1987 = vpop.f32.mrf.mxu0
        %v1988 = vadd.f32 %v1739, %v1987
        %v1989 = vpop.f32.mrf.mxu0
        %v1990 = vadd.f32 %v1741, %v1989
        %1991 = vmatmul.bf16.gmra.mxu0 %v991
        %v1992 = vpop.f32.mrf.mxu0
        %v1993 = vadd.f32 %v1744, %v1992
        %v1994 = vpop.f32.mrf.mxu0
        %v1995 = vadd.f32 %v1746, %v1994
        %1996 = vmatmul.bf16.gmra.mxu0 %v994
        %v1997 = vpop.f32.mrf.mxu0
        %v1998 = vadd.f32 %v1749, %v1997
        %v1999 = vpop.f32.mrf.mxu0
        %v2000 = vadd.f32 %v1751, %v1999
        %2001 = vmatmul.bf16.gmra.mxu0 %v997
        %v2002 = vpop.f32.mrf.mxu0
        %v2003 = vadd.f32 %v1754, %v2002
        %v2004 = vpop.f32.mrf.mxu0
        %v2005 = vadd.f32 %v1756, %v2004
        %2006 = vmatmul.bf16.gmra.mxu0 %v1000
        %v2007 = vpop.f32.mrf.mxu0
        %v2008 = vadd.f32 %v1759, %v2007
        %v2009 = vpop.f32.mrf.mxu0
        %v2010 = vadd.f32 %v1761, %v2009
        %2011 = vmatmul.bf16.gmra.mxu0 %v1003
        %v2012 = vpop.f32.mrf.mxu0
        %v2013 = vadd.f32 %v1764, %v2012
        %v2014 = vpop.f32.mrf.mxu0
        %v2015 = vadd.f32 %v1766, %v2014
        %2016 = vmatmul.bf16.gmra.mxu0 %v1006
        %v2017 = vpop.f32.mrf.mxu0
        %v2018 = vadd.f32 %v1769, %v2017
        %v2019 = vpop.f32.mrf.mxu0
        %v2020 = vadd.f32 %v1771, %v2019
        %2021 = vmatmul.bf16.gmra.mxu0 %v1009
        %v2022 = vpop.f32.mrf.mxu0
        %v2023 = vadd.f32 %v1774, %v2022
        %v2024 = vpop.f32.mrf.mxu0
        %v2025 = vadd.f32 %v1776, %v2024
        %2026 = vmatmul.bf16.gmra.mxu0 %v1012
        %v2027 = vpop.f32.mrf.mxu0
        %v2028 = vadd.f32 %v1779, %v2027
        %v2029 = vpop.f32.mrf.mxu0
        %v2030 = vadd.f32 %v1781, %v2029
        %2031 = vmatmul.bf16.gmra.mxu0 %v1015
        %v2032 = vpop.f32.mrf.mxu0
        %v2033 = vadd.f32 %v1784, %v2032
        %v2034 = vpop.f32.mrf.mxu0
        %v2035 = vadd.f32 %v1786, %v2034
        %2036 = vmatmul.bf16.gmra.mxu0 %v1018
        %v2037 = vpop.f32.mrf.mxu0
        %v2038 = vadd.f32 %v1789, %v2037
        %v2039 = vpop.f32.mrf.mxu0
        %v2040 = vadd.f32 %v1791, %v2039
        %2041 = vmatmul.bf16.gmra.mxu0 %v1021
        %v2042 = vpop.f32.mrf.mxu0
        %v2043 = vadd.f32 %v1794, %v2042
        %v2044 = vpop.f32.mrf.mxu0
        %v2045 = vadd.f32 %v1796, %v2044
        %2046 = vmatmul.bf16.gmra.mxu0 %v1024
        %v2047 = vpop.f32.mrf.mxu0
        %v2048 = vadd.f32 %v1799, %v2047
        %v2049 = vpop.f32.mrf.mxu0
        %v2050 = vadd.f32 %v1801, %v2049
        %2051 = vmatmul.bf16.gmra.mxu0 %v1027
        %v2052 = vpop.f32.mrf.mxu0
        %v2053 = vadd.f32 %v1804, %v2052
        %v2054 = vpop.f32.mrf.mxu0
        %v2055 = vadd.f32 %v1806, %v2054
        %2056 = vmatmul.bf16.gmra.mxu0 %v1030
        %v2057 = vpop.f32.mrf.mxu0
        %v2058 = vadd.f32 %v1809, %v2057
        %v2059 = vpop.f32.mrf.mxu0
        %v2060 = vadd.f32 %v1811, %v2059
        %2061 = vmatmul.bf16.gmra.mxu0 %v1033
        %v2062 = vpop.f32.mrf.mxu0
        %v2063 = vadd.f32 %v1814, %v2062
        %v2064 = vpop.f32.mrf.mxu0
        %v2065 = vadd.f32 %v1816, %v2064
        %2066 = vmatmul.bf16.gmra.mxu0 %v1036
        %v2067 = vpop.f32.mrf.mxu0
        %v2068 = vadd.f32 %v1819, %v2067
        %v2069 = vpop.f32.mrf.mxu0
        %v2070 = vadd.f32 %v1821, %v2069
        %2071 = vdwg.mxu0
        %vm2072 = vcmask 31744
        %2073 = vst.msk [vmem:[%s150] sm:$0xff] %vm2072, %v1833
        %2074 = vst.msk [vmem:[%s150 + $0x8] sm:$0xff] %vm2072, %v1835
        %2075 = vst.msk [vmem:[%s150 + $0x10] sm:$0xff] %vm2072, %v1838
        %2076 = vst.msk [vmem:[%s150 + $0x18] sm:$0xff] %vm2072, %v1840
        %2077 = vst.msk [vmem:[%s150 + $0x20] sm:$0xff] %vm2072, %v1843
        %2078 = vst.msk [vmem:[%s150 + $0x28] sm:$0xff] %vm2072, %v1845
        %2079 = vst.msk [vmem:[%s150 + $0x30] sm:$0xff] %vm2072, %v1848
        %2080 = vst.msk [vmem:[%s150 + $0x38] sm:$0xff] %vm2072, %v1850
        %2081 = vst.msk [vmem:[%s150 + $0x40] sm:$0xff] %vm2072, %v1853
        %2082 = vst.msk [vmem:[%s150 + $0x48] sm:$0xff] %vm2072, %v1855
        %2083 = vst.msk [vmem:[%s150 + $0x50] sm:$0xff] %vm2072, %v1858
        %2084 = vst.msk [vmem:[%s150 + $0x58] sm:$0xff] %vm2072, %v1860
        %2085 = vst.msk [vmem:[%s150 + $0x60] sm:$0xff] %vm2072, %v1863
        %2086 = vst.msk [vmem:[%s150 + $0x68] sm:$0xff] %vm2072, %v1865
        %2087 = vst.msk [vmem:[%s150 + $0x70] sm:$0xff] %vm2072, %v1868
        %2088 = vst.msk [vmem:[%s150 + $0x78] sm:$0xff] %vm2072, %v1870
        %2089 = vst.msk [vmem:[%s150 + $0x80] sm:$0xff] %vm2072, %v1873
        %2090 = vst.msk [vmem:[%s150 + $0x88] sm:$0xff] %vm2072, %v1875
        %2091 = vst.msk [vmem:[%s150 + $0x90] sm:$0xff] %vm2072, %v1878
        %2092 = vst.msk [vmem:[%s150 + $0x98] sm:$0xff] %vm2072, %v1880
        %2093 = vst.msk [vmem:[%s150 + $0xa0] sm:$0xff] %vm2072, %v1883
        %2094 = vst.msk [vmem:[%s150 + $0xa8] sm:$0xff] %vm2072, %v1885
        %2095 = vst.msk [vmem:[%s150 + $0xb0] sm:$0xff] %vm2072, %v1888
        %2096 = vst.msk [vmem:[%s150 + $0xb8] sm:$0xff] %vm2072, %v1890
        %2097 = vst.msk [vmem:[%s150 + $0xc0] sm:$0xff] %vm2072, %v1893
        %2098 = vst.msk [vmem:[%s150 + $0xc8] sm:$0xff] %vm2072, %v1895
        %2099 = vst.msk [vmem:[%s150 + $0xd0] sm:$0xff] %vm2072, %v1898
        %2100 = vst.msk [vmem:[%s150 + $0xd8] sm:$0xff] %vm2072, %v1900
        %2101 = vst.msk [vmem:[%s150 + $0xe0] sm:$0xff] %vm2072, %v1903
        %2102 = vst.msk [vmem:[%s150 + $0xe8] sm:$0xff] %vm2072, %v1905
        %2103 = vst.msk [vmem:[%s150 + $0xf0] sm:$0xff] %vm2072, %v1908
        %2104 = vst.msk [vmem:[%s150 + $0xf8] sm:$0xff] %vm2072, %v1910
        %2105 = vst.msk [vmem:[%s150 + $0x100] sm:$0xff] %vm2072, %v1913
        %2106 = vst.msk [vmem:[%s150 + $0x108] sm:$0xff] %vm2072, %v1915
        %2107 = vst.msk [vmem:[%s150 + $0x110] sm:$0xff] %vm2072, %v1918
        %2108 = vst.msk [vmem:[%s150 + $0x118] sm:$0xff] %vm2072, %v1920
        %2109 = vst.msk [vmem:[%s150 + $0x120] sm:$0xff] %vm2072, %v1923
        %2110 = vst.msk [vmem:[%s150 + $0x128] sm:$0xff] %vm2072, %v1925
        %2111 = vst.msk [vmem:[%s150 + $0x130] sm:$0xff] %vm2072, %v1928
        %2112 = vst.msk [vmem:[%s150 + $0x138] sm:$0xff] %vm2072, %v1930
        %2113 = vst.msk [vmem:[%s150 + $0x140] sm:$0xff] %vm2072, %v1933
        %2114 = vst.msk [vmem:[%s150 + $0x148] sm:$0xff] %vm2072, %v1935
        %2115 = vst.msk [vmem:[%s150 + $0x150] sm:$0xff] %vm2072, %v1938
        %2116 = vst.msk [vmem:[%s150 + $0x158] sm:$0xff] %vm2072, %v1940
        %2117 = vst.msk [vmem:[%s150 + $0x160] sm:$0xff] %vm2072, %v1943
        %2118 = vst.msk [vmem:[%s150 + $0x168] sm:$0xff] %vm2072, %v1945
        %2119 = vst.msk [vmem:[%s150 + $0x170] sm:$0xff] %vm2072, %v1948
        %2120 = vst.msk [vmem:[%s150 + $0x178] sm:$0xff] %vm2072, %v1950
        %2121 = vst.msk [vmem:[%s150 + $0x180] sm:$0xff] %vm2072, %v1953
        %2122 = vst.msk [vmem:[%s150 + $0x188] sm:$0xff] %vm2072, %v1955
        %2123 = vst.msk [vmem:[%s150 + $0x190] sm:$0xff] %vm2072, %v1958
        %2124 = vst.msk [vmem:[%s150 + $0x198] sm:$0xff] %vm2072, %v1960
        %2125 = vst.msk [vmem:[%s150 + $0x1a0] sm:$0xff] %vm2072, %v1963
        %2126 = vst.msk [vmem:[%s150 + $0x1a8] sm:$0xff] %vm2072, %v1965
        %2127 = vst.msk [vmem:[%s150 + $0x1b0] sm:$0xff] %vm2072, %v1968
        %2128 = vst.msk [vmem:[%s150 + $0x1b8] sm:$0xff] %vm2072, %v1970
        %2129 = vst.msk [vmem:[%s150 + $0x1c0] sm:$0xff] %vm2072, %v1973
        %2130 = vst.msk [vmem:[%s150 + $0x1c8] sm:$0xff] %vm2072, %v1975
        %2131 = vst.msk [vmem:[%s150 + $0x1d0] sm:$0xff] %vm2072, %v1978
        %2132 = vst.msk [vmem:[%s150 + $0x1d8] sm:$0xff] %vm2072, %v1980
        %2133 = vst.msk [vmem:[%s150 + $0x1e0] sm:$0xff] %vm2072, %v1983
        %2134 = vst.msk [vmem:[%s150 + $0x1e8] sm:$0xff] %vm2072, %v1985
        %2135 = vst.msk [vmem:[%s150 + $0x1f0] sm:$0xff] %vm2072, %v1988
        %2136 = vst.msk [vmem:[%s150 + $0x1f8] sm:$0xff] %vm2072, %v1990
        %2137 = vst.msk [vmem:[%s150 + $0x200] sm:$0xff] %vm2072, %v1993
        %2138 = vst.msk [vmem:[%s150 + $0x208] sm:$0xff] %vm2072, %v1995
        %2139 = vst.msk [vmem:[%s150 + $0x210] sm:$0xff] %vm2072, %v1998
        %2140 = vst.msk [vmem:[%s150 + $0x218] sm:$0xff] %vm2072, %v2000
        %2141 = vst.msk [vmem:[%s150 + $0x220] sm:$0xff] %vm2072, %v2003
        %2142 = vst.msk [vmem:[%s150 + $0x228] sm:$0xff] %vm2072, %v2005
        %2143 = vst.msk [vmem:[%s150 + $0x230] sm:$0xff] %vm2072, %v2008
        %2144 = vst.msk [vmem:[%s150 + $0x238] sm:$0xff] %vm2072, %v2010
        %2145 = vst.msk [vmem:[%s150 + $0x240] sm:$0xff] %vm2072, %v2013
        %2146 = vst.msk [vmem:[%s150 + $0x248] sm:$0xff] %vm2072, %v2015
        %2147 = vst.msk [vmem:[%s150 + $0x250] sm:$0xff] %vm2072, %v2018
        %2148 = vst.msk [vmem:[%s150 + $0x258] sm:$0xff] %vm2072, %v2020
        %2149 = vst.msk [vmem:[%s150 + $0x260] sm:$0xff] %vm2072, %v2023
        %2150 = vst.msk [vmem:[%s150 + $0x268] sm:$0xff] %vm2072, %v2025
        %2151 = vst.msk [vmem:[%s150 + $0x270] sm:$0xff] %vm2072, %v2028
        %2152 = vst.msk [vmem:[%s150 + $0x278] sm:$0xff] %vm2072, %v2030
        %2153 = vst.msk [vmem:[%s150 + $0x280] sm:$0xff] %vm2072, %v2033
        %2154 = vst.msk [vmem:[%s150 + $0x288] sm:$0xff] %vm2072, %v2035
        %2155 = vst.msk [vmem:[%s150 + $0x290] sm:$0xff] %vm2072, %v2038
        %2156 = vst.msk [vmem:[%s150 + $0x298] sm:$0xff] %vm2072, %v2040
        %2157 = vst.msk [vmem:[%s150 + $0x2a0] sm:$0xff] %vm2072, %v2043
        %2158 = vst.msk [vmem:[%s150 + $0x2a8] sm:$0xff] %vm2072, %v2045
        %2159 = vst.msk [vmem:[%s150 + $0x2b0] sm:$0xff] %vm2072, %v2048
        %2160 = vst.msk [vmem:[%s150 + $0x2b8] sm:$0xff] %vm2072, %v2050
        %2161 = vst.msk [vmem:[%s150 + $0x2c0] sm:$0xff] %vm2072, %v2053
        %2162 = vst.msk [vmem:[%s150 + $0x2c8] sm:$0xff] %vm2072, %v2055
        %2163 = vst.msk [vmem:[%s150 + $0x2d0] sm:$0xff] %vm2072, %v2058
        %2164 = vst.msk [vmem:[%s150 + $0x2d8] sm:$0xff] %vm2072, %v2060
        %2165 = vst.msk [vmem:[%s150 + $0x2e0] sm:$0xff] %vm2072, %v2063
        %2166 = vst.msk [vmem:[%s150 + $0x2e8] sm:$0xff] %vm2072, %v2065
        %2167 = vst.msk [vmem:[%s150 + $0x2f0] sm:$0xff] %vm2072, %v2068
        %2168 = vst.msk [vmem:[%s150 + $0x2f8] sm:$0xff] %vm2072, %v2070
        %s2169 = sand.u32 %s68, 1
        %s2170 = sand.u32 %s68, 1
        %s2171 = smul.addr %s2170, 768
        %s2172 = scalar_lea.vmem [#allocation2], %s2171
        // Predicated region
        $region29: #{forward.4} parent=27 // pred_check
          %p2173 = pneg %p78
        $region30: #{forward.4} parent=27 // pred_check_branch
          %2175 = sbr.rel (%p2173) target = $region32
        $region31: #{forward.4} parent=27 // pred_region
          %s2176 = smul.u32 96, %s13
          %s2177 = ssub.s32 182, %s2176
          %p2178 = scmp.lt.s32.totalorder %s2177, 96
          %s2179 = scalar_select %p2178, %s2177, 96
          %s2180 = smul.u32 8, %s2179
          %p2181 = scmp.ne.s32.totalorder 0, %s2180
          %s2182 = smul.addr %s2176, 8
          %s2183 = scalar_lea.vmem %s2, %s2182
          // Predicated region
          $region33: #{forward.4} parent=31 // pred_check
            %p2184 = pneg %p2181
          $region34: #{forward.4} parent=31 // pred_check_branch
            %2186 = sbr.rel (%p2184) target = $region36
          $region35: #{forward.4} parent=31 // pred_region
            // Predicated region
            $region37: #{forward.4} parent=35 // pred_check
              _
            $region38: #{forward.4} parent=35 // pred_check_branch
              %2188 = sbr.rel (0) target = $region40
            $region39: #{forward.4} parent=35 // pred_region
              // Predicated region
              $region59: #{forward.4} parent=39 // pred_check
                _
              $region60: #{forward.4} parent=39 // pred_check_branch
                %2300 = sbr.rel (0) target = $region62
              $region61: #{forward.4} parent=39 // pred_region
                %s2301 = sshrl.u32 %s2179, 5
                // While loop
                $region63: #{forward.4} parent=61 // loop_pre_header
                  _
                $region64: #{forward.4} parent=61 // loop_header
                  %s2303 = sphi 0, %s2305
                  %p2304 = scmp.ge.s32.totalorder %s2303, %s2301
                  %s2308 = sphi 0, %s2377
                  %s2309 = sphi %s2172, %s2380
                  %s2310 = sphi %s2183, %s2381
                $region65: #{forward.4} parent=61 // loop_header_branch
                  %2307 = sbr.rel (%p2304) target = $region69
                $region66: #{forward.4} parent=61 // loop_body
                  %v2311 = vld [vmem:[%s2309] sm:$0xff]
                  %2312 = vst [vmem:[%s2310] sm:$0xff] %v2311
                  %v2313 = vld [vmem:[%s2309 + $0x8] sm:$0xff]
                  %2314 = vst [vmem:[%s2310 + $0x8] sm:$0xff] %v2313
                  %v2315 = vld [vmem:[%s2309 + $0x10] sm:$0xff]
                  %2316 = vst [vmem:[%s2310 + $0x10] sm:$0xff] %v2315
                  %v2317 = vld [vmem:[%s2309 + $0x18] sm:$0xff]
                  %2318 = vst [vmem:[%s2310 + $0x18] sm:$0xff] %v2317
                  %v2319 = vld [vmem:[%s2309 + $0x20] sm:$0xff]
                  %2320 = vst [vmem:[%s2310 + $0x20] sm:$0xff] %v2319
                  %v2321 = vld [vmem:[%s2309 + $0x28] sm:$0xff]
                  %2322 = vst [vmem:[%s2310 + $0x28] sm:$0xff] %v2321
                  %v2323 = vld [vmem:[%s2309 + $0x30] sm:$0xff]
                  %2324 = vst [vmem:[%s2310 + $0x30] sm:$0xff] %v2323
                  %v2325 = vld [vmem:[%s2309 + $0x38] sm:$0xff]
                  %2326 = vst [vmem:[%s2310 + $0x38] sm:$0xff] %v2325
                  %v2327 = vld [vmem:[%s2309 + $0x40] sm:$0xff]
                  %2328 = vst [vmem:[%s2310 + $0x40] sm:$0xff] %v2327
                  %v2329 = vld [vmem:[%s2309 + $0x48] sm:$0xff]
                  %2330 = vst [vmem:[%s2310 + $0x48] sm:$0xff] %v2329
                  %v2331 = vld [vmem:[%s2309 + $0x50] sm:$0xff]
                  %2332 = vst [vmem:[%s2310 + $0x50] sm:$0xff] %v2331
                  %v2333 = vld [vmem:[%s2309 + $0x58] sm:$0xff]
                  %2334 = vst [vmem:[%s2310 + $0x58] sm:$0xff] %v2333
                  %v2335 = vld [vmem:[%s2309 + $0x60] sm:$0xff]
                  %2336 = vst [vmem:[%s2310 + $0x60] sm:$0xff] %v2335
                  %v2337 = vld [vmem:[%s2309 + $0x68] sm:$0xff]
                  %2338 = vst [vmem:[%s2310 + $0x68] sm:$0xff] %v2337
                  %v2339 = vld [vmem:[%s2309 + $0x70] sm:$0xff]
                  %2340 = vst [vmem:[%s2310 + $0x70] sm:$0xff] %v2339
                  %v2341 = vld [vmem:[%s2309 + $0x78] sm:$0xff]
                  %2342 = vst [vmem:[%s2310 + $0x78] sm:$0xff] %v2341
                  %v2343 = vld [vmem:[%s2309 + $0x80] sm:$0xff]
                  %2344 = vst [vmem:[%s2310 + $0x80] sm:$0xff] %v2343
                  %v2345 = vld [vmem:[%s2309 + $0x88] sm:$0xff]
                  %2346 = vst [vmem:[%s2310 + $0x88] sm:$0xff] %v2345
                  %v2347 = vld [vmem:[%s2309 + $0x90] sm:$0xff]
                  %2348 = vst [vmem:[%s2310 + $0x90] sm:$0xff] %v2347
                  %v2349 = vld [vmem:[%s2309 + $0x98] sm:$0xff]
                  %2350 = vst [vmem:[%s2310 + $0x98] sm:$0xff] %v2349
                  %v2351 = vld [vmem:[%s2309 + $0xa0] sm:$0xff]
                  %2352 = vst [vmem:[%s2310 + $0xa0] sm:$0xff] %v2351
                  %v2353 = vld [vmem:[%s2309 + $0xa8] sm:$0xff]
                  %2354 = vst [vmem:[%s2310 + $0xa8] sm:$0xff] %v2353
                  %v2355 = vld [vmem:[%s2309 + $0xb0] sm:$0xff]
                  %2356 = vst [vmem:[%s2310 + $0xb0] sm:$0xff] %v2355
                  %v2357 = vld [vmem:[%s2309 + $0xb8] sm:$0xff]
                  %2358 = vst [vmem:[%s2310 + $0xb8] sm:$0xff] %v2357
                  %v2359 = vld [vmem:[%s2309 + $0xc0] sm:$0xff]
                  %2360 = vst [vmem:[%s2310 + $0xc0] sm:$0xff] %v2359
                  %v2361 = vld [vmem:[%s2309 + $0xc8] sm:$0xff]
                  %2362 = vst [vmem:[%s2310 + $0xc8] sm:$0xff] %v2361
                  %v2363 = vld [vmem:[%s2309 + $0xd0] sm:$0xff]
                  %2364 = vst [vmem:[%s2310 + $0xd0] sm:$0xff] %v2363
                  %v2365 = vld [vmem:[%s2309 + $0xd8] sm:$0xff]
                  %2366 = vst [vmem:[%s2310 + $0xd8] sm:$0xff] %v2365
                  %v2367 = vld [vmem:[%s2309 + $0xe0] sm:$0xff]
                  %2368 = vst [vmem:[%s2310 + $0xe0] sm:$0xff] %v2367
                  %v2369 = vld [vmem:[%s2309 + $0xe8] sm:$0xff]
                  %2370 = vst [vmem:[%s2310 + $0xe8] sm:$0xff] %v2369
                  %v2371 = vld [vmem:[%s2309 + $0xf0] sm:$0xff]
                  %2372 = vst [vmem:[%s2310 + $0xf0] sm:$0xff] %v2371
                  %v2373 = vld [vmem:[%s2309 + $0xf8] sm:$0xff]
                  %2374 = vst [vmem:[%s2310 + $0xf8] sm:$0xff] %v2373
                  %s2375 = sadd.s32 1, %s2308
                  %p2376 = scmp.ge.s32.totalorder %s2375, %s2301
                  %s2377 = scalar_select %p2376, 0, %s2375
                  %s2378 = smul.u32 %s2377, 256
                  %s2379 = smul.u32 %s2377, 256
                  %s2380 = scalar_lea.vmem %s2172, %s2378 [#allocation2]
                  %s2381 = scalar_lea.vmem %s2183, %s2379
                $region67: #{forward.4} parent=61 // loop_footer
                  %s2305 = sadd.s32 %s2303, 1
                $region68: #{forward.4} parent=61 // loop_footer_branch
                  %2302 = sbr.rel target = $region64
                $region69: #{forward.4} parent=61 // loop_exit
                  _
                %s2382 = sshrl.u32 %s2179, 5
                %s2383 = sand.u32 %s2179, 31
                %s2384 = smul.u32 %s2382, 32
                %s2385 = smul.u32 8, %s2384
                %s2386 = scalar_lea.vmem %s2172, %s2385 [#allocation2]
                %s2387 = smul.u32 8, %s2384
                %s2388 = scalar_lea.vmem %s2183, %s2387
                // While loop
                $region70: #{forward.4} parent=61 // loop_pre_header
                  _
                $region71: #{forward.4} parent=61 // loop_header
                  %s2390 = sphi 0, %s2392
                  %p2391 = scmp.ge.s32.totalorder %s2390, %s2383
                  %s2395 = sphi 0, %s2402
                  %s2396 = sphi %s2386, %s2405
                  %s2397 = sphi %s2388, %s2406
                $region72: #{forward.4} parent=61 // loop_header_branch
                  %2394 = sbr.rel (%p2391) target = $region76
                $region73: #{forward.4} parent=61 // loop_body
                  %v2398 = vld [vmem:[%s2396] sm:$0xff]
                  %2399 = vst [vmem:[%s2397] sm:$0xff] %v2398
                  %s2400 = sadd.s32 1, %s2395
                  %p2401 = scmp.ge.s32.totalorder %s2400, %s2383
                  %s2402 = scalar_select %p2401, 0, %s2400
                  %s2403 = smul.u32 %s2402, 8
                  %s2404 = smul.u32 %s2402, 8
                  %s2405 = scalar_lea.vmem %s2386, %s2403 [#allocation2]
                  %s2406 = scalar_lea.vmem %s2388, %s2404
                $region74: #{forward.4} parent=61 // loop_footer
                  %s2392 = sadd.s32 %s2390, 1
                $region75: #{forward.4} parent=61 // loop_footer_branch
                  %2389 = sbr.rel target = $region71
                $region76: #{forward.4} parent=61 // loop_exit
                  _
              $region62: #{forward.4} parent=39 // pred_fallthru
                _
              // Predicated region
              $region77: #{forward.4} parent=39 // pred_check
                _
              $region78: #{forward.4} parent=39 // pred_check_branch
                %2408 = sbr.rel target = $region80
              $region79: #{forward.4} parent=39 // pred_region
                _
              $region80: #{forward.4} parent=39 // pred_fallthru
                _
            $region40: #{forward.4} parent=35 // pred_fallthru
              _
            // Predicated region
            $region41: #{forward.4} parent=35 // pred_check
              _
            $region42: #{forward.4} parent=35 // pred_check_branch
              %2190 = sbr.rel target = $region44
            $region43: #{forward.4} parent=35 // pred_region
              %s2192 = ssub.s32 256, 1
              %s2193 = sshrl.u32 %s2179, 5
              // While loop
              $region45: #{forward.4} parent=43 // loop_pre_header
                _
              $region46: #{forward.4} parent=43 // loop_header
                %s2195 = sphi 0, %s2197
                %p2196 = scmp.ge.s32.totalorder %s2195, %s2193
                %s2200 = sphi 0, %s2269
                %s2201 = sphi %s2172, %s2272
                %s2202 = sphi %s2183, %s2273
              $region47: #{forward.4} parent=43 // loop_header_branch
                %2199 = sbr.rel (%p2196) target = $region51
              $region48: #{forward.4} parent=43 // loop_body
                %v2203 = vld [vmem:[%s2201] sm:%s2192]
                %2204 = vst [vmem:[%s2202] sm:%s2192] %v2203
                %v2205 = vld [vmem:[%s2201 + $0x8] sm:%s2192]
                %2206 = vst [vmem:[%s2202 + $0x8] sm:%s2192] %v2205
                %v2207 = vld [vmem:[%s2201 + $0x10] sm:%s2192]
                %2208 = vst [vmem:[%s2202 + $0x10] sm:%s2192] %v2207
                %v2209 = vld [vmem:[%s2201 + $0x18] sm:%s2192]
                %2210 = vst [vmem:[%s2202 + $0x18] sm:%s2192] %v2209
                %v2211 = vld [vmem:[%s2201 + $0x20] sm:%s2192]
                %2212 = vst [vmem:[%s2202 + $0x20] sm:%s2192] %v2211
                %v2213 = vld [vmem:[%s2201 + $0x28] sm:%s2192]
                %2214 = vst [vmem:[%s2202 + $0x28] sm:%s2192] %v2213
                %v2215 = vld [vmem:[%s2201 + $0x30] sm:%s2192]
                %2216 = vst [vmem:[%s2202 + $0x30] sm:%s2192] %v2215
                %v2217 = vld [vmem:[%s2201 + $0x38] sm:%s2192]
                %2218 = vst [vmem:[%s2202 + $0x38] sm:%s2192] %v2217
                %v2219 = vld [vmem:[%s2201 + $0x40] sm:%s2192]
                %2220 = vst [vmem:[%s2202 + $0x40] sm:%s2192] %v2219
                %v2221 = vld [vmem:[%s2201 + $0x48] sm:%s2192]
                %2222 = vst [vmem:[%s2202 + $0x48] sm:%s2192] %v2221
                %v2223 = vld [vmem:[%s2201 + $0x50] sm:%s2192]
                %2224 = vst [vmem:[%s2202 + $0x50] sm:%s2192] %v2223
                %v2225 = vld [vmem:[%s2201 + $0x58] sm:%s2192]
                %2226 = vst [vmem:[%s2202 + $0x58] sm:%s2192] %v2225
                %v2227 = vld [vmem:[%s2201 + $0x60] sm:%s2192]
                %2228 = vst [vmem:[%s2202 + $0x60] sm:%s2192] %v2227
                %v2229 = vld [vmem:[%s2201 + $0x68] sm:%s2192]
                %2230 = vst [vmem:[%s2202 + $0x68] sm:%s2192] %v2229
                %v2231 = vld [vmem:[%s2201 + $0x70] sm:%s2192]
                %2232 = vst [vmem:[%s2202 + $0x70] sm:%s2192] %v2231
                %v2233 = vld [vmem:[%s2201 + $0x78] sm:%s2192]
                %2234 = vst [vmem:[%s2202 + $0x78] sm:%s2192] %v2233
                %v2235 = vld [vmem:[%s2201 + $0x80] sm:%s2192]
                %2236 = vst [vmem:[%s2202 + $0x80] sm:%s2192] %v2235
                %v2237 = vld [vmem:[%s2201 + $0x88] sm:%s2192]
                %2238 = vst [vmem:[%s2202 + $0x88] sm:%s2192] %v2237
                %v2239 = vld [vmem:[%s2201 + $0x90] sm:%s2192]
                %2240 = vst [vmem:[%s2202 + $0x90] sm:%s2192] %v2239
                %v2241 = vld [vmem:[%s2201 + $0x98] sm:%s2192]
                %2242 = vst [vmem:[%s2202 + $0x98] sm:%s2192] %v2241
                %v2243 = vld [vmem:[%s2201 + $0xa0] sm:%s2192]
                %2244 = vst [vmem:[%s2202 + $0xa0] sm:%s2192] %v2243
                %v2245 = vld [vmem:[%s2201 + $0xa8] sm:%s2192]
                %2246 = vst [vmem:[%s2202 + $0xa8] sm:%s2192] %v2245
                %v2247 = vld [vmem:[%s2201 + $0xb0] sm:%s2192]
                %2248 = vst [vmem:[%s2202 + $0xb0] sm:%s2192] %v2247
                %v2249 = vld [vmem:[%s2201 + $0xb8] sm:%s2192]
                %2250 = vst [vmem:[%s2202 + $0xb8] sm:%s2192] %v2249
                %v2251 = vld [vmem:[%s2201 + $0xc0] sm:%s2192]
                %2252 = vst [vmem:[%s2202 + $0xc0] sm:%s2192] %v2251
                %v2253 = vld [vmem:[%s2201 + $0xc8] sm:%s2192]
                %2254 = vst [vmem:[%s2202 + $0xc8] sm:%s2192] %v2253
                %v2255 = vld [vmem:[%s2201 + $0xd0] sm:%s2192]
                %2256 = vst [vmem:[%s2202 + $0xd0] sm:%s2192] %v2255
                %v2257 = vld [vmem:[%s2201 + $0xd8] sm:%s2192]
                %2258 = vst [vmem:[%s2202 + $0xd8] sm:%s2192] %v2257
                %v2259 = vld [vmem:[%s2201 + $0xe0] sm:%s2192]
                %2260 = vst [vmem:[%s2202 + $0xe0] sm:%s2192] %v2259
                %v2261 = vld [vmem:[%s2201 + $0xe8] sm:%s2192]
                %2262 = vst [vmem:[%s2202 + $0xe8] sm:%s2192] %v2261
                %v2263 = vld [vmem:[%s2201 + $0xf0] sm:%s2192]
                %2264 = vst [vmem:[%s2202 + $0xf0] sm:%s2192] %v2263
                %v2265 = vld [vmem:[%s2201 + $0xf8] sm:%s2192]
                %2266 = vst [vmem:[%s2202 + $0xf8] sm:%s2192] %v2265
                %s2267 = sadd.s32 1, %s2200
                %p2268 = scmp.ge.s32.totalorder %s2267, %s2193
                %s2269 = scalar_select %p2268, 0, %s2267
                %s2270 = smul.u32 %s2269, 256
                %s2271 = smul.u32 %s2269, 256
                %s2272 = scalar_lea.vmem %s2172, %s2270 [#allocation2]
                %s2273 = scalar_lea.vmem %s2183, %s2271
              $region49: #{forward.4} parent=43 // loop_footer
                %s2197 = sadd.s32 %s2195, 1
              $region50: #{forward.4} parent=43 // loop_footer_branch
                %2194 = sbr.rel target = $region46
              $region51: #{forward.4} parent=43 // loop_exit
                _
              %s2274 = sshrl.u32 %s2179, 5
              %s2275 = sand.u32 %s2179, 31
              %s2276 = smul.u32 %s2274, 32
              %s2277 = smul.u32 8, %s2276
              %s2278 = scalar_lea.vmem %s2172, %s2277 [#allocation2]
              %s2279 = smul.u32 8, %s2276
              %s2280 = scalar_lea.vmem %s2183, %s2279
              // While loop
              $region52: #{forward.4} parent=43 // loop_pre_header
                _
              $region53: #{forward.4} parent=43 // loop_header
                %s2282 = sphi 0, %s2284
                %p2283 = scmp.ge.s32.totalorder %s2282, %s2275
                %s2287 = sphi 0, %s2294
                %s2288 = sphi %s2278, %s2297
                %s2289 = sphi %s2280, %s2298
              $region54: #{forward.4} parent=43 // loop_header_branch
                %2286 = sbr.rel (%p2283) target = $region58
              $region55: #{forward.4} parent=43 // loop_body
                %v2290 = vld [vmem:[%s2288] sm:%s2192]
                %2291 = vst [vmem:[%s2289] sm:%s2192] %v2290
                %s2292 = sadd.s32 1, %s2287
                %p2293 = scmp.ge.s32.totalorder %s2292, %s2275
                %s2294 = scalar_select %p2293, 0, %s2292
                %s2295 = smul.u32 %s2294, 8
                %s2296 = smul.u32 %s2294, 8
                %s2297 = scalar_lea.vmem %s2278, %s2295 [#allocation2]
                %s2298 = scalar_lea.vmem %s2280, %s2296
              $region56: #{forward.4} parent=43 // loop_footer
                %s2284 = sadd.s32 %s2282, 1
              $region57: #{forward.4} parent=43 // loop_footer_branch
                %2281 = sbr.rel target = $region53
              $region58: #{forward.4} parent=43 // loop_exit
                _
            $region44: #{forward.4} parent=35 // pred_fallthru
              _
          $region36: #{forward.4} parent=31 // pred_fallthru
            _
          %2409 = vnop
        $region32: #{forward.4} parent=27 // pred_fallthru
          _
      $region28: #{forward.4} parent=5 // pred_fallthru
        _
      %p2410 = scmp.le.s32.totalorder 2, %s8
      // Predicated region
      $region81: #{forward.4} parent=5 // pred_check
        %p2411 = pneg %p2410
      $region82: #{forward.4} parent=5 // pred_check_branch
        %2413 = sbr.rel (%p2411) target = $region84
      $region83: #{forward.4} parent=5 // pred_region
        %s2414 = ssub.s32 %s8, 2
        // Predicated region
        $region85: #{forward.4} parent=83 // pred_check
          %p2415 = pneg %p84
        $region86: #{forward.4} parent=83 // pred_check_branch
          %2417 = sbr.rel (%p2415) target = $region88
        $region87: #{forward.4} parent=83 // pred_region
          %s2418 = sand.u32 %s69, 1
          %s2419 = sand.u32 %s69, 1
          %s2420 = smul.addr %s2419, 768
          %s2421 = scalar_lea.vmem [#allocation2], %s2420
        $region88: #{forward.4} parent=83 // pred_fallthru
          _
      $region84: #{forward.4} parent=5 // pred_fallthru
        _
    $region6: #{forward.4} parent=1 // loop_footer
      %s12 = sadd.s32 1, %s8
    $region7: #{forward.4} parent=1 // loop_footer_branch
      %7 = sbr.rel target = $region3
    $region8: #{forward.4} parent=1 // loop_exit
      _

// kernel: forward.5
$region0: #{forward.5}
  #allocation0 [shape = 'u32[]', space=smem, size = 0x4, offset = 0x4, fixed_abs, tag = 'smem constant byte address 0x4 - core index']
  #allocation1 [shape = 'u32[72,128]{1,0:T(1,128)}', space=vmem, size = 0x9000, scoped, tag = 'internal scratch']
  %s0 = inlined_call_operand.vmem [shape: bf16[1452,288], index: 0, kind: input, shape index: {}]
  %s1 = inlined_call_operand.vmem [shape: bf16[288,4], index: 1, kind: input, shape index: {}]
  %s2 = inlined_call_operand.vmem [shape: f32[1452,4], index: 2, kind: output, shape index: {}]
  %s3 = sld [smem:[#allocation0]]
  $region89: #{forward.5} parent=0
    _
  %s5 = ssub.s32 1, %s3
  %s6 = scalar_select 0, %s5, %s3
  $region1: #{forward.5} parent=0
    #allocation2 [shape = 'u8[786432]{0}', space=vmem, size = 0xc0000, scoped, tag = 'output window, operand 0']
    loop: start=0, step=1, limit=4
    $region2: #{forward.5} parent=1 // loop_pre_header
      _
    $region3: #{forward.5} parent=1 // loop_header
      %s8 = sphi 0, %s12
      %p9 = scmp.ge.s32.totalorder %s8, 4
      %s18 = sphi 0, %s20
      %s21 = sphi 0, %s18
      %s22 = sphi 0, %s21
      %s38 = sphi 0, %s22
      %s42 = sphi 0, %s42
      %s44 = sphi 0, %s42
      %s45 = sphi 0, %s44
      %s59 = sphi 0, %s45
      %s65 = sphi 0, %s67
      %s68 = sphi 0, %s65
      %s69 = sphi 0, %s68
      %s85 = sphi 0, %s69
    $region4: #{forward.5} parent=1 // loop_header_branch
      %11 = sbr.rel (%p9) target = $region8
    $region5: #{forward.5} parent=1 // loop_body
      %s13 = ssub.s32 %s8, 1
      %s14 = ssub.s32 %s8, 2
      %s15 = sadd.s32 %s8, 1
      %s16 = ssub.s32 %s8, %s15
      %p17 = scmp.eq.s32.totalorder %s16, 0
      %s19 = sadd.s32 %s18, 1
      %s20 = scalar_select %p17, %s18, %s19
      %p23 = pneg %p17
      %p24 = scmp.eq.s32.totalorder %s8, 1
      %p25 = por %p23, %p24
      %p26 = scmp.ne.s32.totalorder %s18, %s21
      %p27 = scmp.eq.s32.totalorder %s8, 0
      %p28 = por %p26, %p27
      %p29 = scmp.ne.s32.totalorder %s18, %s21
      %p30 = scmp.eq.s32.totalorder %s13, 1
      %p31 = por %p29, %p30
      %p32 = scmp.ne.s32.totalorder %s21, %s22
      %p33 = scmp.eq.s32.totalorder %s13, 0
      %p34 = por %p32, %p33
      %p35 = scmp.ne.s32.totalorder %s21, %s22
      %p36 = scmp.eq.s32.totalorder %s14, 1
      %p37 = por %p35, %p36
      %p39 = scmp.ne.s32.totalorder %s22, %s38
      %p40 = scmp.eq.s32.totalorder %s14, 0
      %p41 = por %p39, %p40
      %s43 = sadd.s32 %s42, 1
      %p46 = scmp.eq.s32.totalorder %s8, 1
      %p47 = scmp.ne.s32.totalorder %s42, %s44
      %p48 = scmp.eq.s32.totalorder %s8, 0
      %p49 = por %p47, %p48
      %p50 = scmp.ne.s32.totalorder %s42, %s44
      %p51 = scmp.eq.s32.totalorder %s13, 1
      %p52 = por %p50, %p51
      %p53 = scmp.ne.s32.totalorder %s44, %s45
      %p54 = scmp.eq.s32.totalorder %s13, 0
      %p55 = por %p53, %p54
      %p56 = scmp.ne.s32.totalorder %s44, %s45
      %p57 = scmp.eq.s32.totalorder %s14, 1
      %p58 = por %p56, %p57
      %p60 = scmp.ne.s32.totalorder %s45, %s59
      %p61 = scmp.eq.s32.totalorder %s14, 0
      %p62 = por %p60, %p61
      %s63 = ssub.s32 %s8, %s15
      %p64 = scmp.eq.s32.totalorder %s63, 0
      %s66 = sadd.s32 %s65, 1
      %s67 = scalar_select %p64, %s65, %s66
      %p70 = pneg %p64
      %p71 = scmp.eq.s32.totalorder %s8, 1
      %p72 = por %p70, %p71
      %p73 = scmp.ne.s32.totalorder %s65, %s68
      %p74 = scmp.eq.s32.totalorder %s8, 0
      %p75 = por %p73, %p74
      %p76 = scmp.ne.s32.totalorder %s65, %s68
      %p77 = scmp.eq.s32.totalorder %s13, 1
      %p78 = por %p76, %p77
      %p79 = scmp.ne.s32.totalorder %s68, %s69
      %p80 = scmp.eq.s32.totalorder %s13, 0
      %p81 = por %p79, %p80
      %p82 = scmp.ne.s32.totalorder %s68, %s69
      %p83 = scmp.eq.s32.totalorder %s14, 1
      %p84 = por %p82, %p83
      %p86 = scmp.ne.s32.totalorder %s69, %s85
      %p87 = scmp.eq.s32.totalorder %s14, 0
      %p88 = por %p86, %p87
      %p89 = scmp.le.s32.totalorder 1, %s8
      %p90 = scmp.lt.s32.totalorder %s8, 3
      %p91 = pnand %p89, %p90
      %p92 = pneg %p91
      // Predicated region
      $region9: #{forward.5} parent=5 // pred_check
        _
      $region10: #{forward.5} parent=5 // pred_check_branch
        %94 = sbr.rel (%p91) target = $region12
      $region11: #{forward.5} parent=5 // pred_region
        %s95 = ssub.s32 %s8, 1
        // Predicated region
        $region13: #{forward.5} parent=11 // pred_check
          %p96 = pneg %p55
        $region14: #{forward.5} parent=11 // pred_check_branch
          %98 = sbr.rel (%p96) target = $region16
        $region15: #{forward.5} parent=11 // pred_region
          _
        $region16: #{forward.5} parent=11 // pred_fallthru
          _
      $region12: #{forward.5} parent=5 // pred_fallthru
        _
      %p99 = scmp.lt.s32.totalorder %s8, 2
      // Predicated region
      $region17: #{forward.5} parent=5 // pred_check
        %p100 = pneg %p99
      $region18: #{forward.5} parent=5 // pred_check_branch
        %102 = sbr.rel (%p100) target = $region20
      $region19: #{forward.5} parent=5 // pred_region
        // Predicated region
        $region21: #{forward.5} parent=19 // pred_check
          %p103 = pneg %p28
        $region22: #{forward.5} parent=19 // pred_check_branch
          %105 = sbr.rel (%p103) target = $region24
        $region23: #{forward.5} parent=19 // pred_region
          %s106 = smul.u32 96, %s8
          %s107 = ssub.s32 182, %s106
          %p108 = scmp.lt.s32.totalorder %s107, 96
          %s109 = scalar_select %p108, %s107, 96
          %s110 = smul.u32 4, %s109
          %s111 = smul.u32 %s110, 3
          %p112 = scmp.lt.s32.totalorder %s106, 181
          %s113 = scalar_select %p112, %s106, 181
          %s114 = smul.addr %s113, 3
          %s115 = smul.addr %s114, 4
          %s116 = scalar_lea.vmem %s0, %s115
          %s117 = smul.u32 96, %s8
          %s118 = ssub.s32 182, %s117
          %p119 = scmp.lt.s32.totalorder %s118, 96
          %s120 = scalar_select %p119, %s118, 96
          %s121 = smul.u32 4, %s120
          %s122 = smul.u32 %s121, 3
        $region24: #{forward.5} parent=19 // pred_fallthru
          _
      $region20: #{forward.5} parent=5 // pred_fallthru
        _
      %p123 = scmp.le.s32.totalorder 1, %s8
      %p124 = scmp.lt.s32.totalorder %s8, 3
      %p125 = pnand %p123, %p124
      %p126 = pneg %p125
      // Predicated region
      $region25: #{forward.5} parent=5 // pred_check
        _
      $region26: #{forward.5} parent=5 // pred_check_branch
        %128 = sbr.rel (%p125) target = $region28
      $region27: #{forward.5} parent=5 // pred_region
        %s129 = ssub.s32 %s8, 1
        %s130 = smul.u32 96, %s13
        %s131 = ssub.s32 182, %s130
        %p132 = scmp.lt.s32.totalorder %s131, 96
        %s133 = scalar_select %p132, %s131, 96
        %s134 = smul.u32 4, %s133
        %s135 = smul.u32 %s134, 3
        %p136 = scmp.lt.s32.totalorder %s130, 181
        %s137 = scalar_select %p136, %s130, 181
        %s138 = smul.addr %s137, 3
        %s139 = smul.addr %s138, 4
        %s140 = scalar_lea.vmem %s0, %s139
        %p141 = pneg %p34
        %p142 = pneg %p31
        %p143 = pneg %p55
        %p144 = pneg %p52
        %p145 = pneg %p81
        %p146 = pneg %p78
        %s147 = sand.u32 %s68, 1
        %s148 = sand.u32 %s68, 1
        %s149 = smul.addr %s148, 768
        %s150 = scalar_lea.vmem [#allocation2], %s149
        %s151 = smul.u32 96, %s13
        %s152 = ssub.s32 182, %s151
        %p153 = scmp.lt.s32.totalorder %s152, 96
        %s154 = scalar_select %p153, %s152, 96
        %s155 = smul.u32 4, %s154
        %s156 = smul.u32 %s155, 3
        %p157 = scmp.lt.s32.totalorder %s151, 181
        %s158 = scalar_select %p157, %s151, 181
        %s159 = smul.addr %s158, 3
        %s160 = smul.addr %s159, 4
        %s161 = scalar_lea.vmem %s0, %s160
        %s162 = smul.u32 96, %s13
        %s163 = ssub.s32 182, %s162
        %p164 = scmp.lt.s32.totalorder %s163, 96
        %s165 = scalar_select %p164, %s163, 96
        %s166 = smul.u32 4, %s165
        %s167 = smul.u32 %s166, 3
        %s168 = smul.u32 96, %s13
        %s169 = ssub.s32 182, %s168
        %p170 = scmp.lt.s32.totalorder %s169, 96
        %s171 = scalar_select %p170, %s169, 96
        %s172 = smul.u32 8, %s171
        %v174 = vld [vmem:[%s161] sm:$0xff]
        %v175 = vld [vmem:[%s161 + $0x8] sm:$0xf]
        %v176 = vld [vmem:[%s161 + $0xc] sm:$0xff]
        %v177 = vld [vmem:[%s161 + $0x14] sm:$0xf]
        %v178 = vld [vmem:[%s161 + $0x18] sm:$0xff]
        %v179 = vld [vmem:[%s161 + $0x20] sm:$0xf]
        %v180 = vld [vmem:[%s161 + $0x24] sm:$0xff]
        %v181 = vld [vmem:[%s161 + $0x2c] sm:$0xf]
        %v182 = vld [vmem:[%s161 + $0x30] sm:$0xff]
        %v183 = vld [vmem:[%s161 + $0x38] sm:$0xf]
        %v184 = vld [vmem:[%s161 + $0x3c] sm:$0xff]
        %v185 = vld [vmem:[%s161 + $0x44] sm:$0xf]
        %v186 = vld [vmem:[%s161 + $0x48] sm:$0xff]
        %v187 = vld [vmem:[%s161 + $0x50] sm:$0xf]
        %v188 = vld [vmem:[%s161 + $0x54] sm:$0xff]
        %v189 = vld [vmem:[%s161 + $0x5c] sm:$0xf]
        %v190 = vld [vmem:[%s161 + $0x60] sm:$0xff]
        %v191 = vld [vmem:[%s161 + $0x68] sm:$0xf]
        %v192 = vld [vmem:[%s161 + $0x6c] sm:$0xff]
        %v193 = vld [vmem:[%s161 + $0x74] sm:$0xf]
        %v194 = vld [vmem:[%s161 + $0x78] sm:$0xff]
        %v195 = vld [vmem:[%s161 + $0x80] sm:$0xf]
        %v196 = vld [vmem:[%s161 + $0x84] sm:$0xff]
        %v197 = vld [vmem:[%s161 + $0x8c] sm:$0xf]
        %v198 = vld [vmem:[%s161 + $0x90] sm:$0xff]
        %v199 = vld [vmem:[%s161 + $0x98] sm:$0xf]
        %v200 = vld [vmem:[%s161 + $0x9c] sm:$0xff]
        %v201 = vld [vmem:[%s161 + $0xa4] sm:$0xf]
        %v202 = vld [vmem:[%s161 + $0xa8] sm:$0xff]
        %v203 = vld [vmem:[%s161 + $0xb0] sm:$0xf]
        %v204 = vld [vmem:[%s161 + $0xb4] sm:$0xff]
        %v205 = vld [vmem:[%s161 + $0xbc] sm:$0xf]
        %v206 = vld [vmem:[%s161 + $0xc0] sm:$0xff]
        %v207 = vld [vmem:[%s161 + $0xc8] sm:$0xf]
        %v208 = vld [vmem:[%s161 + $0xcc] sm:$0xff]
        %v209 = vld [vmem:[%s161 + $0xd4] sm:$0xf]
        %v210 = vld [vmem:[%s161 + $0xd8] sm:$0xff]
        %v211 = vld [vmem:[%s161 + $0xe0] sm:$0xf]
        %v212 = vld [vmem:[%s161 + $0xe4] sm:$0xff]
        %v213 = vld [vmem:[%s161 + $0xec] sm:$0xf]
        %v214 = vld [vmem:[%s161 + $0xf0] sm:$0xff]
        %v215 = vld [vmem:[%s161 + $0xf8] sm:$0xf]
        %v216 = vld [vmem:[%s161 + $0xfc] sm:$0xff]
        %v217 = vld [vmem:[%s161 + $0x104] sm:$0xf]
        %v218 = vld [vmem:[%s161 + $0x108] sm:$0xff]
        %v219 = vld [vmem:[%s161 + $0x110] sm:$0xf]
        %v220 = vld [vmem:[%s161 + $0x114] sm:$0xff]
        %v221 = vld [vmem:[%s161 + $0x11c] sm:$0xf]
        %v222 = vld [vmem:[%s161 + $0x120] sm:$0xff]
        %v223 = vld [vmem:[%s161 + $0x128] sm:$0xf]
        %v224 = vld [vmem:[%s161 + $0x12c] sm:$0xff]
        %v225 = vld [vmem:[%s161 + $0x134] sm:$0xf]
        %v226 = vld [vmem:[%s161 + $0x138] sm:$0xff]
        %v227 = vld [vmem:[%s161 + $0x140] sm:$0xf]
        %v228 = vld [vmem:[%s161 + $0x144] sm:$0xff]
        %v229 = vld [vmem:[%s161 + $0x14c] sm:$0xf]
        %v230 = vld [vmem:[%s161 + $0x150] sm:$0xff]
        %v231 = vld [vmem:[%s161 + $0x158] sm:$0xf]
        %v232 = vld [vmem:[%s161 + $0x15c] sm:$0xff]
        %v233 = vld [vmem:[%s161 + $0x164] sm:$0xf]
        %v234 = vld [vmem:[%s161 + $0x168] sm:$0xff]
        %v235 = vld [vmem:[%s161 + $0x170] sm:$0xf]
        %v236 = vld [vmem:[%s161 + $0x174] sm:$0xff]
        %v237 = vld [vmem:[%s161 + $0x17c] sm:$0xf]
        %v238 = vld [vmem:[%s161 + $0x180] sm:$0xff]
        %v239 = vld [vmem:[%s161 + $0x188] sm:$0xf]
        %v240 = vld [vmem:[%s161 + $0x18c] sm:$0xff]
        %v241 = vld [vmem:[%s161 + $0x194] sm:$0xf]
        %v242 = vld [vmem:[%s161 + $0x198] sm:$0xff]
        %v243 = vld [vmem:[%s161 + $0x1a0] sm:$0xf]
        %v244 = vld [vmem:[%s161 + $0x1a4] sm:$0xff]
        %v245 = vld [vmem:[%s161 + $0x1ac] sm:$0xf]
        %v246 = vld [vmem:[%s161 + $0x1b0] sm:$0xff]
        %v247 = vld [vmem:[%s161 + $0x1b8] sm:$0xf]
        %v248 = vld [vmem:[%s161 + $0x1bc] sm:$0xff]
        %v249 = vld [vmem:[%s161 + $0x1c4] sm:$0xf]
        %v250 = vld [vmem:[%s161 + $0x1c8] sm:$0xff]
        %v251 = vld [vmem:[%s161 + $0x1d0] sm:$0xf]
        %v252 = vld [vmem:[%s161 + $0x1d4] sm:$0xff]
        %v253 = vld [vmem:[%s161 + $0x1dc] sm:$0xf]
        %v254 = vld [vmem:[%s161 + $0x1e0] sm:$0xff]
        %v255 = vld [vmem:[%s161 + $0x1e8] sm:$0xf]
        %v256 = vld [vmem:[%s161 + $0x1ec] sm:$0xff]
        %v257 = vld [vmem:[%s161 + $0x1f4] sm:$0xf]
        %v258 = vld [vmem:[%s161 + $0x1f8] sm:$0xff]
        %v259 = vld [vmem:[%s161 + $0x200] sm:$0xf]
        %v260 = vld [vmem:[%s161 + $0x204] sm:$0xff]
        %v261 = vld [vmem:[%s161 + $0x20c] sm:$0xf]
        %v262 = vld [vmem:[%s161 + $0x210] sm:$0xff]
        %v263 = vld [vmem:[%s161 + $0x218] sm:$0xf]
        %v264 = vld [vmem:[%s161 + $0x21c] sm:$0xff]
        %v265 = vld [vmem:[%s161 + $0x224] sm:$0xf]
        %v266 = vld [vmem:[%s161 + $0x228] sm:$0xff]
        %v267 = vld [vmem:[%s161 + $0x230] sm:$0xf]
        %v268 = vld [vmem:[%s161 + $0x234] sm:$0xff]
        %v269 = vld [vmem:[%s161 + $0x23c] sm:$0xf]
        %v270 = vld [vmem:[%s161 + $0x240] sm:$0xff]
        %v271 = vld [vmem:[%s161 + $0x248] sm:$0xf]
        %v272 = vld [vmem:[%s161 + $0x24c] sm:$0xff]
        %v273 = vld [vmem:[%s161 + $0x254] sm:$0xf]
        %v274 = vld [vmem:[%s161 + $0x258] sm:$0xff]
        %v275 = vld [vmem:[%s161 + $0x260] sm:$0xf]
        %v276 = vld [vmem:[%s161 + $0x264] sm:$0xff]
        %v277 = vld [vmem:[%s161 + $0x26c] sm:$0xf]
        %v278 = vld [vmem:[%s161 + $0x270] sm:$0xff]
        %v279 = vld [vmem:[%s161 + $0x278] sm:$0xf]
        %v280 = vld [vmem:[%s161 + $0x27c] sm:$0xff]
        %v281 = vld [vmem:[%s161 + $0x284] sm:$0xf]
        %v282 = vld [vmem:[%s161 + $0x288] sm:$0xff]
        %v283 = vld [vmem:[%s161 + $0x290] sm:$0xf]
        %v284 = vld [vmem:[%s161 + $0x294] sm:$0xff]
        %v285 = vld [vmem:[%s161 + $0x29c] sm:$0xf]
        %v286 = vld [vmem:[%s161 + $0x2a0] sm:$0xff]
        %v287 = vld [vmem:[%s161 + $0x2a8] sm:$0xf]
        %v288 = vld [vmem:[%s161 + $0x2ac] sm:$0xff]
        %v289 = vld [vmem:[%s161 + $0x2b4] sm:$0xf]
        %v290 = vld [vmem:[%s161 + $0x2b8] sm:$0xff]
        %v291 = vld [vmem:[%s161 + $0x2c0] sm:$0xf]
        %v292 = vld [vmem:[%s161 + $0x2c4] sm:$0xff]
        %v293 = vld [vmem:[%s161 + $0x2cc] sm:$0xf]
        %v294 = vld [vmem:[%s161 + $0x2d0] sm:$0xff]
        %v295 = vld [vmem:[%s161 + $0x2d8] sm:$0xf]
        %v296 = vld [vmem:[%s161 + $0x2dc] sm:$0xff]
        %v297 = vld [vmem:[%s161 + $0x2e4] sm:$0xf]
        %v298 = vld [vmem:[%s161 + $0x2e8] sm:$0xff]
        %v299 = vld [vmem:[%s161 + $0x2f0] sm:$0xf]
        %v300 = vld [vmem:[%s161 + $0x2f4] sm:$0xff]
        %v301 = vld [vmem:[%s161 + $0x2fc] sm:$0xf]
        %v302 = vld [vmem:[%s161 + $0x300] sm:$0xff]
        %v303 = vld [vmem:[%s161 + $0x308] sm:$0xf]
        %v304 = vld [vmem:[%s161 + $0x30c] sm:$0xff]
        %v305 = vld [vmem:[%s161 + $0x314] sm:$0xf]
        %v306 = vld [vmem:[%s161 + $0x318] sm:$0xff]
        %v307 = vld [vmem:[%s161 + $0x320] sm:$0xf]
        %v308 = vld [vmem:[%s161 + $0x324] sm:$0xff]
        %v309 = vld [vmem:[%s161 + $0x32c] sm:$0xf]
        %v310 = vld [vmem:[%s161 + $0x330] sm:$0xff]
        %v311 = vld [vmem:[%s161 + $0x338] sm:$0xf]
        %v312 = vld [vmem:[%s161 + $0x33c] sm:$0xff]
        %v313 = vld [vmem:[%s161 + $0x344] sm:$0xf]
        %v314 = vld [vmem:[%s161 + $0x348] sm:$0xff]
        %v315 = vld [vmem:[%s161 + $0x350] sm:$0xf]
        %v316 = vld [vmem:[%s161 + $0x354] sm:$0xff]
        %v317 = vld [vmem:[%s161 + $0x35c] sm:$0xf]
        %v318 = vld [vmem:[%s161 + $0x360] sm:$0xff]
        %v319 = vld [vmem:[%s161 + $0x368] sm:$0xf]
        %v320 = vld [vmem:[%s161 + $0x36c] sm:$0xff]
        %v321 = vld [vmem:[%s161 + $0x374] sm:$0xf]
        %v322 = vld [vmem:[%s161 + $0x378] sm:$0xff]
        %v323 = vld [vmem:[%s161 + $0x380] sm:$0xf]
        %v324 = vld [vmem:[%s161 + $0x384] sm:$0xff]
        %v325 = vld [vmem:[%s161 + $0x38c] sm:$0xf]
        %v326 = vld [vmem:[%s161 + $0x390] sm:$0xff]
        %v327 = vld [vmem:[%s161 + $0x398] sm:$0xf]
        %v328 = vld [vmem:[%s161 + $0x39c] sm:$0xff]
        %v329 = vld [vmem:[%s161 + $0x3a4] sm:$0xf]
        %v330 = vld [vmem:[%s161 + $0x3a8] sm:$0xff]
        %v331 = vld [vmem:[%s161 + $0x3b0] sm:$0xf]
        %v332 = vld [vmem:[%s161 + $0x3b4] sm:$0xff]
        %v333 = vld [vmem:[%s161 + $0x3bc] sm:$0xf]
        %v334 = vld [vmem:[%s161 + $0x3c0] sm:$0xff]
        %v335 = vld [vmem:[%s161 + $0x3c8] sm:$0xf]
        %v336 = vld [vmem:[%s161 + $0x3cc] sm:$0xff]
        %v337 = vld [vmem:[%s161 + $0x3d4] sm:$0xf]
        %v338 = vld [vmem:[%s161 + $0x3d8] sm:$0xff]
        %v339 = vld [vmem:[%s161 + $0x3e0] sm:$0xf]
        %v340 = vld [vmem:[%s161 + $0x3e4] sm:$0xff]
        %v341 = vld [vmem:[%s161 + $0x3ec] sm:$0xf]
        %v342 = vld [vmem:[%s161 + $0x3f0] sm:$0xff]
        %v343 = vld [vmem:[%s161 + $0x3f8] sm:$0xf]
        %v344 = vld [vmem:[%s161 + $0x3fc] sm:$0xff]
        %v345 = vld [vmem:[%s161 + $0x404] sm:$0xf]
        %v346 = vld [vmem:[%s161 + $0x408] sm:$0xff]
        %v347 = vld [vmem:[%s161 + $0x410] sm:$0xf]
        %v348 = vld [vmem:[%s161 + $0x414] sm:$0xff]
        %v349 = vld [vmem:[%s161 + $0x41c] sm:$0xf]
        %v350 = vld [vmem:[%s161 + $0x420] sm:$0xff]
        %v351 = vld [vmem:[%s161 + $0x428] sm:$0xf]
        %v352 = vld [vmem:[%s161 + $0x42c] sm:$0xff]
        %v353 = vld [vmem:[%s161 + $0x434] sm:$0xf]
        %v354 = vld [vmem:[%s161 + $0x438] sm:$0xff]
        %v355 = vld [vmem:[%s161 + $0x440] sm:$0xf]
        %v356 = vld [vmem:[%s161 + $0x444] sm:$0xff]
        %v357 = vld [vmem:[%s161 + $0x44c] sm:$0xf]
        %v358 = vld [vmem:[%s161 + $0x450] sm:$0xff]
        %v359 = vld [vmem:[%s161 + $0x458] sm:$0xf]
        %v360 = vld [vmem:[%s161 + $0x45c] sm:$0xff]
        %v361 = vld [vmem:[%s161 + $0x464] sm:$0xf]
        %v362 = vld [vmem:[%s161 + $0x468] sm:$0xff]
        %v363 = vld [vmem:[%s161 + $0x470] sm:$0xf]
        %v364 = vld [vmem:[%s161 + $0x474] sm:$0xff]
        %v365 = vld [vmem:[%s161 + $0x47c] sm:$0xf]
        %v366 = vld [vmem:[%s1] sm:$0xf]
        %v367 = vld [vmem:[%s1 + $0x4] sm:$0xf]
        %v368 = vld [vmem:[%s1 + $0x8] sm:$0xf]
        %v369 = vld [vmem:[%s1 + $0xc] sm:$0xf]
        %v370 = vld [vmem:[%s1 + $0x10] sm:$0xf]
        %v371 = vld [vmem:[%s1 + $0x14] sm:$0xf]
        %v372 = vld [vmem:[%s1 + $0x18] sm:$0xf]
        %v373 = vld [vmem:[%s1 + $0x1c] sm:$0xf]
        %v374 = vld [vmem:[%s1 + $0x20] sm:$0xf]
        %v375 = vld [vmem:[%s1 + $0x24] sm:$0xf]
        %v376 = vld [vmem:[%s1 + $0x28] sm:$0xf]
        %v377 = vld [vmem:[%s1 + $0x2c] sm:$0xf]
        %v378 = vld [vmem:[%s1 + $0x30] sm:$0xf]
        %v379 = vld [vmem:[%s1 + $0x34] sm:$0xf]
        %v380 = vld [vmem:[%s1 + $0x38] sm:$0xf]
        %v381 = vld [vmem:[%s1 + $0x3c] sm:$0xf]
        %v382 = vld [vmem:[%s1 + $0x40] sm:$0xf]
        %v383 = vld [vmem:[%s1 + $0x44] sm:$0xf]
        %v384 = vld [vmem:[%s1 + $0x48] sm:$0xf]
        %v385 = vld [vmem:[%s1 + $0x4c] sm:$0xf]
        %v386 = vld [vmem:[%s1 + $0x50] sm:$0xf]
        %v387 = vld [vmem:[%s1 + $0x54] sm:$0xf]
        %v388 = vld [vmem:[%s1 + $0x58] sm:$0xf]
        %v389 = vld [vmem:[%s1 + $0x5c] sm:$0xf]
        %v390 = vld [vmem:[%s1 + $0x60] sm:$0xf]
        %v391 = vld [vmem:[%s1 + $0x64] sm:$0xf]
        %v392 = vld [vmem:[%s1 + $0x68] sm:$0xf]
        %v393 = vld [vmem:[%s1 + $0x6c] sm:$0xf]
        %v394 = vld [vmem:[%s1 + $0x70] sm:$0xf]
        %v395 = vld [vmem:[%s1 + $0x74] sm:$0xf]
        %v396 = vld [vmem:[%s1 + $0x78] sm:$0xf]
        %v397 = vld [vmem:[%s1 + $0x7c] sm:$0xf]
        %v398 = vld [vmem:[%s1 + $0x80] sm:$0xf]
        %v399 = vld [vmem:[%s1 + $0x84] sm:$0xf]
        %v400 = vld [vmem:[%s1 + $0x88] sm:$0xf]
        %v401 = vld [vmem:[%s1 + $0x8c] sm:$0xf]
        %v594 = vunpack.c.l.b16 %v174
        %v595 = vunpack.c.h.b16 %v174
        %v596 = vunpack.c.l.b16 %v175
        %v597 = vunpack.c.l.b16 %v176
        %v598 = vunpack.c.h.b16 %v176
        %v599 = vunpack.c.l.b16 %v177
        %v600 = vunpack.c.l.b16 %v178
        %v601 = vunpack.c.h.b16 %v178
        %v602 = vunpack.c.l.b16 %v179
        %v603 = vunpack.c.l.b16 %v180
        %v604 = vunpack.c.h.b16 %v180
        %v605 = vunpack.c.l.b16 %v181
        %v606 = vunpack.c.l.b16 %v182
        %v607 = vunpack.c.h.b16 %v182
        %v608 = vunpack.c.l.b16 %v183
        %v609 = vunpack.c.l.b16 %v184
        %v610 = vunpack.c.h.b16 %v184
        %v611 = vunpack.c.l.b16 %v185
        %v612 = vunpack.c.l.b16 %v186
        %v613 = vunpack.c.h.b16 %v186
        %v614 = vunpack.c.l.b16 %v187
        %v615 = vunpack.c.l.b16 %v188
        %v616 = vunpack.c.h.b16 %v188
        %v617 = vunpack.c.l.b16 %v189
        %v618 = vunpack.c.l.b16 %v190
        %v619 = vunpack.c.h.b16 %v190
        %v620 = vunpack.c.l.b16 %v191
        %v621 = vunpack.c.l.b16 %v192
        %v622 = vunpack.c.h.b16 %v192
        %v623 = vunpack.c.l.b16 %v193
        %v624 = vunpack.c.l.b16 %v194
        %v625 = vunpack.c.h.b16 %v194
        %v626 = vunpack.c.l.b16 %v195
        %v627 = vunpack.c.l.b16 %v196
        %v628 = vunpack.c.h.b16 %v196
        %v629 = vunpack.c.l.b16 %v197
        %v630 = vunpack.c.l.b16 %v198
        %v631 = vunpack.c.h.b16 %v198
        %v632 = vunpack.c.l.b16 %v199
        %v633 = vunpack.c.l.b16 %v200
        %v634 = vunpack.c.h.b16 %v200
        %v635 = vunpack.c.l.b16 %v201
        %v636 = vunpack.c.l.b16 %v202
        %v637 = vunpack.c.h.b16 %v202
        %v638 = vunpack.c.l.b16 %v203
        %v639 = vunpack.c.l.b16 %v204
        %v640 = vunpack.c.h.b16 %v204
        %v641 = vunpack.c.l.b16 %v205
        %v642 = vunpack.c.l.b16 %v206
        %v643 = vunpack.c.h.b16 %v206
        %v644 = vunpack.c.l.b16 %v207
        %v645 = vunpack.c.l.b16 %v208
        %v646 = vunpack.c.h.b16 %v208
        %v647 = vunpack.c.l.b16 %v209
        %v648 = vunpack.c.l.b16 %v210
        %v649 = vunpack.c.h.b16 %v210
        %v650 = vunpack.c.l.b16 %v211
        %v651 = vunpack.c.l.b16 %v212
        %v652 = vunpack.c.h.b16 %v212
        %v653 = vunpack.c.l.b16 %v213
        %v654 = vunpack.c.l.b16 %v214
        %v655 = vunpack.c.h.b16 %v214
        %v656 = vunpack.c.l.b16 %v215
        %v657 = vunpack.c.l.b16 %v216
        %v658 = vunpack.c.h.b16 %v216
        %v659 = vunpack.c.l.b16 %v217
        %v660 = vunpack.c.l.b16 %v218
        %v661 = vunpack.c.h.b16 %v218
        %v662 = vunpack.c.l.b16 %v219
        %v663 = vunpack.c.l.b16 %v220
        %v664 = vunpack.c.h.b16 %v220
        %v665 = vunpack.c.l.b16 %v221
        %v666 = vunpack.c.l.b16 %v222
        %v667 = vunpack.c.h.b16 %v222
        %v668 = vunpack.c.l.b16 %v223
        %v669 = vunpack.c.l.b16 %v224
        %v670 = vunpack.c.h.b16 %v224
        %v671 = vunpack.c.l.b16 %v225
        %v672 = vunpack.c.l.b16 %v226
        %v673 = vunpack.c.h.b16 %v226
        %v674 = vunpack.c.l.b16 %v227
        %v675 = vunpack.c.l.b16 %v228
        %v676 = vunpack.c.h.b16 %v228
        %v677 = vunpack.c.l.b16 %v229
        %v678 = vunpack.c.l.b16 %v230
        %v679 = vunpack.c.h.b16 %v230
        %v680 = vunpack.c.l.b16 %v231
        %v681 = vunpack.c.l.b16 %v232
        %v682 = vunpack.c.h.b16 %v232
        %v683 = vunpack.c.l.b16 %v233
        %v684 = vunpack.c.l.b16 %v234
        %v685 = vunpack.c.h.b16 %v234
        %v686 = vunpack.c.l.b16 %v235
        %v687 = vunpack.c.l.b16 %v236
        %v688 = vunpack.c.h.b16 %v236
        %v689 = vunpack.c.l.b16 %v237
        %v690 = vunpack.c.l.b16 %v238
        %v691 = vunpack.c.h.b16 %v238
        %v692 = vunpack.c.l.b16 %v239
        %v693 = vunpack.c.l.b16 %v240
        %v694 = vunpack.c.h.b16 %v240
        %v695 = vunpack.c.l.b16 %v241
        %v696 = vunpack.c.l.b16 %v242
        %v697 = vunpack.c.h.b16 %v242
        %v698 = vunpack.c.l.b16 %v243
        %v699 = vunpack.c.l.b16 %v244
        %v700 = vunpack.c.h.b16 %v244
        %v701 = vunpack.c.l.b16 %v245
        %v702 = vunpack.c.l.b16 %v246
        %v703 = vunpack.c.h.b16 %v246
        %v704 = vunpack.c.l.b16 %v247
        %v705 = vunpack.c.l.b16 %v248
        %v706 = vunpack.c.h.b16 %v248
        %v707 = vunpack.c.l.b16 %v249
        %v708 = vunpack.c.l.b16 %v250
        %v709 = vunpack.c.h.b16 %v250
        %v710 = vunpack.c.l.b16 %v251
        %v711 = vunpack.c.l.b16 %v252
        %v712 = vunpack.c.h.b16 %v252
        %v713 = vunpack.c.l.b16 %v253
        %v714 = vunpack.c.l.b16 %v254
        %v715 = vunpack.c.h.b16 %v254
        %v716 = vunpack.c.l.b16 %v255
        %v717 = vunpack.c.l.b16 %v256
        %v718 = vunpack.c.h.b16 %v256
        %v719 = vunpack.c.l.b16 %v257
        %v720 = vunpack.c.l.b16 %v258
        %v721 = vunpack.c.h.b16 %v258
        %v722 = vunpack.c.l.b16 %v259
        %v723 = vunpack.c.l.b16 %v260
        %v724 = vunpack.c.h.b16 %v260
        %v725 = vunpack.c.l.b16 %v261
        %v726 = vunpack.c.l.b16 %v262
        %v727 = vunpack.c.h.b16 %v262
        %v728 = vunpack.c.l.b16 %v263
        %v729 = vunpack.c.l.b16 %v264
        %v730 = vunpack.c.h.b16 %v264
        %v731 = vunpack.c.l.b16 %v265
        %v732 = vunpack.c.l.b16 %v266
        %v733 = vunpack.c.h.b16 %v266
        %v734 = vunpack.c.l.b16 %v267
        %v735 = vunpack.c.l.b16 %v268
        %v736 = vunpack.c.h.b16 %v268
        %v737 = vunpack.c.l.b16 %v269
        %v738 = vunpack.c.l.b16 %v270
        %v739 = vunpack.c.h.b16 %v270
        %v740 = vunpack.c.l.b16 %v271
        %v741 = vunpack.c.l.b16 %v272
        %v742 = vunpack.c.h.b16 %v272
        %v743 = vunpack.c.l.b16 %v273
        %v744 = vunpack.c.l.b16 %v274
        %v745 = vunpack.c.h.b16 %v274
        %v746 = vunpack.c.l.b16 %v275
        %v747 = vunpack.c.l.b16 %v276
        %v748 = vunpack.c.h.b16 %v276
        %v749 = vunpack.c.l.b16 %v277
        %v750 = vunpack.c.l.b16 %v278
        %v751 = vunpack.c.h.b16 %v278
        %v752 = vunpack.c.l.b16 %v279
        %v753 = vunpack.c.l.b16 %v280
        %v754 = vunpack.c.h.b16 %v280
        %v755 = vunpack.c.l.b16 %v281
        %v756 = vunpack.c.l.b16 %v282
        %v757 = vunpack.c.h.b16 %v282
        %v758 = vunpack.c.l.b16 %v283
        %v759 = vunpack.c.l.b16 %v284
        %v760 = vunpack.c.h.b16 %v284
        %v761 = vunpack.c.l.b16 %v285
        %v762 = vunpack.c.l.b16 %v286
        %v763 = vunpack.c.h.b16 %v286
        %v764 = vunpack.c.l.b16 %v287
        %v765 = vunpack.c.l.b16 %v288
        %v766 = vunpack.c.h.b16 %v288
        %v767 = vunpack.c.l.b16 %v289
        %v768 = vunpack.c.l.b16 %v290
        %v769 = vunpack.c.h.b16 %v290
        %v770 = vunpack.c.l.b16 %v291
        %v771 = vunpack.c.l.b16 %v292
        %v772 = vunpack.c.h.b16 %v292
        %v773 = vunpack.c.l.b16 %v293
        %v774 = vunpack.c.l.b16 %v294
        %v775 = vunpack.c.h.b16 %v294
        %v776 = vunpack.c.l.b16 %v295
        %v777 = vunpack.c.l.b16 %v296
        %v778 = vunpack.c.h.b16 %v296
        %v779 = vunpack.c.l.b16 %v297
        %v780 = vunpack.c.l.b16 %v298
        %v781 = vunpack.c.h.b16 %v298
        %v782 = vunpack.c.l.b16 %v299
        %v783 = vunpack.c.l.b16 %v300
        %v784 = vunpack.c.h.b16 %v300
        %v785 = vunpack.c.l.b16 %v301
        %v786 = vunpack.c.l.b16 %v302
        %v787 = vunpack.c.h.b16 %v302
        %v788 = vunpack.c.l.b16 %v303
        %v789 = vunpack.c.l.b16 %v304
        %v790 = vunpack.c.h.b16 %v304
        %v791 = vunpack.c.l.b16 %v305
        %v792 = vunpack.c.l.b16 %v306
        %v793 = vunpack.c.h.b16 %v306
        %v794 = vunpack.c.l.b16 %v307
        %v795 = vunpack.c.l.b16 %v308
        %v796 = vunpack.c.h.b16 %v308
        %v797 = vunpack.c.l.b16 %v309
        %v798 = vunpack.c.l.b16 %v310
        %v799 = vunpack.c.h.b16 %v310
        %v800 = vunpack.c.l.b16 %v311
        %v801 = vunpack.c.l.b16 %v312
        %v802 = vunpack.c.h.b16 %v312
        %v803 = vunpack.c.l.b16 %v313
        %v804 = vunpack.c.l.b16 %v314
        %v805 = vunpack.c.h.b16 %v314
        %v806 = vunpack.c.l.b16 %v315
        %v807 = vunpack.c.l.b16 %v316
        %v808 = vunpack.c.h.b16 %v316
        %v809 = vunpack.c.l.b16 %v317
        %v810 = vunpack.c.l.b16 %v318
        %v811 = vunpack.c.h.b16 %v318
        %v812 = vunpack.c.l.b16 %v319
        %v813 = vunpack.c.l.b16 %v320
        %v814 = vunpack.c.h.b16 %v320
        %v815 = vunpack.c.l.b16 %v321
        %v816 = vunpack.c.l.b16 %v322
        %v817 = vunpack.c.h.b16 %v322
        %v818 = vunpack.c.l.b16 %v323
        %v819 = vunpack.c.l.b16 %v324
        %v820 = vunpack.c.h.b16 %v324
        %v821 = vunpack.c.l.b16 %v325
        %v822 = vunpack.c.l.b16 %v326
        %v823 = vunpack.c.h.b16 %v326
        %v824 = vunpack.c.l.b16 %v327
        %v825 = vunpack.c.l.b16 %v328
        %v826 = vunpack.c.h.b16 %v328
        %v827 = vunpack.c.l.b16 %v329
        %v828 = vunpack.c.l.b16 %v330
        %v829 = vunpack.c.h.b16 %v330
        %v830 = vunpack.c.l.b16 %v331
        %v831 = vunpack.c.l.b16 %v332
        %v832 = vunpack.c.h.b16 %v332
        %v833 = vunpack.c.l.b16 %v333
        %v834 = vunpack.c.l.b16 %v334
        %v835 = vunpack.c.h.b16 %v334
        %v836 = vunpack.c.l.b16 %v335
        %v837 = vunpack.c.l.b16 %v336
        %v838 = vunpack.c.h.b16 %v336
        %v839 = vunpack.c.l.b16 %v337
        %v840 = vunpack.c.l.b16 %v338
        %v841 = vunpack.c.h.b16 %v338
        %v842 = vunpack.c.l.b16 %v339
        %v843 = vunpack.c.l.b16 %v340
        %v844 = vunpack.c.h.b16 %v340
        %v845 = vunpack.c.l.b16 %v341
        %v846 = vunpack.c.l.b16 %v342
        %v847 = vunpack.c.h.b16 %v342
        %v848 = vunpack.c.l.b16 %v343
        %v849 = vunpack.c.l.b16 %v344
        %v850 = vunpack.c.h.b16 %v344
        %v851 = vunpack.c.l.b16 %v345
        %v852 = vunpack.c.l.b16 %v346
        %v853 = vunpack.c.h.b16 %v346
        %v854 = vunpack.c.l.b16 %v347
        %v855 = vunpack.c.l.b16 %v348
        %v856 = vunpack.c.h.b16 %v348
        %v857 = vunpack.c.l.b16 %v349
        %v858 = vunpack.c.l.b16 %v350
        %v859 = vunpack.c.h.b16 %v350
        %v860 = vunpack.c.l.b16 %v351
        %v861 = vunpack.c.l.b16 %v352
        %v862 = vunpack.c.h.b16 %v352
        %v863 = vunpack.c.l.b16 %v353
        %v864 = vunpack.c.l.b16 %v354
        %v865 = vunpack.c.h.b16 %v354
        %v866 = vunpack.c.l.b16 %v355
        %v867 = vunpack.c.l.b16 %v356
        %v868 = vunpack.c.h.b16 %v356
        %v869 = vunpack.c.l.b16 %v357
        %v870 = vunpack.c.l.b16 %v358
        %v871 = vunpack.c.h.b16 %v358
        %v872 = vunpack.c.l.b16 %v359
        %v873 = vunpack.c.l.b16 %v360
        %v874 = vunpack.c.h.b16 %v360
        %v875 = vunpack.c.l.b16 %v361
        %v876 = vunpack.c.l.b16 %v362
        %v877 = vunpack.c.h.b16 %v362
        %v878 = vunpack.c.l.b16 %v363
        %v879 = vunpack.c.l.b16 %v364
        %v880 = vunpack.c.h.b16 %v364
        %v881 = vunpack.c.l.b16 %v365
        %v882 = vpack.c.b16 %v597, %v594
        %v883 = vpack.c.b16 %v598, %v595
        %v884 = vpack.c.b16 %v599, %v596
        %v885 = vpack.c.b16 %v603, %v600
        %v886 = vpack.c.b16 %v604, %v601
        %v887 = vpack.c.b16 %v605, %v602
        %v888 = vpack.c.b16 %v609, %v606
        %v889 = vpack.c.b16 %v610, %v607
        %v890 = vpack.c.b16 %v611, %v608
        %v891 = vpack.c.b16 %v615, %v612
        %v892 = vpack.c.b16 %v616, %v613
        %v893 = vpack.c.b16 %v617, %v614
        %v894 = vpack.c.b16 %v621, %v618
        %v895 = vpack.c.b16 %v622, %v619
        %v896 = vpack.c.b16 %v623, %v620
        %v897 = vpack.c.b16 %v627, %v624
        %v898 = vpack.c.b16 %v628, %v625
        %v899 = vpack.c.b16 %v629, %v626
        %v900 = vpack.c.b16 %v633, %v630
        %v901 = vpack.c.b16 %v634, %v631
        %v902 = vpack.c.b16 %v635, %v632
        %v903 = vpack.c.b16 %v639, %v636
        %v904 = vpack.c.b16 %v640, %v637
        %v905 = vpack.c.b16 %v641, %v638
        %v906 = vpack.c.b16 %v645, %v642
        %v907 = vpack.c.b16 %v646, %v643
        %v908 = vpack.c.b16 %v647, %v644
        %v909 = vpack.c.b16 %v651, %v648
        %v910 = vpack.c.b16 %v652, %v649
        %v911 = vpack.c.b16 %v653, %v650
        %v912 = vpack.c.b16 %v657, %v654
        %v913 = vpack.c.b16 %v658, %v655
        %v914 = vpack.c.b16 %v659, %v656
        %v915 = vpack.c.b16 %v663, %v660
        %v916 = vpack.c.b16 %v664, %v661
        %v917 = vpack.c.b16 %v665, %v662
        %v918 = vpack.c.b16 %v669, %v666
        %v919 = vpack.c.b16 %v670, %v667
        %v920 = vpack.c.b16 %v671, %v668
        %v921 = vpack.c.b16 %v675, %v672
        %v922 = vpack.c.b16 %v676, %v673
        %v923 = vpack.c.b16 %v677, %v674
        %v924 = vpack.c.b16 %v681, %v678
        %v925 = vpack.c.b16 %v682, %v679
        %v926 = vpack.c.b16 %v683, %v680
        %v927 = vpack.c.b16 %v687, %v684
        %v928 = vpack.c.b16 %v688, %v685
        %v929 = vpack.c.b16 %v689, %v686
        %v930 = vpack.c.b16 %v693, %v690
        %v931 = vpack.c.b16 %v694, %v691
        %v932 = vpack.c.b16 %v695, %v692
        %v933 = vpack.c.b16 %v699, %v696
        %v934 = vpack.c.b16 %v700, %v697
        %v935 = vpack.c.b16 %v701, %v698
        %v936 = vpack.c.b16 %v705, %v702
        %v937 = vpack.c.b16 %v706, %v703
        %v938 = vpack.c.b16 %v707, %v704
        %v939 = vpack.c.b16 %v711, %v708
        %v940 = vpack.c.b16 %v712, %v709
        %v941 = vpack.c.b16 %v713, %v710
        %v942 = vpack.c.b16 %v717, %v714
        %v943 = vpack.c.b16 %v718, %v715
        %v944 = vpack.c.b16 %v719, %v716
        %v945 = vpack.c.b16 %v723, %v720
        %v946 = vpack.c.b16 %v724, %v721
        %v947 = vpack.c.b16 %v725, %v722
        %v948 = vpack.c.b16 %v729, %v726
        %v949 = vpack.c.b16 %v730, %v727
        %v950 = vpack.c.b16 %v731, %v728
        %v951 = vpack.c.b16 %v735, %v732
        %v952 = vpack.c.b16 %v736, %v733
        %v953 = vpack.c.b16 %v737, %v734
        %v954 = vpack.c.b16 %v741, %v738
        %v955 = vpack.c.b16 %v742, %v739
        %v956 = vpack.c.b16 %v743, %v740
        %v957 = vpack.c.b16 %v747, %v744
        %v958 = vpack.c.b16 %v748, %v745
        %v959 = vpack.c.b16 %v749, %v746
        %v960 = vpack.c.b16 %v753, %v750
        %v961 = vpack.c.b16 %v754, %v751
        %v962 = vpack.c.b16 %v755, %v752
        %v963 = vpack.c.b16 %v759, %v756
        %v964 = vpack.c.b16 %v760, %v757
        %v965 = vpack.c.b16 %v761, %v758
        %v966 = vpack.c.b16 %v765, %v762
        %v967 = vpack.c.b16 %v766, %v763
        %v968 = vpack.c.b16 %v767, %v764
        %v969 = vpack.c.b16 %v771, %v768
        %v970 = vpack.c.b16 %v772, %v769
        %v971 = vpack.c.b16 %v773, %v770
        %v972 = vpack.c.b16 %v777, %v774
        %v973 = vpack.c.b16 %v778, %v775
        %v974 = vpack.c.b16 %v779, %v776
        %v975 = vpack.c.b16 %v783, %v780
        %v976 = vpack.c.b16 %v784, %v781
        %v977 = vpack.c.b16 %v785, %v782
        %v978 = vpack.c.b16 %v789, %v786
        %v979 = vpack.c.b16 %v790, %v787
        %v980 = vpack.c.b16 %v791, %v788
        %v981 = vpack.c.b16 %v795, %v792
        %v982 = vpack.c.b16 %v796, %v793
        %v983 = vpack.c.b16 %v797, %v794
        %v984 = vpack.c.b16 %v801, %v798
        %v985 = vpack.c.b16 %v802, %v799
        %v986 = vpack.c.b16 %v803, %v800
        %v987 = vpack.c.b16 %v807, %v804
        %v988 = vpack.c.b16 %v808, %v805
        %v989 = vpack.c.b16 %v809, %v806
        %v990 = vpack.c.b16 %v813, %v810
        %v991 = vpack.c.b16 %v814, %v811
        %v992 = vpack.c.b16 %v815, %v812
        %v993 = vpack.c.b16 %v819, %v816
        %v994 = vpack.c.b16 %v820, %v817
        %v995 = vpack.c.b16 %v821, %v818
        %v996 = vpack.c.b16 %v825, %v822
        %v997 = vpack.c.b16 %v826, %v823
        %v998 = vpack.c.b16 %v827, %v824
        %v999 = vpack.c.b16 %v831, %v828
        %v1000 = vpack.c.b16 %v832, %v829
        %v1001 = vpack.c.b16 %v833, %v830
        %v1002 = vpack.c.b16 %v837, %v834
        %v1003 = vpack.c.b16 %v838, %v835
        %v1004 = vpack.c.b16 %v839, %v836
        %v1005 = vpack.c.b16 %v843, %v840
        %v1006 = vpack.c.b16 %v844, %v841
        %v1007 = vpack.c.b16 %v845, %v842
        %v1008 = vpack.c.b16 %v849, %v846
        %v1009 = vpack.c.b16 %v850, %v847
        %v1010 = vpack.c.b16 %v851, %v848
        %v1011 = vpack.c.b16 %v855, %v852
        %v1012 = vpack.c.b16 %v856, %v853
        %v1013 = vpack.c.b16 %v857, %v854
        %v1014 = vpack.c.b16 %v861, %v858
        %v1015 = vpack.c.b16 %v862, %v859
        %v1016 = vpack.c.b16 %v863, %v860
        %v1017 = vpack.c.b16 %v867, %v864
        %v1018 = vpack.c.b16 %v868, %v865
        %v1019 = vpack.c.b16 %v869, %v866
        %v1020 = vpack.c.b16 %v873, %v870
        %v1021 = vpack.c.b16 %v874, %v871
        %v1022 = vpack.c.b16 %v875, %v872
        %v1023 = vpack.c.b16 %v879, %v876
        %v1024 = vpack.c.b16 %v880, %v877
        %v1025 = vpack.c.b16 %v881, %v878
        %v1158 = vunpack.c.l.b16 %v366
        %v1159 = vunpack.c.l.b16 %v367
        %v1160 = vunpack.c.l.b16 %v368
        %v1161 = vunpack.c.l.b16 %v369
        %v1162 = vunpack.c.l.b16 %v370
        %v1163 = vunpack.c.l.b16 %v371
        %v1164 = vunpack.c.l.b16 %v372
        %v1165 = vunpack.c.l.b16 %v373
        %v1166 = vunpack.c.l.b16 %v374
        %v1167 = vunpack.c.l.b16 %v375
        %v1168 = vunpack.c.l.b16 %v376
        %v1169 = vunpack.c.l.b16 %v377
        %v1170 = vunpack.c.l.b16 %v378
        %v1171 = vunpack.c.l.b16 %v379
        %v1172 = vunpack.c.l.b16 %v380
        %v1173 = vunpack.c.l.b16 %v381
        %v1174 = vunpack.c.l.b16 %v382
        %v1175 = vunpack.c.l.b16 %v383
        %v1176 = vunpack.c.l.b16 %v384
        %v1177 = vunpack.c.l.b16 %v385
        %v1178 = vunpack.c.l.b16 %v386
        %v1179 = vunpack.c.l.b16 %v387
        %v1180 = vunpack.c.l.b16 %v388
        %v1181 = vunpack.c.l.b16 %v389
        %v1182 = vunpack.c.l.b16 %v390
        %v1183 = vunpack.c.l.b16 %v391
        %v1184 = vunpack.c.l.b16 %v392
        %v1185 = vunpack.c.l.b16 %v393
        %v1186 = vunpack.c.l.b16 %v394
        %v1187 = vunpack.c.l.b16 %v395
        %v1188 = vunpack.c.l.b16 %v396
        %v1189 = vunpack.c.l.b16 %v397
        %v1190 = vunpack.c.l.b16 %v398
        %v1191 = vunpack.c.l.b16 %v399
        %v1192 = vunpack.c.l.b16 %v400
        %v1193 = vunpack.c.l.b16 %v401
        %v1194 = vpack.c.b16 %v1159, %v1158
        %v1195 = vpack.c.b16 %v1161, %v1160
        %v1196 = vpack.c.b16 %v1163, %v1162
        %v1197 = vpack.c.b16 %v1165, %v1164
        %v1198 = vpack.c.b16 %v1167, %v1166
        %v1199 = vpack.c.b16 %v1169, %v1168
        %v1200 = vpack.c.b16 %v1171, %v1170
        %v1201 = vpack.c.b16 %v1173, %v1172
        %v1202 = vpack.c.b16 %v1175, %v1174
        %v1203 = vpack.c.b16 %v1177, %v1176
        %v1204 = vpack.c.b16 %v1179, %v1178
        %v1205 = vpack.c.b16 %v1181, %v1180
        %v1206 = vpack.c.b16 %v1183, %v1182
        %v1207 = vpack.c.b16 %v1185, %v1184
        %v1208 = vpack.c.b16 %v1187, %v1186
        %v1209 = vpack.c.b16 %v1189, %v1188
        %v1210 = vpack.c.b16 %v1191, %v1190
        %v1211 = vpack.c.b16 %v1193, %v1192
        %vm1230 = vcmask 261120
        %v1232 = vsel %vm1230, %v884, 0
        %v1235 = vsel %vm1230, %v887, 0
        %v1238 = vsel %vm1230, %v890, 0
        %v1241 = vsel %vm1230, %v893, 0
        %v1244 = vsel %vm1230, %v896, 0
        %v1247 = vsel %vm1230, %v899, 0
        %v1250 = vsel %vm1230, %v902, 0
        %v1253 = vsel %vm1230, %v905, 0
        %v1256 = vsel %vm1230, %v908, 0
        %v1259 = vsel %vm1230, %v911, 0
        %v1262 = vsel %vm1230, %v914, 0
        %v1265 = vsel %vm1230, %v917, 0
        %v1268 = vsel %vm1230, %v920, 0
        %v1271 = vsel %vm1230, %v923, 0
        %v1274 = vsel %vm1230, %v926, 0
        %v1277 = vsel %vm1230, %v929, 0
        %v1280 = vsel %vm1230, %v932, 0
        %v1283 = vsel %vm1230, %v935, 0
        %v1286 = vsel %vm1230, %v938, 0
        %v1289 = vsel %vm1230, %v941, 0
        %v1292 = vsel %vm1230, %v944, 0
        %v1295 = vsel %vm1230, %v947, 0
        %v1298 = vsel %vm1230, %v950, 0
        %v1301 = vsel %vm1230, %v953, 0
        %v1304 = vsel %vm1230, %v956, 0
        %v1307 = vsel %vm1230, %v959, 0
        %v1310 = vsel %vm1230, %v962, 0
        %v1313 = vsel %vm1230, %v965, 0
        %v1316 = vsel %vm1230, %v968, 0
        %v1319 = vsel %vm1230, %v971, 0
        %v1322 = vsel %vm1230, %v974, 0
        %v1325 = vsel %vm1230, %v977, 0
        %v1328 = vsel %vm1230, %v980, 0
        %v1331 = vsel %vm1230, %v983, 0
        %v1334 = vsel %vm1230, %v986, 0
        %v1337 = vsel %vm1230, %v989, 0
        %v1340 = vsel %vm1230, %v992, 0
        %v1343 = vsel %vm1230, %v995, 0
        %v1346 = vsel %vm1230, %v998, 0
        %v1349 = vsel %vm1230, %v1001, 0
        %v1352 = vsel %vm1230, %v1004, 0
        %v1355 = vsel %vm1230, %v1007, 0
        %v1358 = vsel %vm1230, %v1010, 0
        %v1361 = vsel %vm1230, %v1013, 0
        %v1364 = vsel %vm1230, %v1016, 0
        %v1367 = vsel %vm1230, %v1019, 0
        %v1370 = vsel %vm1230, %v1022, 0
        %v1373 = vsel %vm1230, %v1025, 0
        %1375 = vmatpush.bf16.msra.mxu0 %v1201
        %1376 = vmatpush.bf16.msra.mxu0 %v1200
        %1377 = vmatpush.bf16.msra.mxu0 %v1199
        %1378 = vmatpush.bf16.msra.mxu0 %v1198
        %1379 = vmatpush.bf16.msra.mxu0 %v1197
        %1380 = vmatpush.bf16.msra.mxu0 %v1196
        %1381 = vmatpush.bf16.msra.mxu0 %v1195
        %1382 = vmatpush.bf16.msra.mxu0 %v1194
        %1383 = vmatmul.bf16.gmra.mxu0 %v882
        %v1384 = vpop.f32.mrf.mxu0
        %v1385 = vadd.f32 0.0, %v1384
        %v1386 = vpop.f32.mrf.mxu0
        %v1387 = vadd.f32 0.0, %v1386
        %1388 = vmatmul.bf16.gmra.mxu0 %v885
        %v1389 = vpop.f32.mrf.mxu0
        %v1390 = vadd.f32 0.0, %v1389
        %v1391 = vpop.f32.mrf.mxu0
        %v1392 = vadd.f32 0.0, %v1391
        %1393 = vmatmul.bf16.gmra.mxu0 %v888
        %v1394 = vpop.f32.mrf.mxu0
        %v1395 = vadd.f32 0.0, %v1394
        %v1396 = vpop.f32.mrf.mxu0
        %v1397 = vadd.f32 0.0, %v1396
        %1398 = vmatmul.bf16.gmra.mxu0 %v891
        %v1399 = vpop.f32.mrf.mxu0
        %v1400 = vadd.f32 0.0, %v1399
        %v1401 = vpop.f32.mrf.mxu0
        %v1402 = vadd.f32 0.0, %v1401
        %1403 = vmatmul.bf16.gmra.mxu0 %v894
        %v1404 = vpop.f32.mrf.mxu0
        %v1405 = vadd.f32 0.0, %v1404
        %v1406 = vpop.f32.mrf.mxu0
        %v1407 = vadd.f32 0.0, %v1406
        %1408 = vmatmul.bf16.gmra.mxu0 %v897
        %v1409 = vpop.f32.mrf.mxu0
        %v1410 = vadd.f32 0.0, %v1409
        %v1411 = vpop.f32.mrf.mxu0
        %v1412 = vadd.f32 0.0, %v1411
        %1413 = vmatmul.bf16.gmra.mxu0 %v900
        %v1414 = vpop.f32.mrf.mxu0
        %v1415 = vadd.f32 0.0, %v1414
        %v1416 = vpop.f32.mrf.mxu0
        %v1417 = vadd.f32 0.0, %v1416
        %1418 = vmatmul.bf16.gmra.mxu0 %v903
        %v1419 = vpop.f32.mrf.mxu0
        %v1420 = vadd.f32 0.0, %v1419
        %v1421 = vpop.f32.mrf.mxu0
        %v1422 = vadd.f32 0.0, %v1421
        %1423 = vmatmul.bf16.gmra.mxu0 %v906
        %v1424 = vpop.f32.mrf.mxu0
        %v1425 = vadd.f32 0.0, %v1424
        %v1426 = vpop.f32.mrf.mxu0
        %v1427 = vadd.f32 0.0, %v1426
        %1428 = vmatmul.bf16.gmra.mxu0 %v909
        %v1429 = vpop.f32.mrf.mxu0
        %v1430 = vadd.f32 0.0, %v1429
        %v1431 = vpop.f32.mrf.mxu0
        %v1432 = vadd.f32 0.0, %v1431
        %1433 = vmatmul.bf16.gmra.mxu0 %v912
        %v1434 = vpop.f32.mrf.mxu0
        %v1435 = vadd.f32 0.0, %v1434
        %v1436 = vpop.f32.mrf.mxu0
        %v1437 = vadd.f32 0.0, %v1436
        %1438 = vmatmul.bf16.gmra.mxu0 %v915
        %v1439 = vpop.f32.mrf.mxu0
        %v1440 = vadd.f32 0.0, %v1439
        %v1441 = vpop.f32.mrf.mxu0
        %v1442 = vadd.f32 0.0, %v1441
        %1443 = vmatmul.bf16.gmra.mxu0 %v918
        %v1444 = vpop.f32.mrf.mxu0
        %v1445 = vadd.f32 0.0, %v1444
        %v1446 = vpop.f32.mrf.mxu0
        %v1447 = vadd.f32 0.0, %v1446
        %1448 = vmatmul.bf16.gmra.mxu0 %v921
        %v1449 = vpop.f32.mrf.mxu0
        %v1450 = vadd.f32 0.0, %v1449
        %v1451 = vpop.f32.mrf.mxu0
        %v1452 = vadd.f32 0.0, %v1451
        %1453 = vmatmul.bf16.gmra.mxu0 %v924
        %v1454 = vpop.f32.mrf.mxu0
        %v1455 = vadd.f32 0.0, %v1454
        %v1456 = vpop.f32.mrf.mxu0
        %v1457 = vadd.f32 0.0, %v1456
        %1458 = vmatmul.bf16.gmra.mxu0 %v927
        %v1459 = vpop.f32.mrf.mxu0
        %v1460 = vadd.f32 0.0, %v1459
        %v1461 = vpop.f32.mrf.mxu0
        %v1462 = vadd.f32 0.0, %v1461
        %1463 = vmatmul.bf16.gmra.mxu0 %v930
        %v1464 = vpop.f32.mrf.mxu0
        %v1465 = vadd.f32 0.0, %v1464
        %v1466 = vpop.f32.mrf.mxu0
        %v1467 = vadd.f32 0.0, %v1466
        %1468 = vmatmul.bf16.gmra.mxu0 %v933
        %v1469 = vpop.f32.mrf.mxu0
        %v1470 = vadd.f32 0.0, %v1469
        %v1471 = vpop.f32.mrf.mxu0
        %v1472 = vadd.f32 0.0, %v1471
        %1473 = vmatmul.bf16.gmra.mxu0 %v936
        %v1474 = vpop.f32.mrf.mxu0
        %v1475 = vadd.f32 0.0, %v1474
        %v1476 = vpop.f32.mrf.mxu0
        %v1477 = vadd.f32 0.0, %v1476
        %1478 = vmatmul.bf16.gmra.mxu0 %v939
        %v1479 = vpop.f32.mrf.mxu0
        %v1480 = vadd.f32 0.0, %v1479
        %v1481 = vpop.f32.mrf.mxu0
        %v1482 = vadd.f32 0.0, %v1481
        %1483 = vmatmul.bf16.gmra.mxu0 %v942
        %v1484 = vpop.f32.mrf.mxu0
        %v1485 = vadd.f32 0.0, %v1484
        %v1486 = vpop.f32.mrf.mxu0
        %v1487 = vadd.f32 0.0, %v1486
        %1488 = vmatmul.bf16.gmra.mxu0 %v945
        %v1489 = vpop.f32.mrf.mxu0
        %v1490 = vadd.f32 0.0, %v1489
        %v1491 = vpop.f32.mrf.mxu0
        %v1492 = vadd.f32 0.0, %v1491
        %1493 = vmatmul.bf16.gmra.mxu0 %v948
        %v1494 = vpop.f32.mrf.mxu0
        %v1495 = vadd.f32 0.0, %v1494
        %v1496 = vpop.f32.mrf.mxu0
        %v1497 = vadd.f32 0.0, %v1496
        %1498 = vmatmul.bf16.gmra.mxu0 %v951
        %v1499 = vpop.f32.mrf.mxu0
        %v1500 = vadd.f32 0.0, %v1499
        %v1501 = vpop.f32.mrf.mxu0
        %v1502 = vadd.f32 0.0, %v1501
        %1503 = vmatmul.bf16.gmra.mxu0 %v954
        %v1504 = vpop.f32.mrf.mxu0
        %v1505 = vadd.f32 0.0, %v1504
        %v1506 = vpop.f32.mrf.mxu0
        %v1507 = vadd.f32 0.0, %v1506
        %1508 = vmatmul.bf16.gmra.mxu0 %v957
        %v1509 = vpop.f32.mrf.mxu0
        %v1510 = vadd.f32 0.0, %v1509
        %v1511 = vpop.f32.mrf.mxu0
        %v1512 = vadd.f32 0.0, %v1511
        %1513 = vmatmul.bf16.gmra.mxu0 %v960
        %v1514 = vpop.f32.mrf.mxu0
        %v1515 = vadd.f32 0.0, %v1514
        %v1516 = vpop.f32.mrf.mxu0
        %v1517 = vadd.f32 0.0, %v1516
        %1518 = vmatmul.bf16.gmra.mxu0 %v963
        %v1519 = vpop.f32.mrf.mxu0
        %v1520 = vadd.f32 0.0, %v1519
        %v1521 = vpop.f32.mrf.mxu0
        %v1522 = vadd.f32 0.0, %v1521
        %1523 = vmatmul.bf16.gmra.mxu0 %v966
        %v1524 = vpop.f32.mrf.mxu0
        %v1525 = vadd.f32 0.0, %v1524
        %v1526 = vpop.f32.mrf.mxu0
        %v1527 = vadd.f32 0.0, %v1526
        %1528 = vmatmul.bf16.gmra.mxu0 %v969
        %v1529 = vpop.f32.mrf.mxu0
        %v1530 = vadd.f32 0.0, %v1529
        %v1531 = vpop.f32.mrf.mxu0
        %v1532 = vadd.f32 0.0, %v1531
        %1533 = vmatmul.bf16.gmra.mxu0 %v972
        %v1534 = vpop.f32.mrf.mxu0
        %v1535 = vadd.f32 0.0, %v1534
        %v1536 = vpop.f32.mrf.mxu0
        %v1537 = vadd.f32 0.0, %v1536
        %1538 = vmatmul.bf16.gmra.mxu0 %v975
        %v1539 = vpop.f32.mrf.mxu0
        %v1540 = vadd.f32 0.0, %v1539
        %v1541 = vpop.f32.mrf.mxu0
        %v1542 = vadd.f32 0.0, %v1541
        %1543 = vmatmul.bf16.gmra.mxu0 %v978
        %v1544 = vpop.f32.mrf.mxu0
        %v1545 = vadd.f32 0.0, %v1544
        %v1546 = vpop.f32.mrf.mxu0
        %v1547 = vadd.f32 0.0, %v1546
        %1548 = vmatmul.bf16.gmra.mxu0 %v981
        %v1549 = vpop.f32.mrf.mxu0
        %v1550 = vadd.f32 0.0, %v1549
        %v1551 = vpop.f32.mrf.mxu0
        %v1552 = vadd.f32 0.0, %v1551
        %1553 = vmatmul.bf16.gmra.mxu0 %v984
        %v1554 = vpop.f32.mrf.mxu0
        %v1555 = vadd.f32 0.0, %v1554
        %v1556 = vpop.f32.mrf.mxu0
        %v1557 = vadd.f32 0.0, %v1556
        %1558 = vmatmul.bf16.gmra.mxu0 %v987
        %v1559 = vpop.f32.mrf.mxu0
        %v1560 = vadd.f32 0.0, %v1559
        %v1561 = vpop.f32.mrf.mxu0
        %v1562 = vadd.f32 0.0, %v1561
        %1563 = vmatmul.bf16.gmra.mxu0 %v990
        %v1564 = vpop.f32.mrf.mxu0
        %v1565 = vadd.f32 0.0, %v1564
        %v1566 = vpop.f32.mrf.mxu0
        %v1567 = vadd.f32 0.0, %v1566
        %1568 = vmatmul.bf16.gmra.mxu0 %v993
        %v1569 = vpop.f32.mrf.mxu0
        %v1570 = vadd.f32 0.0, %v1569
        %v1571 = vpop.f32.mrf.mxu0
        %v1572 = vadd.f32 0.0, %v1571
        %1573 = vmatmul.bf16.gmra.mxu0 %v996
        %v1574 = vpop.f32.mrf.mxu0
        %v1575 = vadd.f32 0.0, %v1574
        %v1576 = vpop.f32.mrf.mxu0
        %v1577 = vadd.f32 0.0, %v1576
        %1578 = vmatmul.bf16.gmra.mxu0 %v999
        %v1579 = vpop.f32.mrf.mxu0
        %v1580 = vadd.f32 0.0, %v1579
        %v1581 = vpop.f32.mrf.mxu0
        %v1582 = vadd.f32 0.0, %v1581
        %1583 = vmatmul.bf16.gmra.mxu0 %v1002
        %v1584 = vpop.f32.mrf.mxu0
        %v1585 = vadd.f32 0.0, %v1584
        %v1586 = vpop.f32.mrf.mxu0
        %v1587 = vadd.f32 0.0, %v1586
        %1588 = vmatmul.bf16.gmra.mxu0 %v1005
        %v1589 = vpop.f32.mrf.mxu0
        %v1590 = vadd.f32 0.0, %v1589
        %v1591 = vpop.f32.mrf.mxu0
        %v1592 = vadd.f32 0.0, %v1591
        %1593 = vmatmul.bf16.gmra.mxu0 %v1008
        %v1594 = vpop.f32.mrf.mxu0
        %v1595 = vadd.f32 0.0, %v1594
        %v1596 = vpop.f32.mrf.mxu0
        %v1597 = vadd.f32 0.0, %v1596
        %1598 = vmatmul.bf16.gmra.mxu0 %v1011
        %v1599 = vpop.f32.mrf.mxu0
        %v1600 = vadd.f32 0.0, %v1599
        %v1601 = vpop.f32.mrf.mxu0
        %v1602 = vadd.f32 0.0, %v1601
        %1603 = vmatmul.bf16.gmra.mxu0 %v1014
        %v1604 = vpop.f32.mrf.mxu0
        %v1605 = vadd.f32 0.0, %v1604
        %v1606 = vpop.f32.mrf.mxu0
        %v1607 = vadd.f32 0.0, %v1606
        %1608 = vmatmul.bf16.gmra.mxu0 %v1017
        %v1609 = vpop.f32.mrf.mxu0
        %v1610 = vadd.f32 0.0, %v1609
        %v1611 = vpop.f32.mrf.mxu0
        %v1612 = vadd.f32 0.0, %v1611
        %1613 = vmatmul.bf16.gmra.mxu0 %v1020
        %v1614 = vpop.f32.mrf.mxu0
        %v1615 = vadd.f32 0.0, %v1614
        %v1616 = vpop.f32.mrf.mxu0
        %v1617 = vadd.f32 0.0, %v1616
        %1618 = vmatmul.bf16.gmra.mxu0 %v1023
        %v1619 = vpop.f32.mrf.mxu0
        %v1620 = vadd.f32 0.0, %v1619
        %v1621 = vpop.f32.mrf.mxu0
        %v1622 = vadd.f32 0.0, %v1621
        %1623 = vdwg.mxu0
        %1624 = vmatpush.bf16.msra.mxu0 %v1209
        %1625 = vmatpush.bf16.msra.mxu0 %v1208
        %1626 = vmatpush.bf16.msra.mxu0 %v1207
        %1627 = vmatpush.bf16.msra.mxu0 %v1206
        %1628 = vmatpush.bf16.msra.mxu0 %v1205
        %1629 = vmatpush.bf16.msra.mxu0 %v1204
        %1630 = vmatpush.bf16.msra.mxu0 %v1203
        %1631 = vmatpush.bf16.msra.mxu0 %v1202
        %1632 = vmatmul.bf16.gmra.mxu0 %v883
        %v1633 = vpop.f32.mrf.mxu0
        %v1634 = vadd.f32 %v1385, %v1633
        %v1635 = vpop.f32.mrf.mxu0
        %v1636 = vadd.f32 %v1387, %v1635
        %1637 = vmatmul.bf16.gmra.mxu0 %v886
        %v1638 = vpop.f32.mrf.mxu0
        %v1639 = vadd.f32 %v1390, %v1638
        %v1640 = vpop.f32.mrf.mxu0
        %v1641 = vadd.f32 %v1392, %v1640
        %1642 = vmatmul.bf16.gmra.mxu0 %v889
        %v1643 = vpop.f32.mrf.mxu0
        %v1644 = vadd.f32 %v1395, %v1643
        %v1645 = vpop.f32.mrf.mxu0
        %v1646 = vadd.f32 %v1397, %v1645
        %1647 = vmatmul.bf16.gmra.mxu0 %v892
        %v1648 = vpop.f32.mrf.mxu0
        %v1649 = vadd.f32 %v1400, %v1648
        %v1650 = vpop.f32.mrf.mxu0
        %v1651 = vadd.f32 %v1402, %v1650
        %1652 = vmatmul.bf16.gmra.mxu0 %v895
        %v1653 = vpop.f32.mrf.mxu0
        %v1654 = vadd.f32 %v1405, %v1653
        %v1655 = vpop.f32.mrf.mxu0
        %v1656 = vadd.f32 %v1407, %v1655
        %1657 = vmatmul.bf16.gmra.mxu0 %v898
        %v1658 = vpop.f32.mrf.mxu0
        %v1659 = vadd.f32 %v1410, %v1658
        %v1660 = vpop.f32.mrf.mxu0
        %v1661 = vadd.f32 %v1412, %v1660
        %1662 = vmatmul.bf16.gmra.mxu0 %v901
        %v1663 = vpop.f32.mrf.mxu0
        %v1664 = vadd.f32 %v1415, %v1663
        %v1665 = vpop.f32.mrf.mxu0
        %v1666 = vadd.f32 %v1417, %v1665
        %1667 = vmatmul.bf16.gmra.mxu0 %v904
        %v1668 = vpop.f32.mrf.mxu0
        %v1669 = vadd.f32 %v1420, %v1668
        %v1670 = vpop.f32.mrf.mxu0
        %v1671 = vadd.f32 %v1422, %v1670
        %1672 = vmatmul.bf16.gmra.mxu0 %v907
        %v1673 = vpop.f32.mrf.mxu0
        %v1674 = vadd.f32 %v1425, %v1673
        %v1675 = vpop.f32.mrf.mxu0
        %v1676 = vadd.f32 %v1427, %v1675
        %1677 = vmatmul.bf16.gmra.mxu0 %v910
        %v1678 = vpop.f32.mrf.mxu0
        %v1679 = vadd.f32 %v1430, %v1678
        %v1680 = vpop.f32.mrf.mxu0
        %v1681 = vadd.f32 %v1432, %v1680
        %1682 = vmatmul.bf16.gmra.mxu0 %v913
        %v1683 = vpop.f32.mrf.mxu0
        %v1684 = vadd.f32 %v1435, %v1683
        %v1685 = vpop.f32.mrf.mxu0
        %v1686 = vadd.f32 %v1437, %v1685
        %1687 = vmatmul.bf16.gmra.mxu0 %v916
        %v1688 = vpop.f32.mrf.mxu0
        %v1689 = vadd.f32 %v1440, %v1688
        %v1690 = vpop.f32.mrf.mxu0
        %v1691 = vadd.f32 %v1442, %v1690
        %1692 = vmatmul.bf16.gmra.mxu0 %v919
        %v1693 = vpop.f32.mrf.mxu0
        %v1694 = vadd.f32 %v1445, %v1693
        %v1695 = vpop.f32.mrf.mxu0
        %v1696 = vadd.f32 %v1447, %v1695
        %1697 = vmatmul.bf16.gmra.mxu0 %v922
        %v1698 = vpop.f32.mrf.mxu0
        %v1699 = vadd.f32 %v1450, %v1698
        %v1700 = vpop.f32.mrf.mxu0
        %v1701 = vadd.f32 %v1452, %v1700
        %1702 = vmatmul.bf16.gmra.mxu0 %v925
        %v1703 = vpop.f32.mrf.mxu0
        %v1704 = vadd.f32 %v1455, %v1703
        %v1705 = vpop.f32.mrf.mxu0
        %v1706 = vadd.f32 %v1457, %v1705
        %1707 = vmatmul.bf16.gmra.mxu0 %v928
        %v1708 = vpop.f32.mrf.mxu0
        %v1709 = vadd.f32 %v1460, %v1708
        %v1710 = vpop.f32.mrf.mxu0
        %v1711 = vadd.f32 %v1462, %v1710
        %1712 = vmatmul.bf16.gmra.mxu0 %v931
        %v1713 = vpop.f32.mrf.mxu0
        %v1714 = vadd.f32 %v1465, %v1713
        %v1715 = vpop.f32.mrf.mxu0
        %v1716 = vadd.f32 %v1467, %v1715
        %1717 = vmatmul.bf16.gmra.mxu0 %v934
        %v1718 = vpop.f32.mrf.mxu0
        %v1719 = vadd.f32 %v1470, %v1718
        %v1720 = vpop.f32.mrf.mxu0
        %v1721 = vadd.f32 %v1472, %v1720
        %1722 = vmatmul.bf16.gmra.mxu0 %v937
        %v1723 = vpop.f32.mrf.mxu0
        %v1724 = vadd.f32 %v1475, %v1723
        %v1725 = vpop.f32.mrf.mxu0
        %v1726 = vadd.f32 %v1477, %v1725
        %1727 = vmatmul.bf16.gmra.mxu0 %v940
        %v1728 = vpop.f32.mrf.mxu0
        %v1729 = vadd.f32 %v1480, %v1728
        %v1730 = vpop.f32.mrf.mxu0
        %v1731 = vadd.f32 %v1482, %v1730
        %1732 = vmatmul.bf16.gmra.mxu0 %v943
        %v1733 = vpop.f32.mrf.mxu0
        %v1734 = vadd.f32 %v1485, %v1733
        %v1735 = vpop.f32.mrf.mxu0
        %v1736 = vadd.f32 %v1487, %v1735
        %1737 = vmatmul.bf16.gmra.mxu0 %v946
        %v1738 = vpop.f32.mrf.mxu0
        %v1739 = vadd.f32 %v1490, %v1738
        %v1740 = vpop.f32.mrf.mxu0
        %v1741 = vadd.f32 %v1492, %v1740
        %1742 = vmatmul.bf16.gmra.mxu0 %v949
        %v1743 = vpop.f32.mrf.mxu0
        %v1744 = vadd.f32 %v1495, %v1743
        %v1745 = vpop.f32.mrf.mxu0
        %v1746 = vadd.f32 %v1497, %v1745
        %1747 = vmatmul.bf16.gmra.mxu0 %v952
        %v1748 = vpop.f32.mrf.mxu0
        %v1749 = vadd.f32 %v1500, %v1748
        %v1750 = vpop.f32.mrf.mxu0
        %v1751 = vadd.f32 %v1502, %v1750
        %1752 = vmatmul.bf16.gmra.mxu0 %v955
        %v1753 = vpop.f32.mrf.mxu0
        %v1754 = vadd.f32 %v1505, %v1753
        %v1755 = vpop.f32.mrf.mxu0
        %v1756 = vadd.f32 %v1507, %v1755
        %1757 = vmatmul.bf16.gmra.mxu0 %v958
        %v1758 = vpop.f32.mrf.mxu0
        %v1759 = vadd.f32 %v1510, %v1758
        %v1760 = vpop.f32.mrf.mxu0
        %v1761 = vadd.f32 %v1512, %v1760
        %1762 = vmatmul.bf16.gmra.mxu0 %v961
        %v1763 = vpop.f32.mrf.mxu0
        %v1764 = vadd.f32 %v1515, %v1763
        %v1765 = vpop.f32.mrf.mxu0
        %v1766 = vadd.f32 %v1517, %v1765
        %1767 = vmatmul.bf16.gmra.mxu0 %v964
        %v1768 = vpop.f32.mrf.mxu0
        %v1769 = vadd.f32 %v1520, %v1768
        %v1770 = vpop.f32.mrf.mxu0
        %v1771 = vadd.f32 %v1522, %v1770
        %1772 = vmatmul.bf16.gmra.mxu0 %v967
        %v1773 = vpop.f32.mrf.mxu0
        %v1774 = vadd.f32 %v1525, %v1773
        %v1775 = vpop.f32.mrf.mxu0
        %v1776 = vadd.f32 %v1527, %v1775
        %1777 = vmatmul.bf16.gmra.mxu0 %v970
        %v1778 = vpop.f32.mrf.mxu0
        %v1779 = vadd.f32 %v1530, %v1778
        %v1780 = vpop.f32.mrf.mxu0
        %v1781 = vadd.f32 %v1532, %v1780
        %1782 = vmatmul.bf16.gmra.mxu0 %v973
        %v1783 = vpop.f32.mrf.mxu0
        %v1784 = vadd.f32 %v1535, %v1783
        %v1785 = vpop.f32.mrf.mxu0
        %v1786 = vadd.f32 %v1537, %v1785
        %1787 = vmatmul.bf16.gmra.mxu0 %v976
        %v1788 = vpop.f32.mrf.mxu0
        %v1789 = vadd.f32 %v1540, %v1788
        %v1790 = vpop.f32.mrf.mxu0
        %v1791 = vadd.f32 %v1542, %v1790
        %1792 = vmatmul.bf16.gmra.mxu0 %v979
        %v1793 = vpop.f32.mrf.mxu0
        %v1794 = vadd.f32 %v1545, %v1793
        %v1795 = vpop.f32.mrf.mxu0
        %v1796 = vadd.f32 %v1547, %v1795
        %1797 = vmatmul.bf16.gmra.mxu0 %v982
        %v1798 = vpop.f32.mrf.mxu0
        %v1799 = vadd.f32 %v1550, %v1798
        %v1800 = vpop.f32.mrf.mxu0
        %v1801 = vadd.f32 %v1552, %v1800
        %1802 = vmatmul.bf16.gmra.mxu0 %v985
        %v1803 = vpop.f32.mrf.mxu0
        %v1804 = vadd.f32 %v1555, %v1803
        %v1805 = vpop.f32.mrf.mxu0
        %v1806 = vadd.f32 %v1557, %v1805
        %1807 = vmatmul.bf16.gmra.mxu0 %v988
        %v1808 = vpop.f32.mrf.mxu0
        %v1809 = vadd.f32 %v1560, %v1808
        %v1810 = vpop.f32.mrf.mxu0
        %v1811 = vadd.f32 %v1562, %v1810
        %1812 = vmatmul.bf16.gmra.mxu0 %v991
        %v1813 = vpop.f32.mrf.mxu0
        %v1814 = vadd.f32 %v1565, %v1813
        %v1815 = vpop.f32.mrf.mxu0
        %v1816 = vadd.f32 %v1567, %v1815
        %1817 = vmatmul.bf16.gmra.mxu0 %v994
        %v1818 = vpop.f32.mrf.mxu0
        %v1819 = vadd.f32 %v1570, %v1818
        %v1820 = vpop.f32.mrf.mxu0
        %v1821 = vadd.f32 %v1572, %v1820
        %1822 = vmatmul.bf16.gmra.mxu0 %v997
        %v1823 = vpop.f32.mrf.mxu0
        %v1824 = vadd.f32 %v1575, %v1823
        %v1825 = vpop.f32.mrf.mxu0
        %v1826 = vadd.f32 %v1577, %v1825
        %1827 = vmatmul.bf16.gmra.mxu0 %v1000
        %v1828 = vpop.f32.mrf.mxu0
        %v1829 = vadd.f32 %v1580, %v1828
        %v1830 = vpop.f32.mrf.mxu0
        %v1831 = vadd.f32 %v1582, %v1830
        %1832 = vmatmul.bf16.gmra.mxu0 %v1003
        %v1833 = vpop.f32.mrf.mxu0
        %v1834 = vadd.f32 %v1585, %v1833
        %v1835 = vpop.f32.mrf.mxu0
        %v1836 = vadd.f32 %v1587, %v1835
        %1837 = vmatmul.bf16.gmra.mxu0 %v1006
        %v1838 = vpop.f32.mrf.mxu0
        %v1839 = vadd.f32 %v1590, %v1838
        %v1840 = vpop.f32.mrf.mxu0
        %v1841 = vadd.f32 %v1592, %v1840
        %1842 = vmatmul.bf16.gmra.mxu0 %v1009
        %v1843 = vpop.f32.mrf.mxu0
        %v1844 = vadd.f32 %v1595, %v1843
        %v1845 = vpop.f32.mrf.mxu0
        %v1846 = vadd.f32 %v1597, %v1845
        %1847 = vmatmul.bf16.gmra.mxu0 %v1012
        %v1848 = vpop.f32.mrf.mxu0
        %v1849 = vadd.f32 %v1600, %v1848
        %v1850 = vpop.f32.mrf.mxu0
        %v1851 = vadd.f32 %v1602, %v1850
        %1852 = vmatmul.bf16.gmra.mxu0 %v1015
        %v1853 = vpop.f32.mrf.mxu0
        %v1854 = vadd.f32 %v1605, %v1853
        %v1855 = vpop.f32.mrf.mxu0
        %v1856 = vadd.f32 %v1607, %v1855
        %1857 = vmatmul.bf16.gmra.mxu0 %v1018
        %v1858 = vpop.f32.mrf.mxu0
        %v1859 = vadd.f32 %v1610, %v1858
        %v1860 = vpop.f32.mrf.mxu0
        %v1861 = vadd.f32 %v1612, %v1860
        %1862 = vmatmul.bf16.gmra.mxu0 %v1021
        %v1863 = vpop.f32.mrf.mxu0
        %v1864 = vadd.f32 %v1615, %v1863
        %v1865 = vpop.f32.mrf.mxu0
        %v1866 = vadd.f32 %v1617, %v1865
        %1867 = vmatmul.bf16.gmra.mxu0 %v1024
        %v1868 = vpop.f32.mrf.mxu0
        %v1869 = vadd.f32 %v1620, %v1868
        %v1870 = vpop.f32.mrf.mxu0
        %v1871 = vadd.f32 %v1622, %v1870
        %1872 = vdwg.mxu0
        %1873 = vmatpush.bf16.msra.mxu0 0
        %1874 = vmatpush.bf16.msra.mxu0 0
        %1875 = vmatpush.bf16.msra.mxu0 0
        %1876 = vmatpush.bf16.msra.mxu0 0
        %1877 = vmatpush.bf16.msra.mxu0 0
        %1878 = vmatpush.bf16.msra.mxu0 0
        %1879 = vmatpush.bf16.msra.mxu0 %v1211
        %1880 = vmatpush.bf16.msra.mxu0 %v1210
        %1881 = vmatmul.bf16.gmra.mxu0 %v1232
        %v1882 = vpop.f32.mrf.mxu0
        %v1883 = vadd.f32 %v1634, %v1882
        %v1884 = vpop.f32.mrf.mxu0
        %v1885 = vadd.f32 %v1636, %v1884
        %1886 = vmatmul.bf16.gmra.mxu0 %v1235
        %v1887 = vpop.f32.mrf.mxu0
        %v1888 = vadd.f32 %v1639, %v1887
        %v1889 = vpop.f32.mrf.mxu0
        %v1890 = vadd.f32 %v1641, %v1889
        %1891 = vmatmul.bf16.gmra.mxu0 %v1238
        %v1892 = vpop.f32.mrf.mxu0
        %v1893 = vadd.f32 %v1644, %v1892
        %v1894 = vpop.f32.mrf.mxu0
        %v1895 = vadd.f32 %v1646, %v1894
        %1896 = vmatmul.bf16.gmra.mxu0 %v1241
        %v1897 = vpop.f32.mrf.mxu0
        %v1898 = vadd.f32 %v1649, %v1897
        %v1899 = vpop.f32.mrf.mxu0
        %v1900 = vadd.f32 %v1651, %v1899
        %1901 = vmatmul.bf16.gmra.mxu0 %v1244
        %v1902 = vpop.f32.mrf.mxu0
        %v1903 = vadd.f32 %v1654, %v1902
        %v1904 = vpop.f32.mrf.mxu0
        %v1905 = vadd.f32 %v1656, %v1904
        %1906 = vmatmul.bf16.gmra.mxu0 %v1247
        %v1907 = vpop.f32.mrf.mxu0
        %v1908 = vadd.f32 %v1659, %v1907
        %v1909 = vpop.f32.mrf.mxu0
        %v1910 = vadd.f32 %v1661, %v1909
        %1911 = vmatmul.bf16.gmra.mxu0 %v1250
        %v1912 = vpop.f32.mrf.mxu0
        %v1913 = vadd.f32 %v1664, %v1912
        %v1914 = vpop.f32.mrf.mxu0
        %v1915 = vadd.f32 %v1666, %v1914
        %1916 = vmatmul.bf16.gmra.mxu0 %v1253
        %v1917 = vpop.f32.mrf.mxu0
        %v1918 = vadd.f32 %v1669, %v1917
        %v1919 = vpop.f32.mrf.mxu0
        %v1920 = vadd.f32 %v1671, %v1919
        %1921 = vmatmul.bf16.gmra.mxu0 %v1256
        %v1922 = vpop.f32.mrf.mxu0
        %v1923 = vadd.f32 %v1674, %v1922
        %v1924 = vpop.f32.mrf.mxu0
        %v1925 = vadd.f32 %v1676, %v1924
        %1926 = vmatmul.bf16.gmra.mxu0 %v1259
        %v1927 = vpop.f32.mrf.mxu0
        %v1928 = vadd.f32 %v1679, %v1927
        %v1929 = vpop.f32.mrf.mxu0
        %v1930 = vadd.f32 %v1681, %v1929
        %1931 = vmatmul.bf16.gmra.mxu0 %v1262
        %v1932 = vpop.f32.mrf.mxu0
        %v1933 = vadd.f32 %v1684, %v1932
        %v1934 = vpop.f32.mrf.mxu0
        %v1935 = vadd.f32 %v1686, %v1934
        %1936 = vmatmul.bf16.gmra.mxu0 %v1265
        %v1937 = vpop.f32.mrf.mxu0
        %v1938 = vadd.f32 %v1689, %v1937
        %v1939 = vpop.f32.mrf.mxu0
        %v1940 = vadd.f32 %v1691, %v1939
        %1941 = vmatmul.bf16.gmra.mxu0 %v1268
        %v1942 = vpop.f32.mrf.mxu0
        %v1943 = vadd.f32 %v1694, %v1942
        %v1944 = vpop.f32.mrf.mxu0
        %v1945 = vadd.f32 %v1696, %v1944
        %1946 = vmatmul.bf16.gmra.mxu0 %v1271
        %v1947 = vpop.f32.mrf.mxu0
        %v1948 = vadd.f32 %v1699, %v1947
        %v1949 = vpop.f32.mrf.mxu0
        %v1950 = vadd.f32 %v1701, %v1949
        %1951 = vmatmul.bf16.gmra.mxu0 %v1274
        %v1952 = vpop.f32.mrf.mxu0
        %v1953 = vadd.f32 %v1704, %v1952
        %v1954 = vpop.f32.mrf.mxu0
        %v1955 = vadd.f32 %v1706, %v1954
        %1956 = vmatmul.bf16.gmra.mxu0 %v1277
        %v1957 = vpop.f32.mrf.mxu0
        %v1958 = vadd.f32 %v1709, %v1957
        %v1959 = vpop.f32.mrf.mxu0
        %v1960 = vadd.f32 %v1711, %v1959
        %1961 = vmatmul.bf16.gmra.mxu0 %v1280
        %v1962 = vpop.f32.mrf.mxu0
        %v1963 = vadd.f32 %v1714, %v1962
        %v1964 = vpop.f32.mrf.mxu0
        %v1965 = vadd.f32 %v1716, %v1964
        %1966 = vmatmul.bf16.gmra.mxu0 %v1283
        %v1967 = vpop.f32.mrf.mxu0
        %v1968 = vadd.f32 %v1719, %v1967
        %v1969 = vpop.f32.mrf.mxu0
        %v1970 = vadd.f32 %v1721, %v1969
        %1971 = vmatmul.bf16.gmra.mxu0 %v1286
        %v1972 = vpop.f32.mrf.mxu0
        %v1973 = vadd.f32 %v1724, %v1972
        %v1974 = vpop.f32.mrf.mxu0
        %v1975 = vadd.f32 %v1726, %v1974
        %1976 = vmatmul.bf16.gmra.mxu0 %v1289
        %v1977 = vpop.f32.mrf.mxu0
        %v1978 = vadd.f32 %v1729, %v1977
        %v1979 = vpop.f32.mrf.mxu0
        %v1980 = vadd.f32 %v1731, %v1979
        %1981 = vmatmul.bf16.gmra.mxu0 %v1292
        %v1982 = vpop.f32.mrf.mxu0
        %v1983 = vadd.f32 %v1734, %v1982
        %v1984 = vpop.f32.mrf.mxu0
        %v1985 = vadd.f32 %v1736, %v1984
        %1986 = vmatmul.bf16.gmra.mxu0 %v1295
        %v1987 = vpop.f32.mrf.mxu0
        %v1988 = vadd.f32 %v1739, %v1987
        %v1989 = vpop.f32.mrf.mxu0
        %v1990 = vadd.f32 %v1741, %v1989
        %1991 = vmatmul.bf16.gmra.mxu0 %v1298
        %v1992 = vpop.f32.mrf.mxu0
        %v1993 = vadd.f32 %v1744, %v1992
        %v1994 = vpop.f32.mrf.mxu0
        %v1995 = vadd.f32 %v1746, %v1994
        %1996 = vmatmul.bf16.gmra.mxu0 %v1301
        %v1997 = vpop.f32.mrf.mxu0
        %v1998 = vadd.f32 %v1749, %v1997
        %v1999 = vpop.f32.mrf.mxu0
        %v2000 = vadd.f32 %v1751, %v1999
        %2001 = vmatmul.bf16.gmra.mxu0 %v1304
        %v2002 = vpop.f32.mrf.mxu0
        %v2003 = vadd.f32 %v1754, %v2002
        %v2004 = vpop.f32.mrf.mxu0
        %v2005 = vadd.f32 %v1756, %v2004
        %2006 = vmatmul.bf16.gmra.mxu0 %v1307
        %v2007 = vpop.f32.mrf.mxu0
        %v2008 = vadd.f32 %v1759, %v2007
        %v2009 = vpop.f32.mrf.mxu0
        %v2010 = vadd.f32 %v1761, %v2009
        %2011 = vmatmul.bf16.gmra.mxu0 %v1310
        %v2012 = vpop.f32.mrf.mxu0
        %v2013 = vadd.f32 %v1764, %v2012
        %v2014 = vpop.f32.mrf.mxu0
        %v2015 = vadd.f32 %v1766, %v2014
        %2016 = vmatmul.bf16.gmra.mxu0 %v1313
        %v2017 = vpop.f32.mrf.mxu0
        %v2018 = vadd.f32 %v1769, %v2017
        %v2019 = vpop.f32.mrf.mxu0
        %v2020 = vadd.f32 %v1771, %v2019
        %2021 = vmatmul.bf16.gmra.mxu0 %v1316
        %v2022 = vpop.f32.mrf.mxu0
        %v2023 = vadd.f32 %v1774, %v2022
        %v2024 = vpop.f32.mrf.mxu0
        %v2025 = vadd.f32 %v1776, %v2024
        %2026 = vmatmul.bf16.gmra.mxu0 %v1319
        %v2027 = vpop.f32.mrf.mxu0
        %v2028 = vadd.f32 %v1779, %v2027
        %v2029 = vpop.f32.mrf.mxu0
        %v2030 = vadd.f32 %v1781, %v2029
        %2031 = vmatmul.bf16.gmra.mxu0 %v1322
        %v2032 = vpop.f32.mrf.mxu0
        %v2033 = vadd.f32 %v1784, %v2032
        %v2034 = vpop.f32.mrf.mxu0
        %v2035 = vadd.f32 %v1786, %v2034
        %2036 = vmatmul.bf16.gmra.mxu0 %v1325
        %v2037 = vpop.f32.mrf.mxu0
        %v2038 = vadd.f32 %v1789, %v2037
        %v2039 = vpop.f32.mrf.mxu0
        %v2040 = vadd.f32 %v1791, %v2039
        %2041 = vmatmul.bf16.gmra.mxu0 %v1328
        %v2042 = vpop.f32.mrf.mxu0
        %v2043 = vadd.f32 %v1794, %v2042
        %v2044 = vpop.f32.mrf.mxu0
        %v2045 = vadd.f32 %v1796, %v2044
        %2046 = vmatmul.bf16.gmra.mxu0 %v1331
        %v2047 = vpop.f32.mrf.mxu0
        %v2048 = vadd.f32 %v1799, %v2047
        %v2049 = vpop.f32.mrf.mxu0
        %v2050 = vadd.f32 %v1801, %v2049
        %2051 = vmatmul.bf16.gmra.mxu0 %v1334
        %v2052 = vpop.f32.mrf.mxu0
        %v2053 = vadd.f32 %v1804, %v2052
        %v2054 = vpop.f32.mrf.mxu0
        %v2055 = vadd.f32 %v1806, %v2054
        %2056 = vmatmul.bf16.gmra.mxu0 %v1337
        %v2057 = vpop.f32.mrf.mxu0
        %v2058 = vadd.f32 %v1809, %v2057
        %v2059 = vpop.f32.mrf.mxu0
        %v2060 = vadd.f32 %v1811, %v2059
        %2061 = vmatmul.bf16.gmra.mxu0 %v1340
        %v2062 = vpop.f32.mrf.mxu0
        %v2063 = vadd.f32 %v1814, %v2062
        %v2064 = vpop.f32.mrf.mxu0
        %v2065 = vadd.f32 %v1816, %v2064
        %2066 = vmatmul.bf16.gmra.mxu0 %v1343
        %v2067 = vpop.f32.mrf.mxu0
        %v2068 = vadd.f32 %v1819, %v2067
        %v2069 = vpop.f32.mrf.mxu0
        %v2070 = vadd.f32 %v1821, %v2069
        %2071 = vmatmul.bf16.gmra.mxu0 %v1346
        %v2072 = vpop.f32.mrf.mxu0
        %v2073 = vadd.f32 %v1824, %v2072
        %v2074 = vpop.f32.mrf.mxu0
        %v2075 = vadd.f32 %v1826, %v2074
        %2076 = vmatmul.bf16.gmra.mxu0 %v1349
        %v2077 = vpop.f32.mrf.mxu0
        %v2078 = vadd.f32 %v1829, %v2077
        %v2079 = vpop.f32.mrf.mxu0
        %v2080 = vadd.f32 %v1831, %v2079
        %2081 = vmatmul.bf16.gmra.mxu0 %v1352
        %v2082 = vpop.f32.mrf.mxu0
        %v2083 = vadd.f32 %v1834, %v2082
        %v2084 = vpop.f32.mrf.mxu0
        %v2085 = vadd.f32 %v1836, %v2084
        %2086 = vmatmul.bf16.gmra.mxu0 %v1355
        %v2087 = vpop.f32.mrf.mxu0
        %v2088 = vadd.f32 %v1839, %v2087
        %v2089 = vpop.f32.mrf.mxu0
        %v2090 = vadd.f32 %v1841, %v2089
        %2091 = vmatmul.bf16.gmra.mxu0 %v1358
        %v2092 = vpop.f32.mrf.mxu0
        %v2093 = vadd.f32 %v1844, %v2092
        %v2094 = vpop.f32.mrf.mxu0
        %v2095 = vadd.f32 %v1846, %v2094
        %2096 = vmatmul.bf16.gmra.mxu0 %v1361
        %v2097 = vpop.f32.mrf.mxu0
        %v2098 = vadd.f32 %v1849, %v2097
        %v2099 = vpop.f32.mrf.mxu0
        %v2100 = vadd.f32 %v1851, %v2099
        %2101 = vmatmul.bf16.gmra.mxu0 %v1364
        %v2102 = vpop.f32.mrf.mxu0
        %v2103 = vadd.f32 %v1854, %v2102
        %v2104 = vpop.f32.mrf.mxu0
        %v2105 = vadd.f32 %v1856, %v2104
        %2106 = vmatmul.bf16.gmra.mxu0 %v1367
        %v2107 = vpop.f32.mrf.mxu0
        %v2108 = vadd.f32 %v1859, %v2107
        %v2109 = vpop.f32.mrf.mxu0
        %v2110 = vadd.f32 %v1861, %v2109
        %2111 = vmatmul.bf16.gmra.mxu0 %v1370
        %v2112 = vpop.f32.mrf.mxu0
        %v2113 = vadd.f32 %v1864, %v2112
        %v2114 = vpop.f32.mrf.mxu0
        %v2115 = vadd.f32 %v1866, %v2114
        %2116 = vmatmul.bf16.gmra.mxu0 %v1373
        %v2117 = vpop.f32.mrf.mxu0
        %v2118 = vadd.f32 %v1869, %v2117
        %v2119 = vpop.f32.mrf.mxu0
        %v2120 = vadd.f32 %v1871, %v2119
        %2121 = vdwg.mxu0
        %vm2122 = vcmask 31744
        %2123 = vst.msk [vmem:[%s150] sm:$0xff] %vm2122, %v1883
        %2124 = vst.msk [vmem:[%s150 + $0x8] sm:$0xff] %vm2122, %v1885
        %2125 = vst.msk [vmem:[%s150 + $0x10] sm:$0xff] %vm2122, %v1888
        %2126 = vst.msk [vmem:[%s150 + $0x18] sm:$0xff] %vm2122, %v1890
        %2127 = vst.msk [vmem:[%s150 + $0x20] sm:$0xff] %vm2122, %v1893
        %2128 = vst.msk [vmem:[%s150 + $0x28] sm:$0xff] %vm2122, %v1895
        %2129 = vst.msk [vmem:[%s150 + $0x30] sm:$0xff] %vm2122, %v1898
        %2130 = vst.msk [vmem:[%s150 + $0x38] sm:$0xff] %vm2122, %v1900
        %2131 = vst.msk [vmem:[%s150 + $0x40] sm:$0xff] %vm2122, %v1903
        %2132 = vst.msk [vmem:[%s150 + $0x48] sm:$0xff] %vm2122, %v1905
        %2133 = vst.msk [vmem:[%s150 + $0x50] sm:$0xff] %vm2122, %v1908
        %2134 = vst.msk [vmem:[%s150 + $0x58] sm:$0xff] %vm2122, %v1910
        %2135 = vst.msk [vmem:[%s150 + $0x60] sm:$0xff] %vm2122, %v1913
        %2136 = vst.msk [vmem:[%s150 + $0x68] sm:$0xff] %vm2122, %v1915
        %2137 = vst.msk [vmem:[%s150 + $0x70] sm:$0xff] %vm2122, %v1918
        %2138 = vst.msk [vmem:[%s150 + $0x78] sm:$0xff] %vm2122, %v1920
        %2139 = vst.msk [vmem:[%s150 + $0x80] sm:$0xff] %vm2122, %v1923
        %2140 = vst.msk [vmem:[%s150 + $0x88] sm:$0xff] %vm2122, %v1925
        %2141 = vst.msk [vmem:[%s150 + $0x90] sm:$0xff] %vm2122, %v1928
        %2142 = vst.msk [vmem:[%s150 + $0x98] sm:$0xff] %vm2122, %v1930
        %2143 = vst.msk [vmem:[%s150 + $0xa0] sm:$0xff] %vm2122, %v1933
        %2144 = vst.msk [vmem:[%s150 + $0xa8] sm:$0xff] %vm2122, %v1935
        %2145 = vst.msk [vmem:[%s150 + $0xb0] sm:$0xff] %vm2122, %v1938
        %2146 = vst.msk [vmem:[%s150 + $0xb8] sm:$0xff] %vm2122, %v1940
        %2147 = vst.msk [vmem:[%s150 + $0xc0] sm:$0xff] %vm2122, %v1943
        %2148 = vst.msk [vmem:[%s150 + $0xc8] sm:$0xff] %vm2122, %v1945
        %2149 = vst.msk [vmem:[%s150 + $0xd0] sm:$0xff] %vm2122, %v1948
        %2150 = vst.msk [vmem:[%s150 + $0xd8] sm:$0xff] %vm2122, %v1950
        %2151 = vst.msk [vmem:[%s150 + $0xe0] sm:$0xff] %vm2122, %v1953
        %2152 = vst.msk [vmem:[%s150 + $0xe8] sm:$0xff] %vm2122, %v1955
        %2153 = vst.msk [vmem:[%s150 + $0xf0] sm:$0xff] %vm2122, %v1958
        %2154 = vst.msk [vmem:[%s150 + $0xf8] sm:$0xff] %vm2122, %v1960
        %2155 = vst.msk [vmem:[%s150 + $0x100] sm:$0xff] %vm2122, %v1963
        %2156 = vst.msk [vmem:[%s150 + $0x108] sm:$0xff] %vm2122, %v1965
        %2157 = vst.msk [vmem:[%s150 + $0x110] sm:$0xff] %vm2122, %v1968
        %2158 = vst.msk [vmem:[%s150 + $0x118] sm:$0xff] %vm2122, %v1970
        %2159 = vst.msk [vmem:[%s150 + $0x120] sm:$0xff] %vm2122, %v1973
        %2160 = vst.msk [vmem:[%s150 + $0x128] sm:$0xff] %vm2122, %v1975
        %2161 = vst.msk [vmem:[%s150 + $0x130] sm:$0xff] %vm2122, %v1978
        %2162 = vst.msk [vmem:[%s150 + $0x138] sm:$0xff] %vm2122, %v1980
        %2163 = vst.msk [vmem:[%s150 + $0x140] sm:$0xff] %vm2122, %v1983
        %2164 = vst.msk [vmem:[%s150 + $0x148] sm:$0xff] %vm2122, %v1985
        %2165 = vst.msk [vmem:[%s150 + $0x150] sm:$0xff] %vm2122, %v1988
        %2166 = vst.msk [vmem:[%s150 + $0x158] sm:$0xff] %vm2122, %v1990
        %2167 = vst.msk [vmem:[%s150 + $0x160] sm:$0xff] %vm2122, %v1993
        %2168 = vst.msk [vmem:[%s150 + $0x168] sm:$0xff] %vm2122, %v1995
        %2169 = vst.msk [vmem:[%s150 + $0x170] sm:$0xff] %vm2122, %v1998
        %2170 = vst.msk [vmem:[%s150 + $0x178] sm:$0xff] %vm2122, %v2000
        %2171 = vst.msk [vmem:[%s150 + $0x180] sm:$0xff] %vm2122, %v2003
        %2172 = vst.msk [vmem:[%s150 + $0x188] sm:$0xff] %vm2122, %v2005
        %2173 = vst.msk [vmem:[%s150 + $0x190] sm:$0xff] %vm2122, %v2008
        %2174 = vst.msk [vmem:[%s150 + $0x198] sm:$0xff] %vm2122, %v2010
        %2175 = vst.msk [vmem:[%s150 + $0x1a0] sm:$0xff] %vm2122, %v2013
        %2176 = vst.msk [vmem:[%s150 + $0x1a8] sm:$0xff] %vm2122, %v2015
        %2177 = vst.msk [vmem:[%s150 + $0x1b0] sm:$0xff] %vm2122, %v2018
        %2178 = vst.msk [vmem:[%s150 + $0x1b8] sm:$0xff] %vm2122, %v2020
        %2179 = vst.msk [vmem:[%s150 + $0x1c0] sm:$0xff] %vm2122, %v2023
        %2180 = vst.msk [vmem:[%s150 + $0x1c8] sm:$0xff] %vm2122, %v2025
        %2181 = vst.msk [vmem:[%s150 + $0x1d0] sm:$0xff] %vm2122, %v2028
        %2182 = vst.msk [vmem:[%s150 + $0x1d8] sm:$0xff] %vm2122, %v2030
        %2183 = vst.msk [vmem:[%s150 + $0x1e0] sm:$0xff] %vm2122, %v2033
        %2184 = vst.msk [vmem:[%s150 + $0x1e8] sm:$0xff] %vm2122, %v2035
        %2185 = vst.msk [vmem:[%s150 + $0x1f0] sm:$0xff] %vm2122, %v2038
        %2186 = vst.msk [vmem:[%s150 + $0x1f8] sm:$0xff] %vm2122, %v2040
        %2187 = vst.msk [vmem:[%s150 + $0x200] sm:$0xff] %vm2122, %v2043
        %2188 = vst.msk [vmem:[%s150 + $0x208] sm:$0xff] %vm2122, %v2045
        %2189 = vst.msk [vmem:[%s150 + $0x210] sm:$0xff] %vm2122, %v2048
        %2190 = vst.msk [vmem:[%s150 + $0x218] sm:$0xff] %vm2122, %v2050
        %2191 = vst.msk [vmem:[%s150 + $0x220] sm:$0xff] %vm2122, %v2053
        %2192 = vst.msk [vmem:[%s150 + $0x228] sm:$0xff] %vm2122, %v2055
        %2193 = vst.msk [vmem:[%s150 + $0x230] sm:$0xff] %vm2122, %v2058
        %2194 = vst.msk [vmem:[%s150 + $0x238] sm:$0xff] %vm2122, %v2060
        %2195 = vst.msk [vmem:[%s150 + $0x240] sm:$0xff] %vm2122, %v2063
        %2196 = vst.msk [vmem:[%s150 + $0x248] sm:$0xff] %vm2122, %v2065
        %2197 = vst.msk [vmem:[%s150 + $0x250] sm:$0xff] %vm2122, %v2068
        %2198 = vst.msk [vmem:[%s150 + $0x258] sm:$0xff] %vm2122, %v2070
        %2199 = vst.msk [vmem:[%s150 + $0x260] sm:$0xff] %vm2122, %v2073
        %2200 = vst.msk [vmem:[%s150 + $0x268] sm:$0xff] %vm2122, %v2075
        %2201 = vst.msk [vmem:[%s150 + $0x270] sm:$0xff] %vm2122, %v2078
        %2202 = vst.msk [vmem:[%s150 + $0x278] sm:$0xff] %vm2122, %v2080
        %2203 = vst.msk [vmem:[%s150 + $0x280] sm:$0xff] %vm2122, %v2083
        %2204 = vst.msk [vmem:[%s150 + $0x288] sm:$0xff] %vm2122, %v2085
        %2205 = vst.msk [vmem:[%s150 + $0x290] sm:$0xff] %vm2122, %v2088
        %2206 = vst.msk [vmem:[%s150 + $0x298] sm:$0xff] %vm2122, %v2090
        %2207 = vst.msk [vmem:[%s150 + $0x2a0] sm:$0xff] %vm2122, %v2093
        %2208 = vst.msk [vmem:[%s150 + $0x2a8] sm:$0xff] %vm2122, %v2095
        %2209 = vst.msk [vmem:[%s150 + $0x2b0] sm:$0xff] %vm2122, %v2098
        %2210 = vst.msk [vmem:[%s150 + $0x2b8] sm:$0xff] %vm2122, %v2100
        %2211 = vst.msk [vmem:[%s150 + $0x2c0] sm:$0xff] %vm2122, %v2103
        %2212 = vst.msk [vmem:[%s150 + $0x2c8] sm:$0xff] %vm2122, %v2105
        %2213 = vst.msk [vmem:[%s150 + $0x2d0] sm:$0xff] %vm2122, %v2108
        %2214 = vst.msk [vmem:[%s150 + $0x2d8] sm:$0xff] %vm2122, %v2110
        %2215 = vst.msk [vmem:[%s150 + $0x2e0] sm:$0xff] %vm2122, %v2113
        %2216 = vst.msk [vmem:[%s150 + $0x2e8] sm:$0xff] %vm2122, %v2115
        %2217 = vst.msk [vmem:[%s150 + $0x2f0] sm:$0xff] %vm2122, %v2118
        %2218 = vst.msk [vmem:[%s150 + $0x2f8] sm:$0xff] %vm2122, %v2120
        %s2219 = sand.u32 %s68, 1
        %s2220 = sand.u32 %s68, 1
        %s2221 = smul.addr %s2220, 768
        %s2222 = scalar_lea.vmem [#allocation2], %s2221
        // Predicated region
        $region29: #{forward.5} parent=27 // pred_check
          %p2223 = pneg %p78
        $region30: #{forward.5} parent=27 // pred_check_branch
          %2225 = sbr.rel (%p2223) target = $region32
        $region31: #{forward.5} parent=27 // pred_region
          %s2226 = smul.u32 96, %s13
          %s2227 = ssub.s32 182, %s2226
          %p2228 = scmp.lt.s32.totalorder %s2227, 96
          %s2229 = scalar_select %p2228, %s2227, 96
          %s2230 = smul.u32 8, %s2229
          %p2231 = scmp.ne.s32.totalorder 0, %s2230
          %s2232 = smul.addr %s2226, 8
          %s2233 = scalar_lea.vmem %s2, %s2232
          // Predicated region
          $region33: #{forward.5} parent=31 // pred_check
            %p2234 = pneg %p2231
          $region34: #{forward.5} parent=31 // pred_check_branch
            %2236 = sbr.rel (%p2234) target = $region36
          $region35: #{forward.5} parent=31 // pred_region
            // Predicated region
            $region37: #{forward.5} parent=35 // pred_check
              _
            $region38: #{forward.5} parent=35 // pred_check_branch
              %2238 = sbr.rel (0) target = $region40
            $region39: #{forward.5} parent=35 // pred_region
              // Predicated region
              $region59: #{forward.5} parent=39 // pred_check
                _
              $region60: #{forward.5} parent=39 // pred_check_branch
                %2350 = sbr.rel (0) target = $region62
              $region61: #{forward.5} parent=39 // pred_region
                %s2351 = sshrl.u32 %s2229, 5
                // While loop
                $region63: #{forward.5} parent=61 // loop_pre_header
                  _
                $region64: #{forward.5} parent=61 // loop_header
                  %s2353 = sphi 0, %s2355
                  %p2354 = scmp.ge.s32.totalorder %s2353, %s2351
                  %s2358 = sphi 0, %s2427
                  %s2359 = sphi %s2222, %s2430
                  %s2360 = sphi %s2233, %s2431
                $region65: #{forward.5} parent=61 // loop_header_branch
                  %2357 = sbr.rel (%p2354) target = $region69
                $region66: #{forward.5} parent=61 // loop_body
                  %v2361 = vld [vmem:[%s2359] sm:$0xff]
                  %2362 = vst [vmem:[%s2360] sm:$0xff] %v2361
                  %v2363 = vld [vmem:[%s2359 + $0x8] sm:$0xff]
                  %2364 = vst [vmem:[%s2360 + $0x8] sm:$0xff] %v2363
                  %v2365 = vld [vmem:[%s2359 + $0x10] sm:$0xff]
                  %2366 = vst [vmem:[%s2360 + $0x10] sm:$0xff] %v2365
                  %v2367 = vld [vmem:[%s2359 + $0x18] sm:$0xff]
                  %2368 = vst [vmem:[%s2360 + $0x18] sm:$0xff] %v2367
                  %v2369 = vld [vmem:[%s2359 + $0x20] sm:$0xff]
                  %2370 = vst [vmem:[%s2360 + $0x20] sm:$0xff] %v2369
                  %v2371 = vld [vmem:[%s2359 + $0x28] sm:$0xff]
                  %2372 = vst [vmem:[%s2360 + $0x28] sm:$0xff] %v2371
                  %v2373 = vld [vmem:[%s2359 + $0x30] sm:$0xff]
                  %2374 = vst [vmem:[%s2360 + $0x30] sm:$0xff] %v2373
                  %v2375 = vld [vmem:[%s2359 + $0x38] sm:$0xff]
                  %2376 = vst [vmem:[%s2360 + $0x38] sm:$0xff] %v2375
                  %v2377 = vld [vmem:[%s2359 + $0x40] sm:$0xff]
                  %2378 = vst [vmem:[%s2360 + $0x40] sm:$0xff] %v2377
                  %v2379 = vld [vmem:[%s2359 + $0x48] sm:$0xff]
                  %2380 = vst [vmem:[%s2360 + $0x48] sm:$0xff] %v2379
                  %v2381 = vld [vmem:[%s2359 + $0x50] sm:$0xff]
                  %2382 = vst [vmem:[%s2360 + $0x50] sm:$0xff] %v2381
                  %v2383 = vld [vmem:[%s2359 + $0x58] sm:$0xff]
                  %2384 = vst [vmem:[%s2360 + $0x58] sm:$0xff] %v2383
                  %v2385 = vld [vmem:[%s2359 + $0x60] sm:$0xff]
                  %2386 = vst [vmem:[%s2360 + $0x60] sm:$0xff] %v2385
                  %v2387 = vld [vmem:[%s2359 + $0x68] sm:$0xff]
                  %2388 = vst [vmem:[%s2360 + $0x68] sm:$0xff] %v2387
                  %v2389 = vld [vmem:[%s2359 + $0x70] sm:$0xff]
                  %2390 = vst [vmem:[%s2360 + $0x70] sm:$0xff] %v2389
                  %v2391 = vld [vmem:[%s2359 + $0x78] sm:$0xff]
                  %2392 = vst [vmem:[%s2360 + $0x78] sm:$0xff] %v2391
                  %v2393 = vld [vmem:[%s2359 + $0x80] sm:$0xff]
                  %2394 = vst [vmem:[%s2360 + $0x80] sm:$0xff] %v2393
                  %v2395 = vld [vmem:[%s2359 + $0x88] sm:$0xff]
                  %2396 = vst [vmem:[%s2360 + $0x88] sm:$0xff] %v2395
                  %v2397 = vld [vmem:[%s2359 + $0x90] sm:$0xff]
                  %2398 = vst [vmem:[%s2360 + $0x90] sm:$0xff] %v2397
                  %v2399 = vld [vmem:[%s2359 + $0x98] sm:$0xff]
                  %2400 = vst [vmem:[%s2360 + $0x98] sm:$0xff] %v2399
                  %v2401 = vld [vmem:[%s2359 + $0xa0] sm:$0xff]
                  %2402 = vst [vmem:[%s2360 + $0xa0] sm:$0xff] %v2401
                  %v2403 = vld [vmem:[%s2359 + $0xa8] sm:$0xff]
                  %2404 = vst [vmem:[%s2360 + $0xa8] sm:$0xff] %v2403
                  %v2405 = vld [vmem:[%s2359 + $0xb0] sm:$0xff]
                  %2406 = vst [vmem:[%s2360 + $0xb0] sm:$0xff] %v2405
                  %v2407 = vld [vmem:[%s2359 + $0xb8] sm:$0xff]
                  %2408 = vst [vmem:[%s2360 + $0xb8] sm:$0xff] %v2407
                  %v2409 = vld [vmem:[%s2359 + $0xc0] sm:$0xff]
                  %2410 = vst [vmem:[%s2360 + $0xc0] sm:$0xff] %v2409
                  %v2411 = vld [vmem:[%s2359 + $0xc8] sm:$0xff]
                  %2412 = vst [vmem:[%s2360 + $0xc8] sm:$0xff] %v2411
                  %v2413 = vld [vmem:[%s2359 + $0xd0] sm:$0xff]
                  %2414 = vst [vmem:[%s2360 + $0xd0] sm:$0xff] %v2413
                  %v2415 = vld [vmem:[%s2359 + $0xd8] sm:$0xff]
                  %2416 = vst [vmem:[%s2360 + $0xd8] sm:$0xff] %v2415
                  %v2417 = vld [vmem:[%s2359 + $0xe0] sm:$0xff]
                  %2418 = vst [vmem:[%s2360 + $0xe0] sm:$0xff] %v2417
                  %v2419 = vld [vmem:[%s2359 + $0xe8] sm:$0xff]
                  %2420 = vst [vmem:[%s2360 + $0xe8] sm:$0xff] %v2419
                  %v2421 = vld [vmem:[%s2359 + $0xf0] sm:$0xff]
                  %2422 = vst [vmem:[%s2360 + $0xf0] sm:$0xff] %v2421
                  %v2423 = vld [vmem:[%s2359 + $0xf8] sm:$0xff]
                  %2424 = vst [vmem:[%s2360 + $0xf8] sm:$0xff] %v2423
                  %s2425 = sadd.s32 1, %s2358
                  %p2426 = scmp.ge.s32.totalorder %s2425, %s2351
                  %s2427 = scalar_select %p2426, 0, %s2425
                  %s2428 = smul.u32 %s2427, 256
                  %s2429 = smul.u32 %s2427, 256
                  %s2430 = scalar_lea.vmem %s2222, %s2428 [#allocation2]
                  %s2431 = scalar_lea.vmem %s2233, %s2429
                $region67: #{forward.5} parent=61 // loop_footer
                  %s2355 = sadd.s32 %s2353, 1
                $region68: #{forward.5} parent=61 // loop_footer_branch
                  %2352 = sbr.rel target = $region64
                $region69: #{forward.5} parent=61 // loop_exit
                  _
                %s2432 = sshrl.u32 %s2229, 5
                %s2433 = sand.u32 %s2229, 31
                %s2434 = smul.u32 %s2432, 32
                %s2435 = smul.u32 8, %s2434
                %s2436 = scalar_lea.vmem %s2222, %s2435 [#allocation2]
                %s2437 = smul.u32 8, %s2434
                %s2438 = scalar_lea.vmem %s2233, %s2437
                // While loop
                $region70: #{forward.5} parent=61 // loop_pre_header
                  _
                $region71: #{forward.5} parent=61 // loop_header
                  %s2440 = sphi 0, %s2442
                  %p2441 = scmp.ge.s32.totalorder %s2440, %s2433
                  %s2445 = sphi 0, %s2452
                  %s2446 = sphi %s2436, %s2455
                  %s2447 = sphi %s2438, %s2456
                $region72: #{forward.5} parent=61 // loop_header_branch
                  %2444 = sbr.rel (%p2441) target = $region76
                $region73: #{forward.5} parent=61 // loop_body
                  %v2448 = vld [vmem:[%s2446] sm:$0xff]
                  %2449 = vst [vmem:[%s2447] sm:$0xff] %v2448
                  %s2450 = sadd.s32 1, %s2445
                  %p2451 = scmp.ge.s32.totalorder %s2450, %s2433
                  %s2452 = scalar_select %p2451, 0, %s2450
                  %s2453 = smul.u32 %s2452, 8
                  %s2454 = smul.u32 %s2452, 8
                  %s2455 = scalar_lea.vmem %s2436, %s2453 [#allocation2]
                  %s2456 = scalar_lea.vmem %s2438, %s2454
                $region74: #{forward.5} parent=61 // loop_footer
                  %s2442 = sadd.s32 %s2440, 1
                $region75: #{forward.5} parent=61 // loop_footer_branch
                  %2439 = sbr.rel target = $region71
                $region76: #{forward.5} parent=61 // loop_exit
                  _
              $region62: #{forward.5} parent=39 // pred_fallthru
                _
              // Predicated region
              $region77: #{forward.5} parent=39 // pred_check
                _
              $region78: #{forward.5} parent=39 // pred_check_branch
                %2458 = sbr.rel target = $region80
              $region79: #{forward.5} parent=39 // pred_region
                _
              $region80: #{forward.5} parent=39 // pred_fallthru
                _
            $region40: #{forward.5} parent=35 // pred_fallthru
              _
            // Predicated region
            $region41: #{forward.5} parent=35 // pred_check
              _
            $region42: #{forward.5} parent=35 // pred_check_branch
              %2240 = sbr.rel target = $region44
            $region43: #{forward.5} parent=35 // pred_region
              %s2242 = ssub.s32 256, 1
              %s2243 = sshrl.u32 %s2229, 5
              // While loop
              $region45: #{forward.5} parent=43 // loop_pre_header
                _
              $region46: #{forward.5} parent=43 // loop_header
                %s2245 = sphi 0, %s2247
                %p2246 = scmp.ge.s32.totalorder %s2245, %s2243
                %s2250 = sphi 0, %s2319
                %s2251 = sphi %s2222, %s2322
                %s2252 = sphi %s2233, %s2323
              $region47: #{forward.5} parent=43 // loop_header_branch
                %2249 = sbr.rel (%p2246) target = $region51
              $region48: #{forward.5} parent=43 // loop_body
                %v2253 = vld [vmem:[%s2251] sm:%s2242]
                %2254 = vst [vmem:[%s2252] sm:%s2242] %v2253
                %v2255 = vld [vmem:[%s2251 + $0x8] sm:%s2242]
                %2256 = vst [vmem:[%s2252 + $0x8] sm:%s2242] %v2255
                %v2257 = vld [vmem:[%s2251 + $0x10] sm:%s2242]
                %2258 = vst [vmem:[%s2252 + $0x10] sm:%s2242] %v2257
                %v2259 = vld [vmem:[%s2251 + $0x18] sm:%s2242]
                %2260 = vst [vmem:[%s2252 + $0x18] sm:%s2242] %v2259
                %v2261 = vld [vmem:[%s2251 + $0x20] sm:%s2242]
                %2262 = vst [vmem:[%s2252 + $0x20] sm:%s2242] %v2261
                %v2263 = vld [vmem:[%s2251 + $0x28] sm:%s2242]
                %2264 = vst [vmem:[%s2252 + $0x28] sm:%s2242] %v2263
                %v2265 = vld [vmem:[%s2251 + $0x30] sm:%s2242]
                %2266 = vst [vmem:[%s2252 + $0x30] sm:%s2242] %v2265
                %v2267 = vld [vmem:[%s2251 + $0x38] sm:%s2242]
                %2268 = vst [vmem:[%s2252 + $0x38] sm:%s2242] %v2267
                %v2269 = vld [vmem:[%s2251 + $0x40] sm:%s2242]
                %2270 = vst [vmem:[%s2252 + $0x40] sm:%s2242] %v2269
                %v2271 = vld [vmem:[%s2251 + $0x48] sm:%s2242]
                %2272 = vst [vmem:[%s2252 + $0x48] sm:%s2242] %v2271
                %v2273 = vld [vmem:[%s2251 + $0x50] sm:%s2242]
                %2274 = vst [vmem:[%s2252 + $0x50] sm:%s2242] %v2273
                %v2275 = vld [vmem:[%s2251 + $0x58] sm:%s2242]
                %2276 = vst [vmem:[%s2252 + $0x58] sm:%s2242] %v2275
                %v2277 = vld [vmem:[%s2251 + $0x60] sm:%s2242]
                %2278 = vst [vmem:[%s2252 + $0x60] sm:%s2242] %v2277
                %v2279 = vld [vmem:[%s2251 + $0x68] sm:%s2242]
                %2280 = vst [vmem:[%s2252 + $0x68] sm:%s2242] %v2279
                %v2281 = vld [vmem:[%s2251 + $0x70] sm:%s2242]
                %2282 = vst [vmem:[%s2252 + $0x70] sm:%s2242] %v2281
                %v2283 = vld [vmem:[%s2251 + $0x78] sm:%s2242]
                %2284 = vst [vmem:[%s2252 + $0x78] sm:%s2242] %v2283
                %v2285 = vld [vmem:[%s2251 + $0x80] sm:%s2242]
                %2286 = vst [vmem:[%s2252 + $0x80] sm:%s2242] %v2285
                %v2287 = vld [vmem:[%s2251 + $0x88] sm:%s2242]
                %2288 = vst [vmem:[%s2252 + $0x88] sm:%s2242] %v2287
                %v2289 = vld [vmem:[%s2251 + $0x90] sm:%s2242]
                %2290 = vst [vmem:[%s2252 + $0x90] sm:%s2242] %v2289
                %v2291 = vld [vmem:[%s2251 + $0x98] sm:%s2242]
                %2292 = vst [vmem:[%s2252 + $0x98] sm:%s2242] %v2291
                %v2293 = vld [vmem:[%s2251 + $0xa0] sm:%s2242]
                %2294 = vst [vmem:[%s2252 + $0xa0] sm:%s2242] %v2293
                %v2295 = vld [vmem:[%s2251 + $0xa8] sm:%s2242]
                %2296 = vst [vmem:[%s2252 + $0xa8] sm:%s2242] %v2295
                %v2297 = vld [vmem:[%s2251 + $0xb0] sm:%s2242]
                %2298 = vst [vmem:[%s2252 + $0xb0] sm:%s2242] %v2297
                %v2299 = vld [vmem:[%s2251 + $0xb8] sm:%s2242]
                %2300 = vst [vmem:[%s2252 + $0xb8] sm:%s2242] %v2299
                %v2301 = vld [vmem:[%s2251 + $0xc0] sm:%s2242]
                %2302 = vst [vmem:[%s2252 + $0xc0] sm:%s2242] %v2301
                %v2303 = vld [vmem:[%s2251 + $0xc8] sm:%s2242]
                %2304 = vst [vmem:[%s2252 + $0xc8] sm:%s2242] %v2303
                %v2305 = vld [vmem:[%s2251 + $0xd0] sm:%s2242]
                %2306 = vst [vmem:[%s2252 + $0xd0] sm:%s2242] %v2305
                %v2307 = vld [vmem:[%s2251 + $0xd8] sm:%s2242]
                %2308 = vst [vmem:[%s2252 + $0xd8] sm:%s2242] %v2307
                %v2309 = vld [vmem:[%s2251 + $0xe0] sm:%s2242]
                %2310 = vst [vmem:[%s2252 + $0xe0] sm:%s2242] %v2309
                %v2311 = vld [vmem:[%s2251 + $0xe8] sm:%s2242]
                %2312 = vst [vmem:[%s2252 + $0xe8] sm:%s2242] %v2311
                %v2313 = vld [vmem:[%s2251 + $0xf0] sm:%s2242]
                %2314 = vst [vmem:[%s2252 + $0xf0] sm:%s2242] %v2313
                %v2315 = vld [vmem:[%s2251 + $0xf8] sm:%s2242]
                %2316 = vst [vmem:[%s2252 + $0xf8] sm:%s2242] %v2315
                %s2317 = sadd.s32 1, %s2250
                %p2318 = scmp.ge.s32.totalorder %s2317, %s2243
                %s2319 = scalar_select %p2318, 0, %s2317
                %s2320 = smul.u32 %s2319, 256
                %s2321 = smul.u32 %s2319, 256
                %s2322 = scalar_lea.vmem %s2222, %s2320 [#allocation2]
                %s2323 = scalar_lea.vmem %s2233, %s2321
              $region49: #{forward.5} parent=43 // loop_footer
                %s2247 = sadd.s32 %s2245, 1
              $region50: #{forward.5} parent=43 // loop_footer_branch
                %2244 = sbr.rel target = $region46
              $region51: #{forward.5} parent=43 // loop_exit
                _
              %s2324 = sshrl.u32 %s2229, 5
              %s2325 = sand.u32 %s2229, 31
              %s2326 = smul.u32 %s2324, 32
              %s2327 = smul.u32 8, %s2326
              %s2328 = scalar_lea.vmem %s2222, %s2327 [#allocation2]
              %s2329 = smul.u32 8, %s2326
              %s2330 = scalar_lea.vmem %s2233, %s2329
              // While loop
              $region52: #{forward.5} parent=43 // loop_pre_header
                _
              $region53: #{forward.5} parent=43 // loop_header
                %s2332 = sphi 0, %s2334
                %p2333 = scmp.ge.s32.totalorder %s2332, %s2325
                %s2337 = sphi 0, %s2344
                %s2338 = sphi %s2328, %s2347
                %s2339 = sphi %s2330, %s2348
              $region54: #{forward.5} parent=43 // loop_header_branch
                %2336 = sbr.rel (%p2333) target = $region58
              $region55: #{forward.5} parent=43 // loop_body
                %v2340 = vld [vmem:[%s2338] sm:%s2242]
                %2341 = vst [vmem:[%s2339] sm:%s2242] %v2340
                %s2342 = sadd.s32 1, %s2337
                %p2343 = scmp.ge.s32.totalorder %s2342, %s2325
                %s2344 = scalar_select %p2343, 0, %s2342
                %s2345 = smul.u32 %s2344, 8
                %s2346 = smul.u32 %s2344, 8
                %s2347 = scalar_lea.vmem %s2328, %s2345 [#allocation2]
                %s2348 = scalar_lea.vmem %s2330, %s2346
              $region56: #{forward.5} parent=43 // loop_footer
                %s2334 = sadd.s32 %s2332, 1
              $region57: #{forward.5} parent=43 // loop_footer_branch
                %2331 = sbr.rel target = $region53
              $region58: #{forward.5} parent=43 // loop_exit
                _
            $region44: #{forward.5} parent=35 // pred_fallthru
              _
          $region36: #{forward.5} parent=31 // pred_fallthru
            _
          %2459 = vnop
        $region32: #{forward.5} parent=27 // pred_fallthru
          _
      $region28: #{forward.5} parent=5 // pred_fallthru
        _
      %p2460 = scmp.le.s32.totalorder 2, %s8
      // Predicated region
      $region81: #{forward.5} parent=5 // pred_check
        %p2461 = pneg %p2460
      $region82: #{forward.5} parent=5 // pred_check_branch
        %2463 = sbr.rel (%p2461) target = $region84
      $region83: #{forward.5} parent=5 // pred_region
        %s2464 = ssub.s32 %s8, 2
        // Predicated region
        $region85: #{forward.5} parent=83 // pred_check
          %p2465 = pneg %p84
        $region86: #{forward.5} parent=83 // pred_check_branch
          %2467 = sbr.rel (%p2465) target = $region88
        $region87: #{forward.5} parent=83 // pred_region
          %s2468 = sand.u32 %s69, 1
          %s2469 = sand.u32 %s69, 1
          %s2470 = smul.addr %s2469, 768
          %s2471 = scalar_lea.vmem [#allocation2], %s2470
        $region88: #{forward.5} parent=83 // pred_fallthru
          _
      $region84: #{forward.5} parent=5 // pred_fallthru
        _
    $region6: #{forward.5} parent=1 // loop_footer
      %s12 = sadd.s32 1, %s8
    $region7: #{forward.5} parent=1 // loop_footer_branch
      %7 = sbr.rel target = $region3
    $region8: #{forward.5} parent=1 // loop_exit
      _

// kernel: forward.7
$region0: #{forward.7}
  #allocation0 [shape = 'u32[]', space=smem, size = 0x4, offset = 0x4, fixed_abs, tag = 'smem constant byte address 0x4 - core index']
  #allocation1 [shape = 'u32[72,128]{1,0:T(1,128)}', space=vmem, size = 0x9000, scoped, tag = 'internal scratch']
  %s0 = inlined_call_operand.vmem [shape: bf16[1452,216], index: 0, kind: input, shape index: {}]
  %s1 = inlined_call_operand.vmem [shape: bf16[216,4], index: 1, kind: input, shape index: {}]
  %s2 = inlined_call_operand.vmem [shape: f32[1452,4], index: 2, kind: output, shape index: {}]
  %s3 = sld [smem:[#allocation0]]
  $region89: #{forward.7} parent=0
    _
  %s5 = ssub.s32 1, %s3
  %s6 = scalar_select 0, %s5, %s3
  $region1: #{forward.7} parent=0
    #allocation2 [shape = 'u8[786432]{0}', space=vmem, size = 0xc0000, scoped, tag = 'output window, operand 0']
    loop: start=0, step=1, limit=4
    $region2: #{forward.7} parent=1 // loop_pre_header
      _
    $region3: #{forward.7} parent=1 // loop_header
      %s8 = sphi 0, %s12
      %p9 = scmp.ge.s32.totalorder %s8, 4
      %s18 = sphi 0, %s20
      %s21 = sphi 0, %s18
      %s22 = sphi 0, %s21
      %s38 = sphi 0, %s22
      %s42 = sphi 0, %s42
      %s44 = sphi 0, %s42
      %s45 = sphi 0, %s44
      %s59 = sphi 0, %s45
      %s65 = sphi 0, %s67
      %s68 = sphi 0, %s65
      %s69 = sphi 0, %s68
      %s85 = sphi 0, %s69
    $region4: #{forward.7} parent=1 // loop_header_branch
      %11 = sbr.rel (%p9) target = $region8
    $region5: #{forward.7} parent=1 // loop_body
      %s13 = ssub.s32 %s8, 1
      %s14 = ssub.s32 %s8, 2
      %s15 = sadd.s32 %s8, 1
      %s16 = ssub.s32 %s8, %s15
      %p17 = scmp.eq.s32.totalorder %s16, 0
      %s19 = sadd.s32 %s18, 1
      %s20 = scalar_select %p17, %s18, %s19
      %p23 = pneg %p17
      %p24 = scmp.eq.s32.totalorder %s8, 1
      %p25 = por %p23, %p24
      %p26 = scmp.ne.s32.totalorder %s18, %s21
      %p27 = scmp.eq.s32.totalorder %s8, 0
      %p28 = por %p26, %p27
      %p29 = scmp.ne.s32.totalorder %s18, %s21
      %p30 = scmp.eq.s32.totalorder %s13, 1
      %p31 = por %p29, %p30
      %p32 = scmp.ne.s32.totalorder %s21, %s22
      %p33 = scmp.eq.s32.totalorder %s13, 0
      %p34 = por %p32, %p33
      %p35 = scmp.ne.s32.totalorder %s21, %s22
      %p36 = scmp.eq.s32.totalorder %s14, 1
      %p37 = por %p35, %p36
      %p39 = scmp.ne.s32.totalorder %s22, %s38
      %p40 = scmp.eq.s32.totalorder %s14, 0
      %p41 = por %p39, %p40
      %s43 = sadd.s32 %s42, 1
      %p46 = scmp.eq.s32.totalorder %s8, 1
      %p47 = scmp.ne.s32.totalorder %s42, %s44
      %p48 = scmp.eq.s32.totalorder %s8, 0
      %p49 = por %p47, %p48
      %p50 = scmp.ne.s32.totalorder %s42, %s44
      %p51 = scmp.eq.s32.totalorder %s13, 1
      %p52 = por %p50, %p51
      %p53 = scmp.ne.s32.totalorder %s44, %s45
      %p54 = scmp.eq.s32.totalorder %s13, 0
      %p55 = por %p53, %p54
      %p56 = scmp.ne.s32.totalorder %s44, %s45
      %p57 = scmp.eq.s32.totalorder %s14, 1
      %p58 = por %p56, %p57
      %p60 = scmp.ne.s32.totalorder %s45, %s59
      %p61 = scmp.eq.s32.totalorder %s14, 0
      %p62 = por %p60, %p61
      %s63 = ssub.s32 %s8, %s15
      %p64 = scmp.eq.s32.totalorder %s63, 0
      %s66 = sadd.s32 %s65, 1
      %s67 = scalar_select %p64, %s65, %s66
      %p70 = pneg %p64
      %p71 = scmp.eq.s32.totalorder %s8, 1
      %p72 = por %p70, %p71
      %p73 = scmp.ne.s32.totalorder %s65, %s68
      %p74 = scmp.eq.s32.totalorder %s8, 0
      %p75 = por %p73, %p74
      %p76 = scmp.ne.s32.totalorder %s65, %s68
      %p77 = scmp.eq.s32.totalorder %s13, 1
      %p78 = por %p76, %p77
      %p79 = scmp.ne.s32.totalorder %s68, %s69
      %p80 = scmp.eq.s32.totalorder %s13, 0
      %p81 = por %p79, %p80
      %p82 = scmp.ne.s32.totalorder %s68, %s69
      %p83 = scmp.eq.s32.totalorder %s14, 1
      %p84 = por %p82, %p83
      %p86 = scmp.ne.s32.totalorder %s69, %s85
      %p87 = scmp.eq.s32.totalorder %s14, 0
      %p88 = por %p86, %p87
      %p89 = scmp.le.s32.totalorder 1, %s8
      %p90 = scmp.lt.s32.totalorder %s8, 3
      %p91 = pnand %p89, %p90
      %p92 = pneg %p91
      // Predicated region
      $region9: #{forward.7} parent=5 // pred_check
        _
      $region10: #{forward.7} parent=5 // pred_check_branch
        %94 = sbr.rel (%p91) target = $region12
      $region11: #{forward.7} parent=5 // pred_region
        %s95 = ssub.s32 %s8, 1
        // Predicated region
        $region13: #{forward.7} parent=11 // pred_check
          %p96 = pneg %p55
        $region14: #{forward.7} parent=11 // pred_check_branch
          %98 = sbr.rel (%p96) target = $region16
        $region15: #{forward.7} parent=11 // pred_region
          _
        $region16: #{forward.7} parent=11 // pred_fallthru
          _
      $region12: #{forward.7} parent=5 // pred_fallthru
        _
      %p99 = scmp.lt.s32.totalorder %s8, 2
      // Predicated region
      $region17: #{forward.7} parent=5 // pred_check
        %p100 = pneg %p99
      $region18: #{forward.7} parent=5 // pred_check_branch
        %102 = sbr.rel (%p100) target = $region20
      $region19: #{forward.7} parent=5 // pred_region
        // Predicated region
        $region21: #{forward.7} parent=19 // pred_check
          %p103 = pneg %p28
        $region22: #{forward.7} parent=19 // pred_check_branch
          %105 = sbr.rel (%p103) target = $region24
        $region23: #{forward.7} parent=19 // pred_region
          %s106 = smul.u32 96, %s8
          %s107 = ssub.s32 182, %s106
          %p108 = scmp.lt.s32.totalorder %s107, 96
          %s109 = scalar_select %p108, %s107, 96
          %s110 = smul.u32 4, %s109
          %s111 = smul.u32 %s110, 2
          %p112 = scmp.lt.s32.totalorder %s106, 181
          %s113 = scalar_select %p112, %s106, 181
          %s114 = smul.addr %s113, 2
          %s115 = smul.addr %s114, 4
          %s116 = scalar_lea.vmem %s0, %s115
          %s117 = smul.u32 96, %s8
          %s118 = ssub.s32 182, %s117
          %p119 = scmp.lt.s32.totalorder %s118, 96
          %s120 = scalar_select %p119, %s118, 96
          %s121 = smul.u32 4, %s120
          %s122 = smul.u32 %s121, 2
        $region24: #{forward.7} parent=19 // pred_fallthru
          _
      $region20: #{forward.7} parent=5 // pred_fallthru
        _
      %p123 = scmp.le.s32.totalorder 1, %s8
      %p124 = scmp.lt.s32.totalorder %s8, 3
      %p125 = pnand %p123, %p124
      %p126 = pneg %p125
      // Predicated region
      $region25: #{forward.7} parent=5 // pred_check
        _
      $region26: #{forward.7} parent=5 // pred_check_branch
        %128 = sbr.rel (%p125) target = $region28
      $region27: #{forward.7} parent=5 // pred_region
        %s129 = ssub.s32 %s8, 1
        %s130 = smul.u32 96, %s13
        %s131 = ssub.s32 182, %s130
        %p132 = scmp.lt.s32.totalorder %s131, 96
        %s133 = scalar_select %p132, %s131, 96
        %s134 = smul.u32 4, %s133
        %s135 = smul.u32 %s134, 2
        %p136 = scmp.lt.s32.totalorder %s130, 181
        %s137 = scalar_select %p136, %s130, 181
        %s138 = smul.addr %s137, 2
        %s139 = smul.addr %s138, 4
        %s140 = scalar_lea.vmem %s0, %s139
        %p141 = pneg %p34
        %p142 = pneg %p31
        %p143 = pneg %p55
        %p144 = pneg %p52
        %p145 = pneg %p81
        %p146 = pneg %p78
        %s147 = sand.u32 %s68, 1
        %s148 = sand.u32 %s68, 1
        %s149 = smul.addr %s148, 768
        %s150 = scalar_lea.vmem [#allocation2], %s149
        %s151 = smul.u32 96, %s13
        %s152 = ssub.s32 182, %s151
        %p153 = scmp.lt.s32.totalorder %s152, 96
        %s154 = scalar_select %p153, %s152, 96
        %s155 = smul.u32 4, %s154
        %s156 = smul.u32 %s155, 2
        %p157 = scmp.lt.s32.totalorder %s151, 181
        %s158 = scalar_select %p157, %s151, 181
        %s159 = smul.addr %s158, 2
        %s160 = smul.addr %s159, 4
        %s161 = scalar_lea.vmem %s0, %s160
        %s162 = smul.u32 96, %s13
        %s163 = ssub.s32 182, %s162
        %p164 = scmp.lt.s32.totalorder %s163, 96
        %s165 = scalar_select %p164, %s163, 96
        %s166 = smul.u32 4, %s165
        %s167 = smul.u32 %s166, 2
        %s168 = smul.u32 96, %s13
        %s169 = ssub.s32 182, %s168
        %p170 = scmp.lt.s32.totalorder %s169, 96
        %s171 = scalar_select %p170, %s169, 96
        %s172 = smul.u32 8, %s171
        %v174 = vld [vmem:[%s161] sm:$0xff]
        %v175 = vld [vmem:[%s161 + $0x8] sm:$0xff]
        %v176 = vld [vmem:[%s161 + $0x10] sm:$0xff]
        %v177 = vld [vmem:[%s161 + $0x18] sm:$0xff]
        %v178 = vld [vmem:[%s161 + $0x20] sm:$0xff]
        %v179 = vld [vmem:[%s161 + $0x28] sm:$0xff]
        %v180 = vld [vmem:[%s161 + $0x30] sm:$0xff]
        %v181 = vld [vmem:[%s161 + $0x38] sm:$0xff]
        %v182 = vld [vmem:[%s161 + $0x40] sm:$0xff]
        %v183 = vld [vmem:[%s161 + $0x48] sm:$0xff]
        %v184 = vld [vmem:[%s161 + $0x50] sm:$0xff]
        %v185 = vld [vmem:[%s161 + $0x58] sm:$0xff]
        %v186 = vld [vmem:[%s161 + $0x60] sm:$0xff]
        %v187 = vld [vmem:[%s161 + $0x68] sm:$0xff]
        %v188 = vld [vmem:[%s161 + $0x70] sm:$0xff]
        %v189 = vld [vmem:[%s161 + $0x78] sm:$0xff]
        %v190 = vld [vmem:[%s161 + $0x80] sm:$0xff]
        %v191 = vld [vmem:[%s161 + $0x88] sm:$0xff]
        %v192 = vld [vmem:[%s161 + $0x90] sm:$0xff]
        %v193 = vld [vmem:[%s161 + $0x98] sm:$0xff]
        %v194 = vld [vmem:[%s161 + $0xa0] sm:$0xff]
        %v195 = vld [vmem:[%s161 + $0xa8] sm:$0xff]
        %v196 = vld [vmem:[%s161 + $0xb0] sm:$0xff]
        %v197 = vld [vmem:[%s161 + $0xb8] sm:$0xff]
        %v198 = vld [vmem:[%s161 + $0xc0] sm:$0xff]
        %v199 = vld [vmem:[%s161 + $0xc8] sm:$0xff]
        %v200 = vld [vmem:[%s161 + $0xd0] sm:$0xff]
        %v201 = vld [vmem:[%s161 + $0xd8] sm:$0xff]
        %v202 = vld [vmem:[%s161 + $0xe0] sm:$0xff]
        %v203 = vld [vmem:[%s161 + $0xe8] sm:$0xff]
        %v204 = vld [vmem:[%s161 + $0xf0] sm:$0xff]
        %v205 = vld [vmem:[%s161 + $0xf8] sm:$0xff]
        %v206 = vld [vmem:[%s161 + $0x100] sm:$0xff]
        %v207 = vld [vmem:[%s161 + $0x108] sm:$0xff]
        %v208 = vld [vmem:[%s161 + $0x110] sm:$0xff]
        %v209 = vld [vmem:[%s161 + $0x118] sm:$0xff]
        %v210 = vld [vmem:[%s161 + $0x120] sm:$0xff]
        %v211 = vld [vmem:[%s161 + $0x128] sm:$0xff]
        %v212 = vld [vmem:[%s161 + $0x130] sm:$0xff]
        %v213 = vld [vmem:[%s161 + $0x138] sm:$0xff]
        %v214 = vld [vmem:[%s161 + $0x140] sm:$0xff]
        %v215 = vld [vmem:[%s161 + $0x148] sm:$0xff]
        %v216 = vld [vmem:[%s161 + $0x150] sm:$0xff]
        %v217 = vld [vmem:[%s161 + $0x158] sm:$0xff]
        %v218 = vld [vmem:[%s161 + $0x160] sm:$0xff]
        %v219 = vld [vmem:[%s161 + $0x168] sm:$0xff]
        %v220 = vld [vmem:[%s161 + $0x170] sm:$0xff]
        %v221 = vld [vmem:[%s161 + $0x178] sm:$0xff]
        %v222 = vld [vmem:[%s161 + $0x180] sm:$0xff]
        %v223 = vld [vmem:[%s161 + $0x188] sm:$0xff]
        %v224 = vld [vmem:[%s161 + $0x190] sm:$0xff]
        %v225 = vld [vmem:[%s161 + $0x198] sm:$0xff]
        %v226 = vld [vmem:[%s161 + $0x1a0] sm:$0xff]
        %v227 = vld [vmem:[%s161 + $0x1a8] sm:$0xff]
        %v228 = vld [vmem:[%s161 + $0x1b0] sm:$0xff]
        %v229 = vld [vmem:[%s161 + $0x1b8] sm:$0xff]
        %v230 = vld [vmem:[%s161 + $0x1c0] sm:$0xff]
        %v231 = vld [vmem:[%s161 + $0x1c8] sm:$0xff]
        %v232 = vld [vmem:[%s161 + $0x1d0] sm:$0xff]
        %v233 = vld [vmem:[%s161 + $0x1d8] sm:$0xff]
        %v234 = vld [vmem:[%s161 + $0x1e0] sm:$0xff]
        %v235 = vld [vmem:[%s161 + $0x1e8] sm:$0xff]
        %v236 = vld [vmem:[%s161 + $0x1f0] sm:$0xff]
        %v237 = vld [vmem:[%s161 + $0x1f8] sm:$0xff]
        %v238 = vld [vmem:[%s161 + $0x200] sm:$0xff]
        %v239 = vld [vmem:[%s161 + $0x208] sm:$0xff]
        %v240 = vld [vmem:[%s161 + $0x210] sm:$0xff]
        %v241 = vld [vmem:[%s161 + $0x218] sm:$0xff]
        %v242 = vld [vmem:[%s161 + $0x220] sm:$0xff]
        %v243 = vld [vmem:[%s161 + $0x228] sm:$0xff]
        %v244 = vld [vmem:[%s161 + $0x230] sm:$0xff]
        %v245 = vld [vmem:[%s161 + $0x238] sm:$0xff]
        %v246 = vld [vmem:[%s161 + $0x240] sm:$0xff]
        %v247 = vld [vmem:[%s161 + $0x248] sm:$0xff]
        %v248 = vld [vmem:[%s161 + $0x250] sm:$0xff]
        %v249 = vld [vmem:[%s161 + $0x258] sm:$0xff]
        %v250 = vld [vmem:[%s161 + $0x260] sm:$0xff]
        %v251 = vld [vmem:[%s161 + $0x268] sm:$0xff]
        %v252 = vld [vmem:[%s161 + $0x270] sm:$0xff]
        %v253 = vld [vmem:[%s161 + $0x278] sm:$0xff]
        %v254 = vld [vmem:[%s161 + $0x280] sm:$0xff]
        %v255 = vld [vmem:[%s161 + $0x288] sm:$0xff]
        %v256 = vld [vmem:[%s161 + $0x290] sm:$0xff]
        %v257 = vld [vmem:[%s161 + $0x298] sm:$0xff]
        %v258 = vld [vmem:[%s161 + $0x2a0] sm:$0xff]
        %v259 = vld [vmem:[%s161 + $0x2a8] sm:$0xff]
        %v260 = vld [vmem:[%s161 + $0x2b0] sm:$0xff]
        %v261 = vld [vmem:[%s161 + $0x2b8] sm:$0xff]
        %v262 = vld [vmem:[%s161 + $0x2c0] sm:$0xff]
        %v263 = vld [vmem:[%s161 + $0x2c8] sm:$0xff]
        %v264 = vld [vmem:[%s161 + $0x2d0] sm:$0xff]
        %v265 = vld [vmem:[%s161 + $0x2d8] sm:$0xff]
        %v266 = vld [vmem:[%s161 + $0x2e0] sm:$0xff]
        %v267 = vld [vmem:[%s161 + $0x2e8] sm:$0xff]
        %v268 = vld [vmem:[%s161 + $0x2f0] sm:$0xff]
        %v269 = vld [vmem:[%s161 + $0x2f8] sm:$0xff]
        %v270 = vld [vmem:[%s1] sm:$0xf]
        %v271 = vld [vmem:[%s1 + $0x4] sm:$0xf]
        %v272 = vld [vmem:[%s1 + $0x8] sm:$0xf]
        %v273 = vld [vmem:[%s1 + $0xc] sm:$0xf]
        %v274 = vld [vmem:[%s1 + $0x10] sm:$0xf]
        %v275 = vld [vmem:[%s1 + $0x14] sm:$0xf]
        %v276 = vld [vmem:[%s1 + $0x18] sm:$0xf]
        %v277 = vld [vmem:[%s1 + $0x1c] sm:$0xf]
        %v278 = vld [vmem:[%s1 + $0x20] sm:$0xf]
        %v279 = vld [vmem:[%s1 + $0x24] sm:$0xf]
        %v280 = vld [vmem:[%s1 + $0x28] sm:$0xf]
        %v281 = vld [vmem:[%s1 + $0x2c] sm:$0xf]
        %v282 = vld [vmem:[%s1 + $0x30] sm:$0xf]
        %v283 = vld [vmem:[%s1 + $0x34] sm:$0xf]
        %v284 = vld [vmem:[%s1 + $0x38] sm:$0xf]
        %v285 = vld [vmem:[%s1 + $0x3c] sm:$0xf]
        %v286 = vld [vmem:[%s1 + $0x40] sm:$0xf]
        %v287 = vld [vmem:[%s1 + $0x44] sm:$0xf]
        %v288 = vld [vmem:[%s1 + $0x48] sm:$0xf]
        %v289 = vld [vmem:[%s1 + $0x4c] sm:$0xf]
        %v290 = vld [vmem:[%s1 + $0x50] sm:$0xf]
        %v291 = vld [vmem:[%s1 + $0x54] sm:$0xf]
        %v292 = vld [vmem:[%s1 + $0x58] sm:$0xf]
        %v293 = vld [vmem:[%s1 + $0x5c] sm:$0xf]
        %v294 = vld [vmem:[%s1 + $0x60] sm:$0xf]
        %v295 = vld [vmem:[%s1 + $0x64] sm:$0xf]
        %v296 = vld [vmem:[%s1 + $0x68] sm:$0xf]
        %v393 = vunpack.c.l.b16 %v174
        %v394 = vunpack.c.h.b16 %v174
        %v395 = vunpack.c.l.b16 %v175
        %v396 = vunpack.c.h.b16 %v175
        %v397 = vunpack.c.l.b16 %v176
        %v398 = vunpack.c.h.b16 %v176
        %v399 = vunpack.c.l.b16 %v177
        %v400 = vunpack.c.h.b16 %v177
        %v401 = vunpack.c.l.b16 %v178
        %v402 = vunpack.c.h.b16 %v178
        %v403 = vunpack.c.l.b16 %v179
        %v404 = vunpack.c.h.b16 %v179
        %v405 = vunpack.c.l.b16 %v180
        %v406 = vunpack.c.h.b16 %v180
        %v407 = vunpack.c.l.b16 %v181
        %v408 = vunpack.c.h.b16 %v181
        %v409 = vunpack.c.l.b16 %v182
        %v410 = vunpack.c.h.b16 %v182
        %v411 = vunpack.c.l.b16 %v183
        %v412 = vunpack.c.h.b16 %v183
        %v413 = vunpack.c.l.b16 %v184
        %v414 = vunpack.c.h.b16 %v184
        %v415 = vunpack.c.l.b16 %v185
        %v416 = vunpack.c.h.b16 %v185
        %v417 = vunpack.c.l.b16 %v186
        %v418 = vunpack.c.h.b16 %v186
        %v419 = vunpack.c.l.b16 %v187
        %v420 = vunpack.c.h.b16 %v187
        %v421 = vunpack.c.l.b16 %v188
        %v422 = vunpack.c.h.b16 %v188
        %v423 = vunpack.c.l.b16 %v189
        %v424 = vunpack.c.h.b16 %v189
        %v425 = vunpack.c.l.b16 %v190
        %v426 = vunpack.c.h.b16 %v190
        %v427 = vunpack.c.l.b16 %v191
        %v428 = vunpack.c.h.b16 %v191
        %v429 = vunpack.c.l.b16 %v192
        %v430 = vunpack.c.h.b16 %v192
        %v431 = vunpack.c.l.b16 %v193
        %v432 = vunpack.c.h.b16 %v193
        %v433 = vunpack.c.l.b16 %v194
        %v434 = vunpack.c.h.b16 %v194
        %v435 = vunpack.c.l.b16 %v195
        %v436 = vunpack.c.h.b16 %v195
        %v437 = vunpack.c.l.b16 %v196
        %v438 = vunpack.c.h.b16 %v196
        %v439 = vunpack.c.l.b16 %v197
        %v440 = vunpack.c.h.b16 %v197
        %v441 = vunpack.c.l.b16 %v198
        %v442 = vunpack.c.h.b16 %v198
        %v443 = vunpack.c.l.b16 %v199
        %v444 = vunpack.c.h.b16 %v199
        %v445 = vunpack.c.l.b16 %v200
        %v446 = vunpack.c.h.b16 %v200
        %v447 = vunpack.c.l.b16 %v201
        %v448 = vunpack.c.h.b16 %v201
        %v449 = vunpack.c.l.b16 %v202
        %v450 = vunpack.c.h.b16 %v202
        %v451 = vunpack.c.l.b16 %v203
        %v452 = vunpack.c.h.b16 %v203
        %v453 = vunpack.c.l.b16 %v204
        %v454 = vunpack.c.h.b16 %v204
        %v455 = vunpack.c.l.b16 %v205
        %v456 = vunpack.c.h.b16 %v205
        %v457 = vunpack.c.l.b16 %v206
        %v458 = vunpack.c.h.b16 %v206
        %v459 = vunpack.c.l.b16 %v207
        %v460 = vunpack.c.h.b16 %v207
        %v461 = vunpack.c.l.b16 %v208
        %v462 = vunpack.c.h.b16 %v208
        %v463 = vunpack.c.l.b16 %v209
        %v464 = vunpack.c.h.b16 %v209
        %v465 = vunpack.c.l.b16 %v210
        %v466 = vunpack.c.h.b16 %v210
        %v467 = vunpack.c.l.b16 %v211
        %v468 = vunpack.c.h.b16 %v211
        %v469 = vunpack.c.l.b16 %v212
        %v470 = vunpack.c.h.b16 %v212
        %v471 = vunpack.c.l.b16 %v213
        %v472 = vunpack.c.h.b16 %v213
        %v473 = vunpack.c.l.b16 %v214
        %v474 = vunpack.c.h.b16 %v214
        %v475 = vunpack.c.l.b16 %v215
        %v476 = vunpack.c.h.b16 %v215
        %v477 = vunpack.c.l.b16 %v216
        %v478 = vunpack.c.h.b16 %v216
        %v479 = vunpack.c.l.b16 %v217
        %v480 = vunpack.c.h.b16 %v217
        %v481 = vunpack.c.l.b16 %v218
        %v482 = vunpack.c.h.b16 %v218
        %v483 = vunpack.c.l.b16 %v219
        %v484 = vunpack.c.h.b16 %v219
        %v485 = vunpack.c.l.b16 %v220
        %v486 = vunpack.c.h.b16 %v220
        %v487 = vunpack.c.l.b16 %v221
        %v488 = vunpack.c.h.b16 %v221
        %v489 = vunpack.c.l.b16 %v222
        %v490 = vunpack.c.h.b16 %v222
        %v491 = vunpack.c.l.b16 %v223
        %v492 = vunpack.c.h.b16 %v223
        %v493 = vunpack.c.l.b16 %v224
        %v494 = vunpack.c.h.b16 %v224
        %v495 = vunpack.c.l.b16 %v225
        %v496 = vunpack.c.h.b16 %v225
        %v497 = vunpack.c.l.b16 %v226
        %v498 = vunpack.c.h.b16 %v226
        %v499 = vunpack.c.l.b16 %v227
        %v500 = vunpack.c.h.b16 %v227
        %v501 = vunpack.c.l.b16 %v228
        %v502 = vunpack.c.h.b16 %v228
        %v503 = vunpack.c.l.b16 %v229
        %v504 = vunpack.c.h.b16 %v229
        %v505 = vunpack.c.l.b16 %v230
        %v506 = vunpack.c.h.b16 %v230
        %v507 = vunpack.c.l.b16 %v231
        %v508 = vunpack.c.h.b16 %v231
        %v509 = vunpack.c.l.b16 %v232
        %v510 = vunpack.c.h.b16 %v232
        %v511 = vunpack.c.l.b16 %v233
        %v512 = vunpack.c.h.b16 %v233
        %v513 = vunpack.c.l.b16 %v234
        %v514 = vunpack.c.h.b16 %v234
        %v515 = vunpack.c.l.b16 %v235
        %v516 = vunpack.c.h.b16 %v235
        %v517 = vunpack.c.l.b16 %v236
        %v518 = vunpack.c.h.b16 %v236
        %v519 = vunpack.c.l.b16 %v237
        %v520 = vunpack.c.h.b16 %v237
        %v521 = vunpack.c.l.b16 %v238
        %v522 = vunpack.c.h.b16 %v238
        %v523 = vunpack.c.l.b16 %v239
        %v524 = vunpack.c.h.b16 %v239
        %v525 = vunpack.c.l.b16 %v240
        %v526 = vunpack.c.h.b16 %v240
        %v527 = vunpack.c.l.b16 %v241
        %v528 = vunpack.c.h.b16 %v241
        %v529 = vunpack.c.l.b16 %v242
        %v530 = vunpack.c.h.b16 %v242
        %v531 = vunpack.c.l.b16 %v243
        %v532 = vunpack.c.h.b16 %v243
        %v533 = vunpack.c.l.b16 %v244
        %v534 = vunpack.c.h.b16 %v244
        %v535 = vunpack.c.l.b16 %v245
        %v536 = vunpack.c.h.b16 %v245
        %v537 = vunpack.c.l.b16 %v246
        %v538 = vunpack.c.h.b16 %v246
        %v539 = vunpack.c.l.b16 %v247
        %v540 = vunpack.c.h.b16 %v247
        %v541 = vunpack.c.l.b16 %v248
        %v542 = vunpack.c.h.b16 %v248
        %v543 = vunpack.c.l.b16 %v249
        %v544 = vunpack.c.h.b16 %v249
        %v545 = vunpack.c.l.b16 %v250
        %v546 = vunpack.c.h.b16 %v250
        %v547 = vunpack.c.l.b16 %v251
        %v548 = vunpack.c.h.b16 %v251
        %v549 = vunpack.c.l.b16 %v252
        %v550 = vunpack.c.h.b16 %v252
        %v551 = vunpack.c.l.b16 %v253
        %v552 = vunpack.c.h.b16 %v253
        %v553 = vunpack.c.l.b16 %v254
        %v554 = vunpack.c.h.b16 %v254
        %v555 = vunpack.c.l.b16 %v255
        %v556 = vunpack.c.h.b16 %v255
        %v557 = vunpack.c.l.b16 %v256
        %v558 = vunpack.c.h.b16 %v256
        %v559 = vunpack.c.l.b16 %v257
        %v560 = vunpack.c.h.b16 %v257
        %v561 = vunpack.c.l.b16 %v258
        %v562 = vunpack.c.h.b16 %v258
        %v563 = vunpack.c.l.b16 %v259
        %v564 = vunpack.c.h.b16 %v259
        %v565 = vunpack.c.l.b16 %v260
        %v566 = vunpack.c.h.b16 %v260
        %v567 = vunpack.c.l.b16 %v261
        %v568 = vunpack.c.h.b16 %v261
        %v569 = vunpack.c.l.b16 %v262
        %v570 = vunpack.c.h.b16 %v262
        %v571 = vunpack.c.l.b16 %v263
        %v572 = vunpack.c.h.b16 %v263
        %v573 = vunpack.c.l.b16 %v264
        %v574 = vunpack.c.h.b16 %v264
        %v575 = vunpack.c.l.b16 %v265
        %v576 = vunpack.c.h.b16 %v265
        %v577 = vunpack.c.l.b16 %v266
        %v578 = vunpack.c.h.b16 %v266
        %v579 = vunpack.c.l.b16 %v267
        %v580 = vunpack.c.h.b16 %v267
        %v581 = vunpack.c.l.b16 %v268
        %v582 = vunpack.c.h.b16 %v268
        %v583 = vunpack.c.l.b16 %v269
        %v584 = vunpack.c.h.b16 %v269
        %v585 = vpack.c.b16 %v395, %v393
        %v586 = vpack.c.b16 %v396, %v394
        %v587 = vpack.c.b16 %v399, %v397
        %v588 = vpack.c.b16 %v400, %v398
        %v589 = vpack.c.b16 %v403, %v401
        %v590 = vpack.c.b16 %v404, %v402
        %v591 = vpack.c.b16 %v407, %v405
        %v592 = vpack.c.b16 %v408, %v406
        %v593 = vpack.c.b16 %v411, %v409
        %v594 = vpack.c.b16 %v412, %v410
        %v595 = vpack.c.b16 %v415, %v413
        %v596 = vpack.c.b16 %v416, %v414
        %v597 = vpack.c.b16 %v419, %v417
        %v598 = vpack.c.b16 %v420, %v418
        %v599 = vpack.c.b16 %v423, %v421
        %v600 = vpack.c.b16 %v424, %v422
        %v601 = vpack.c.b16 %v427, %v425
        %v602 = vpack.c.b16 %v428, %v426
        %v603 = vpack.c.b16 %v431, %v429
        %v604 = vpack.c.b16 %v432, %v430
        %v605 = vpack.c.b16 %v435, %v433
        %v606 = vpack.c.b16 %v436, %v434
        %v607 = vpack.c.b16 %v439, %v437
        %v608 = vpack.c.b16 %v440, %v438
        %v609 = vpack.c.b16 %v443, %v441
        %v610 = vpack.c.b16 %v444, %v442
        %v611 = vpack.c.b16 %v447, %v445
        %v612 = vpack.c.b16 %v448, %v446
        %v613 = vpack.c.b16 %v451, %v449
        %v614 = vpack.c.b16 %v452, %v450
        %v615 = vpack.c.b16 %v455, %v453
        %v616 = vpack.c.b16 %v456, %v454
        %v617 = vpack.c.b16 %v459, %v457
        %v618 = vpack.c.b16 %v460, %v458
        %v619 = vpack.c.b16 %v463, %v461
        %v620 = vpack.c.b16 %v464, %v462
        %v621 = vpack.c.b16 %v467, %v465
        %v622 = vpack.c.b16 %v468, %v466
        %v623 = vpack.c.b16 %v471, %v469
        %v624 = vpack.c.b16 %v472, %v470
        %v625 = vpack.c.b16 %v475, %v473
        %v626 = vpack.c.b16 %v476, %v474
        %v627 = vpack.c.b16 %v479, %v477
        %v628 = vpack.c.b16 %v480, %v478
        %v629 = vpack.c.b16 %v483, %v481
        %v630 = vpack.c.b16 %v484, %v482
        %v631 = vpack.c.b16 %v487, %v485
        %v632 = vpack.c.b16 %v488, %v486
        %v633 = vpack.c.b16 %v491, %v489
        %v634 = vpack.c.b16 %v492, %v490
        %v635 = vpack.c.b16 %v495, %v493
        %v636 = vpack.c.b16 %v496, %v494
        %v637 = vpack.c.b16 %v499, %v497
        %v638 = vpack.c.b16 %v500, %v498
        %v639 = vpack.c.b16 %v503, %v501
        %v640 = vpack.c.b16 %v504, %v502
        %v641 = vpack.c.b16 %v507, %v505
        %v642 = vpack.c.b16 %v508, %v506
        %v643 = vpack.c.b16 %v511, %v509
        %v644 = vpack.c.b16 %v512, %v510
        %v645 = vpack.c.b16 %v515, %v513
        %v646 = vpack.c.b16 %v516, %v514
        %v647 = vpack.c.b16 %v519, %v517
        %v648 = vpack.c.b16 %v520, %v518
        %v649 = vpack.c.b16 %v523, %v521
        %v650 = vpack.c.b16 %v524, %v522
        %v651 = vpack.c.b16 %v527, %v525
        %v652 = vpack.c.b16 %v528, %v526
        %v653 = vpack.c.b16 %v531, %v529
        %v654 = vpack.c.b16 %v532, %v530
        %v655 = vpack.c.b16 %v535, %v533
        %v656 = vpack.c.b16 %v536, %v534
        %v657 = vpack.c.b16 %v539, %v537
        %v658 = vpack.c.b16 %v540, %v538
        %v659 = vpack.c.b16 %v543, %v541
        %v660 = vpack.c.b16 %v544, %v542
        %v661 = vpack.c.b16 %v547, %v545
        %v662 = vpack.c.b16 %v548, %v546
        %v663 = vpack.c.b16 %v551, %v549
        %v664 = vpack.c.b16 %v552, %v550
        %v665 = vpack.c.b16 %v555, %v553
        %v666 = vpack.c.b16 %v556, %v554
        %v667 = vpack.c.b16 %v559, %v557
        %v668 = vpack.c.b16 %v560, %v558
        %v669 = vpack.c.b16 %v563, %v561
        %v670 = vpack.c.b16 %v564, %v562
        %v671 = vpack.c.b16 %v567, %v565
        %v672 = vpack.c.b16 %v568, %v566
        %v673 = vpack.c.b16 %v571, %v569
        %v674 = vpack.c.b16 %v572, %v570
        %v675 = vpack.c.b16 %v575, %v573
        %v676 = vpack.c.b16 %v576, %v574
        %v677 = vpack.c.b16 %v579, %v577
        %v678 = vpack.c.b16 %v580, %v578
        %v679 = vpack.c.b16 %v583, %v581
        %v680 = vpack.c.b16 %v584, %v582
        %v756 = vunpack.c.l.b16 %v270
        %v757 = vunpack.c.l.b16 %v271
        %v758 = vunpack.c.l.b16 %v272
        %v759 = vunpack.c.l.b16 %v273
        %v760 = vunpack.c.l.b16 %v274
        %v761 = vunpack.c.l.b16 %v275
        %v762 = vunpack.c.l.b16 %v276
        %v763 = vunpack.c.l.b16 %v277
        %v764 = vunpack.c.l.b16 %v278
        %v765 = vunpack.c.l.b16 %v279
        %v766 = vunpack.c.l.b16 %v280
        %v767 = vunpack.c.l.b16 %v281
        %v768 = vunpack.c.l.b16 %v282
        %v769 = vunpack.c.l.b16 %v283
        %v770 = vunpack.c.l.b16 %v284
        %v771 = vunpack.c.l.b16 %v285
        %v772 = vunpack.c.l.b16 %v286
        %v773 = vunpack.c.l.b16 %v287
        %v774 = vunpack.c.l.b16 %v288
        %v775 = vunpack.c.l.b16 %v289
        %v776 = vunpack.c.l.b16 %v290
        %v777 = vunpack.c.l.b16 %v291
        %v778 = vunpack.c.l.b16 %v292
        %v779 = vunpack.c.l.b16 %v293
        %v780 = vunpack.c.l.b16 %v294
        %v781 = vunpack.c.l.b16 %v295
        %v782 = vunpack.c.l.b16 %v296
        %v783 = vpack.c.b16 %v757, %v756
        %v784 = vpack.c.b16 %v759, %v758
        %v785 = vpack.c.b16 %v761, %v760
        %v786 = vpack.c.b16 %v763, %v762
        %v787 = vpack.c.b16 %v765, %v764
        %v788 = vpack.c.b16 %v767, %v766
        %v789 = vpack.c.b16 %v769, %v768
        %v790 = vpack.c.b16 %v771, %v770
        %v791 = vpack.c.b16 %v773, %v772
        %v792 = vpack.c.b16 %v775, %v774
        %v793 = vpack.c.b16 %v777, %v776
        %v794 = vpack.c.b16 %v779, %v778
        %v795 = vpack.c.b16 %v781, %v780
        %v796 = vpack.c.b16 %v782, %v782
        %vm810 = vcmask 719872
        %v812 = vsel %vm810, %v586, 0
        %v815 = vsel %vm810, %v588, 0
        %v818 = vsel %vm810, %v590, 0
        %v821 = vsel %vm810, %v592, 0
        %v824 = vsel %vm810, %v594, 0
        %v827 = vsel %vm810, %v596, 0
        %v830 = vsel %vm810, %v598, 0
        %v833 = vsel %vm810, %v600, 0
        %v836 = vsel %vm810, %v602, 0
        %v839 = vsel %vm810, %v604, 0
        %v842 = vsel %vm810, %v606, 0
        %v845 = vsel %vm810, %v608, 0
        %v848 = vsel %vm810, %v610, 0
        %v851 = vsel %vm810, %v612, 0
        %v854 = vsel %vm810, %v614, 0
        %v857 = vsel %vm810, %v616, 0
        %v860 = vsel %vm810, %v618, 0
        %v863 = vsel %vm810, %v620, 0
        %v866 = vsel %vm810, %v622, 0
        %v869 = vsel %vm810, %v624, 0
        %v872 = vsel %vm810, %v626, 0
        %v875 = vsel %vm810, %v628, 0
        %v878 = vsel %vm810, %v630, 0
        %v881 = vsel %vm810, %v632, 0
        %v884 = vsel %vm810, %v634, 0
        %v887 = vsel %vm810, %v636, 0
        %v890 = vsel %vm810, %v638, 0
        %v893 = vsel %vm810, %v640, 0
        %v896 = vsel %vm810, %v642, 0
        %v899 = vsel %vm810, %v644, 0
        %v902 = vsel %vm810, %v646, 0
        %v905 = vsel %vm810, %v648, 0
        %v908 = vsel %vm810, %v650, 0
        %v911 = vsel %vm810, %v652, 0
        %v914 = vsel %vm810, %v654, 0
        %v917 = vsel %vm810, %v656, 0
        %v920 = vsel %vm810, %v658, 0
        %v923 = vsel %vm810, %v660, 0
        %v926 = vsel %vm810, %v662, 0
        %v929 = vsel %vm810, %v664, 0
        %v932 = vsel %vm810, %v666, 0
        %v935 = vsel %vm810, %v668, 0
        %v938 = vsel %vm810, %v670, 0
        %v941 = vsel %vm810, %v672, 0
        %v944 = vsel %vm810, %v674, 0
        %v947 = vsel %vm810, %v676, 0
        %v950 = vsel %vm810, %v678, 0
        %v953 = vsel %vm810, %v680, 0
        %vm955 = vcmask 1043456
        %v957 = vsel %vm955, %v796, 0
        %959 = vmatpush.bf16.msra.mxu0 %v790
        %960 = vmatpush.bf16.msra.mxu0 %v789
        %961 = vmatpush.bf16.msra.mxu0 %v788
        %962 = vmatpush.bf16.msra.mxu0 %v787
        %963 = vmatpush.bf16.msra.mxu0 %v786
        %964 = vmatpush.bf16.msra.mxu0 %v785
        %965 = vmatpush.bf16.msra.mxu0 %v784
        %966 = vmatpush.bf16.msra.mxu0 %v783
        %967 = vmatmul.bf16.gmra.mxu0 %v585
        %v968 = vpop.f32.mrf.mxu0
        %v969 = vadd.f32 0.0, %v968
        %v970 = vpop.f32.mrf.mxu0
        %v971 = vadd.f32 0.0, %v970
        %972 = vmatmul.bf16.gmra.mxu0 %v587
        %v973 = vpop.f32.mrf.mxu0
        %v974 = vadd.f32 0.0, %v973
        %v975 = vpop.f32.mrf.mxu0
        %v976 = vadd.f32 0.0, %v975
        %977 = vmatmul.bf16.gmra.mxu0 %v589
        %v978 = vpop.f32.mrf.mxu0
        %v979 = vadd.f32 0.0, %v978
        %v980 = vpop.f32.mrf.mxu0
        %v981 = vadd.f32 0.0, %v980
        %982 = vmatmul.bf16.gmra.mxu0 %v591
        %v983 = vpop.f32.mrf.mxu0
        %v984 = vadd.f32 0.0, %v983
        %v985 = vpop.f32.mrf.mxu0
        %v986 = vadd.f32 0.0, %v985
        %987 = vmatmul.bf16.gmra.mxu0 %v593
        %v988 = vpop.f32.mrf.mxu0
        %v989 = vadd.f32 0.0, %v988
        %v990 = vpop.f32.mrf.mxu0
        %v991 = vadd.f32 0.0, %v990
        %992 = vmatmul.bf16.gmra.mxu0 %v595
        %v993 = vpop.f32.mrf.mxu0
        %v994 = vadd.f32 0.0, %v993
        %v995 = vpop.f32.mrf.mxu0
        %v996 = vadd.f32 0.0, %v995
        %997 = vmatmul.bf16.gmra.mxu0 %v597
        %v998 = vpop.f32.mrf.mxu0
        %v999 = vadd.f32 0.0, %v998
        %v1000 = vpop.f32.mrf.mxu0
        %v1001 = vadd.f32 0.0, %v1000
        %1002 = vmatmul.bf16.gmra.mxu0 %v599
        %v1003 = vpop.f32.mrf.mxu0
        %v1004 = vadd.f32 0.0, %v1003
        %v1005 = vpop.f32.mrf.mxu0
        %v1006 = vadd.f32 0.0, %v1005
        %1007 = vmatmul.bf16.gmra.mxu0 %v601
        %v1008 = vpop.f32.mrf.mxu0
        %v1009 = vadd.f32 0.0, %v1008
        %v1010 = vpop.f32.mrf.mxu0
        %v1011 = vadd.f32 0.0, %v1010
        %1012 = vmatmul.bf16.gmra.mxu0 %v603
        %v1013 = vpop.f32.mrf.mxu0
        %v1014 = vadd.f32 0.0, %v1013
        %v1015 = vpop.f32.mrf.mxu0
        %v1016 = vadd.f32 0.0, %v1015
        %1017 = vmatmul.bf16.gmra.mxu0 %v605
        %v1018 = vpop.f32.mrf.mxu0
        %v1019 = vadd.f32 0.0, %v1018
        %v1020 = vpop.f32.mrf.mxu0
        %v1021 = vadd.f32 0.0, %v1020
        %1022 = vmatmul.bf16.gmra.mxu0 %v607
        %v1023 = vpop.f32.mrf.mxu0
        %v1024 = vadd.f32 0.0, %v1023
        %v1025 = vpop.f32.mrf.mxu0
        %v1026 = vadd.f32 0.0, %v1025
        %1027 = vmatmul.bf16.gmra.mxu0 %v609
        %v1028 = vpop.f32.mrf.mxu0
        %v1029 = vadd.f32 0.0, %v1028
        %v1030 = vpop.f32.mrf.mxu0
        %v1031 = vadd.f32 0.0, %v1030
        %1032 = vmatmul.bf16.gmra.mxu0 %v611
        %v1033 = vpop.f32.mrf.mxu0
        %v1034 = vadd.f32 0.0, %v1033
        %v1035 = vpop.f32.mrf.mxu0
        %v1036 = vadd.f32 0.0, %v1035
        %1037 = vmatmul.bf16.gmra.mxu0 %v613
        %v1038 = vpop.f32.mrf.mxu0
        %v1039 = vadd.f32 0.0, %v1038
        %v1040 = vpop.f32.mrf.mxu0
        %v1041 = vadd.f32 0.0, %v1040
        %1042 = vmatmul.bf16.gmra.mxu0 %v615
        %v1043 = vpop.f32.mrf.mxu0
        %v1044 = vadd.f32 0.0, %v1043
        %v1045 = vpop.f32.mrf.mxu0
        %v1046 = vadd.f32 0.0, %v1045
        %1047 = vmatmul.bf16.gmra.mxu0 %v617
        %v1048 = vpop.f32.mrf.mxu0
        %v1049 = vadd.f32 0.0, %v1048
        %v1050 = vpop.f32.mrf.mxu0
        %v1051 = vadd.f32 0.0, %v1050
        %1052 = vmatmul.bf16.gmra.mxu0 %v619
        %v1053 = vpop.f32.mrf.mxu0
        %v1054 = vadd.f32 0.0, %v1053
        %v1055 = vpop.f32.mrf.mxu0
        %v1056 = vadd.f32 0.0, %v1055
        %1057 = vmatmul.bf16.gmra.mxu0 %v621
        %v1058 = vpop.f32.mrf.mxu0
        %v1059 = vadd.f32 0.0, %v1058
        %v1060 = vpop.f32.mrf.mxu0
        %v1061 = vadd.f32 0.0, %v1060
        %1062 = vmatmul.bf16.gmra.mxu0 %v623
        %v1063 = vpop.f32.mrf.mxu0
        %v1064 = vadd.f32 0.0, %v1063
        %v1065 = vpop.f32.mrf.mxu0
        %v1066 = vadd.f32 0.0, %v1065
        %1067 = vmatmul.bf16.gmra.mxu0 %v625
        %v1068 = vpop.f32.mrf.mxu0
        %v1069 = vadd.f32 0.0, %v1068
        %v1070 = vpop.f32.mrf.mxu0
        %v1071 = vadd.f32 0.0, %v1070
        %1072 = vmatmul.bf16.gmra.mxu0 %v627
        %v1073 = vpop.f32.mrf.mxu0
        %v1074 = vadd.f32 0.0, %v1073
        %v1075 = vpop.f32.mrf.mxu0
        %v1076 = vadd.f32 0.0, %v1075
        %1077 = vmatmul.bf16.gmra.mxu0 %v629
        %v1078 = vpop.f32.mrf.mxu0
        %v1079 = vadd.f32 0.0, %v1078
        %v1080 = vpop.f32.mrf.mxu0
        %v1081 = vadd.f32 0.0, %v1080
        %1082 = vmatmul.bf16.gmra.mxu0 %v631
        %v1083 = vpop.f32.mrf.mxu0
        %v1084 = vadd.f32 0.0, %v1083
        %v1085 = vpop.f32.mrf.mxu0
        %v1086 = vadd.f32 0.0, %v1085
        %1087 = vmatmul.bf16.gmra.mxu0 %v633
        %v1088 = vpop.f32.mrf.mxu0
        %v1089 = vadd.f32 0.0, %v1088
        %v1090 = vpop.f32.mrf.mxu0
        %v1091 = vadd.f32 0.0, %v1090
        %1092 = vmatmul.bf16.gmra.mxu0 %v635
        %v1093 = vpop.f32.mrf.mxu0
        %v1094 = vadd.f32 0.0, %v1093
        %v1095 = vpop.f32.mrf.mxu0
        %v1096 = vadd.f32 0.0, %v1095
        %1097 = vmatmul.bf16.gmra.mxu0 %v637
        %v1098 = vpop.f32.mrf.mxu0
        %v1099 = vadd.f32 0.0, %v1098
        %v1100 = vpop.f32.mrf.mxu0
        %v1101 = vadd.f32 0.0, %v1100
        %1102 = vmatmul.bf16.gmra.mxu0 %v639
        %v1103 = vpop.f32.mrf.mxu0
        %v1104 = vadd.f32 0.0, %v1103
        %v1105 = vpop.f32.mrf.mxu0
        %v1106 = vadd.f32 0.0, %v1105
        %1107 = vmatmul.bf16.gmra.mxu0 %v641
        %v1108 = vpop.f32.mrf.mxu0
        %v1109 = vadd.f32 0.0, %v1108
        %v1110 = vpop.f32.mrf.mxu0
        %v1111 = vadd.f32 0.0, %v1110
        %1112 = vmatmul.bf16.gmra.mxu0 %v643
        %v1113 = vpop.f32.mrf.mxu0
        %v1114 = vadd.f32 0.0, %v1113
        %v1115 = vpop.f32.mrf.mxu0
        %v1116 = vadd.f32 0.0, %v1115
        %1117 = vmatmul.bf16.gmra.mxu0 %v645
        %v1118 = vpop.f32.mrf.mxu0
        %v1119 = vadd.f32 0.0, %v1118
        %v1120 = vpop.f32.mrf.mxu0
        %v1121 = vadd.f32 0.0, %v1120
        %1122 = vmatmul.bf16.gmra.mxu0 %v647
        %v1123 = vpop.f32.mrf.mxu0
        %v1124 = vadd.f32 0.0, %v1123
        %v1125 = vpop.f32.mrf.mxu0
        %v1126 = vadd.f32 0.0, %v1125
        %1127 = vmatmul.bf16.gmra.mxu0 %v649
        %v1128 = vpop.f32.mrf.mxu0
        %v1129 = vadd.f32 0.0, %v1128
        %v1130 = vpop.f32.mrf.mxu0
        %v1131 = vadd.f32 0.0, %v1130
        %1132 = vmatmul.bf16.gmra.mxu0 %v651
        %v1133 = vpop.f32.mrf.mxu0
        %v1134 = vadd.f32 0.0, %v1133
        %v1135 = vpop.f32.mrf.mxu0
        %v1136 = vadd.f32 0.0, %v1135
        %1137 = vmatmul.bf16.gmra.mxu0 %v653
        %v1138 = vpop.f32.mrf.mxu0
        %v1139 = vadd.f32 0.0, %v1138
        %v1140 = vpop.f32.mrf.mxu0
        %v1141 = vadd.f32 0.0, %v1140
        %1142 = vmatmul.bf16.gmra.mxu0 %v655
        %v1143 = vpop.f32.mrf.mxu0
        %v1144 = vadd.f32 0.0, %v1143
        %v1145 = vpop.f32.mrf.mxu0
        %v1146 = vadd.f32 0.0, %v1145
        %1147 = vmatmul.bf16.gmra.mxu0 %v657
        %v1148 = vpop.f32.mrf.mxu0
        %v1149 = vadd.f32 0.0, %v1148
        %v1150 = vpop.f32.mrf.mxu0
        %v1151 = vadd.f32 0.0, %v1150
        %1152 = vmatmul.bf16.gmra.mxu0 %v659
        %v1153 = vpop.f32.mrf.mxu0
        %v1154 = vadd.f32 0.0, %v1153
        %v1155 = vpop.f32.mrf.mxu0
        %v1156 = vadd.f32 0.0, %v1155
        %1157 = vmatmul.bf16.gmra.mxu0 %v661
        %v1158 = vpop.f32.mrf.mxu0
        %v1159 = vadd.f32 0.0, %v1158
        %v1160 = vpop.f32.mrf.mxu0
        %v1161 = vadd.f32 0.0, %v1160
        %1162 = vmatmul.bf16.gmra.mxu0 %v663
        %v1163 = vpop.f32.mrf.mxu0
        %v1164 = vadd.f32 0.0, %v1163
        %v1165 = vpop.f32.mrf.mxu0
        %v1166 = vadd.f32 0.0, %v1165
        %1167 = vmatmul.bf16.gmra.mxu0 %v665
        %v1168 = vpop.f32.mrf.mxu0
        %v1169 = vadd.f32 0.0, %v1168
        %v1170 = vpop.f32.mrf.mxu0
        %v1171 = vadd.f32 0.0, %v1170
        %1172 = vmatmul.bf16.gmra.mxu0 %v667
        %v1173 = vpop.f32.mrf.mxu0
        %v1174 = vadd.f32 0.0, %v1173
        %v1175 = vpop.f32.mrf.mxu0
        %v1176 = vadd.f32 0.0, %v1175
        %1177 = vmatmul.bf16.gmra.mxu0 %v669
        %v1178 = vpop.f32.mrf.mxu0
        %v1179 = vadd.f32 0.0, %v1178
        %v1180 = vpop.f32.mrf.mxu0
        %v1181 = vadd.f32 0.0, %v1180
        %1182 = vmatmul.bf16.gmra.mxu0 %v671
        %v1183 = vpop.f32.mrf.mxu0
        %v1184 = vadd.f32 0.0, %v1183
        %v1185 = vpop.f32.mrf.mxu0
        %v1186 = vadd.f32 0.0, %v1185
        %1187 = vmatmul.bf16.gmra.mxu0 %v673
        %v1188 = vpop.f32.mrf.mxu0
        %v1189 = vadd.f32 0.0, %v1188
        %v1190 = vpop.f32.mrf.mxu0
        %v1191 = vadd.f32 0.0, %v1190
        %1192 = vmatmul.bf16.gmra.mxu0 %v675
        %v1193 = vpop.f32.mrf.mxu0
        %v1194 = vadd.f32 0.0, %v1193
        %v1195 = vpop.f32.mrf.mxu0
        %v1196 = vadd.f32 0.0, %v1195
        %1197 = vmatmul.bf16.gmra.mxu0 %v677
        %v1198 = vpop.f32.mrf.mxu0
        %v1199 = vadd.f32 0.0, %v1198
        %v1200 = vpop.f32.mrf.mxu0
        %v1201 = vadd.f32 0.0, %v1200
        %1202 = vmatmul.bf16.gmra.mxu0 %v679
        %v1203 = vpop.f32.mrf.mxu0
        %v1204 = vadd.f32 0.0, %v1203
        %v1205 = vpop.f32.mrf.mxu0
        %v1206 = vadd.f32 0.0, %v1205
        %1207 = vdwg.mxu0
        %1208 = vmatpush.bf16.msra.mxu0 0
        %1209 = vmatpush.bf16.msra.mxu0 0
        %1210 = vmatpush.bf16.msra.mxu0 %v957
        %1211 = vmatpush.bf16.msra.mxu0 %v795
        %1212 = vmatpush.bf16.msra.mxu0 %v794
        %1213 = vmatpush.bf16.msra.mxu0 %v793
        %1214 = vmatpush.bf16.msra.mxu0 %v792
        %1215 = vmatpush.bf16.msra.mxu0 %v791
        %1216 = vmatmul.bf16.gmra.mxu0 %v812
        %v1217 = vpop.f32.mrf.mxu0
        %v1218 = vadd.f32 %v969, %v1217
        %v1219 = vpop.f32.mrf.mxu0
        %v1220 = vadd.f32 %v971, %v1219
        %1221 = vmatmul.bf16.gmra.mxu0 %v815
        %v1222 = vpop.f32.mrf.mxu0
        %v1223 = vadd.f32 %v974, %v1222
        %v1224 = vpop.f32.mrf.mxu0
        %v1225 = vadd.f32 %v976, %v1224
        %1226 = vmatmul.bf16.gmra.mxu0 %v818
        %v1227 = vpop.f32.mrf.mxu0
        %v1228 = vadd.f32 %v979, %v1227
        %v1229 = vpop.f32.mrf.mxu0
        %v1230 = vadd.f32 %v981, %v1229
        %1231 = vmatmul.bf16.gmra.mxu0 %v821
        %v1232 = vpop.f32.mrf.mxu0
        %v1233 = vadd.f32 %v984, %v1232
        %v1234 = vpop.f32.mrf.mxu0
        %v1235 = vadd.f32 %v986, %v1234
        %1236 = vmatmul.bf16.gmra.mxu0 %v824
        %v1237 = vpop.f32.mrf.mxu0
        %v1238 = vadd.f32 %v989, %v1237
        %v1239 = vpop.f32.mrf.mxu0
        %v1240 = vadd.f32 %v991, %v1239
        %1241 = vmatmul.bf16.gmra.mxu0 %v827
        %v1242 = vpop.f32.mrf.mxu0
        %v1243 = vadd.f32 %v994, %v1242
        %v1244 = vpop.f32.mrf.mxu0
        %v1245 = vadd.f32 %v996, %v1244
        %1246 = vmatmul.bf16.gmra.mxu0 %v830
        %v1247 = vpop.f32.mrf.mxu0
        %v1248 = vadd.f32 %v999, %v1247
        %v1249 = vpop.f32.mrf.mxu0
        %v1250 = vadd.f32 %v1001, %v1249
        %1251 = vmatmul.bf16.gmra.mxu0 %v833
        %v1252 = vpop.f32.mrf.mxu0
        %v1253 = vadd.f32 %v1004, %v1252
        %v1254 = vpop.f32.mrf.mxu0
        %v1255 = vadd.f32 %v1006, %v1254
        %1256 = vmatmul.bf16.gmra.mxu0 %v836
        %v1257 = vpop.f32.mrf.mxu0
        %v1258 = vadd.f32 %v1009, %v1257
        %v1259 = vpop.f32.mrf.mxu0
        %v1260 = vadd.f32 %v1011, %v1259
        %1261 = vmatmul.bf16.gmra.mxu0 %v839
        %v1262 = vpop.f32.mrf.mxu0
        %v1263 = vadd.f32 %v1014, %v1262
        %v1264 = vpop.f32.mrf.mxu0
        %v1265 = vadd.f32 %v1016, %v1264
        %1266 = vmatmul.bf16.gmra.mxu0 %v842
        %v1267 = vpop.f32.mrf.mxu0
        %v1268 = vadd.f32 %v1019, %v1267
        %v1269 = vpop.f32.mrf.mxu0
        %v1270 = vadd.f32 %v1021, %v1269
        %1271 = vmatmul.bf16.gmra.mxu0 %v845
        %v1272 = vpop.f32.mrf.mxu0
        %v1273 = vadd.f32 %v1024, %v1272
        %v1274 = vpop.f32.mrf.mxu0
        %v1275 = vadd.f32 %v1026, %v1274
        %1276 = vmatmul.bf16.gmra.mxu0 %v848
        %v1277 = vpop.f32.mrf.mxu0
        %v1278 = vadd.f32 %v1029, %v1277
        %v1279 = vpop.f32.mrf.mxu0
        %v1280 = vadd.f32 %v1031, %v1279
        %1281 = vmatmul.bf16.gmra.mxu0 %v851
        %v1282 = vpop.f32.mrf.mxu0
        %v1283 = vadd.f32 %v1034, %v1282
        %v1284 = vpop.f32.mrf.mxu0
        %v1285 = vadd.f32 %v1036, %v1284
        %1286 = vmatmul.bf16.gmra.mxu0 %v854
        %v1287 = vpop.f32.mrf.mxu0
        %v1288 = vadd.f32 %v1039, %v1287
        %v1289 = vpop.f32.mrf.mxu0
        %v1290 = vadd.f32 %v1041, %v1289
        %1291 = vmatmul.bf16.gmra.mxu0 %v857
        %v1292 = vpop.f32.mrf.mxu0
        %v1293 = vadd.f32 %v1044, %v1292
        %v1294 = vpop.f32.mrf.mxu0
        %v1295 = vadd.f32 %v1046, %v1294
        %1296 = vmatmul.bf16.gmra.mxu0 %v860
        %v1297 = vpop.f32.mrf.mxu0
        %v1298 = vadd.f32 %v1049, %v1297
        %v1299 = vpop.f32.mrf.mxu0
        %v1300 = vadd.f32 %v1051, %v1299
        %1301 = vmatmul.bf16.gmra.mxu0 %v863
        %v1302 = vpop.f32.mrf.mxu0
        %v1303 = vadd.f32 %v1054, %v1302
        %v1304 = vpop.f32.mrf.mxu0
        %v1305 = vadd.f32 %v1056, %v1304
        %1306 = vmatmul.bf16.gmra.mxu0 %v866
        %v1307 = vpop.f32.mrf.mxu0
        %v1308 = vadd.f32 %v1059, %v1307
        %v1309 = vpop.f32.mrf.mxu0
        %v1310 = vadd.f32 %v1061, %v1309
        %1311 = vmatmul.bf16.gmra.mxu0 %v869
        %v1312 = vpop.f32.mrf.mxu0
        %v1313 = vadd.f32 %v1064, %v1312
        %v1314 = vpop.f32.mrf.mxu0
        %v1315 = vadd.f32 %v1066, %v1314
        %1316 = vmatmul.bf16.gmra.mxu0 %v872
        %v1317 = vpop.f32.mrf.mxu0
        %v1318 = vadd.f32 %v1069, %v1317
        %v1319 = vpop.f32.mrf.mxu0
        %v1320 = vadd.f32 %v1071, %v1319
        %1321 = vmatmul.bf16.gmra.mxu0 %v875
        %v1322 = vpop.f32.mrf.mxu0
        %v1323 = vadd.f32 %v1074, %v1322
        %v1324 = vpop.f32.mrf.mxu0
        %v1325 = vadd.f32 %v1076, %v1324
        %1326 = vmatmul.bf16.gmra.mxu0 %v878
        %v1327 = vpop.f32.mrf.mxu0
        %v1328 = vadd.f32 %v1079, %v1327
        %v1329 = vpop.f32.mrf.mxu0
        %v1330 = vadd.f32 %v1081, %v1329
        %1331 = vmatmul.bf16.gmra.mxu0 %v881
        %v1332 = vpop.f32.mrf.mxu0
        %v1333 = vadd.f32 %v1084, %v1332
        %v1334 = vpop.f32.mrf.mxu0
        %v1335 = vadd.f32 %v1086, %v1334
        %1336 = vmatmul.bf16.gmra.mxu0 %v884
        %v1337 = vpop.f32.mrf.mxu0
        %v1338 = vadd.f32 %v1089, %v1337
        %v1339 = vpop.f32.mrf.mxu0
        %v1340 = vadd.f32 %v1091, %v1339
        %1341 = vmatmul.bf16.gmra.mxu0 %v887
        %v1342 = vpop.f32.mrf.mxu0
        %v1343 = vadd.f32 %v1094, %v1342
        %v1344 = vpop.f32.mrf.mxu0
        %v1345 = vadd.f32 %v1096, %v1344
        %1346 = vmatmul.bf16.gmra.mxu0 %v890
        %v1347 = vpop.f32.mrf.mxu0
        %v1348 = vadd.f32 %v1099, %v1347
        %v1349 = vpop.f32.mrf.mxu0
        %v1350 = vadd.f32 %v1101, %v1349
        %1351 = vmatmul.bf16.gmra.mxu0 %v893
        %v1352 = vpop.f32.mrf.mxu0
        %v1353 = vadd.f32 %v1104, %v1352
        %v1354 = vpop.f32.mrf.mxu0
        %v1355 = vadd.f32 %v1106, %v1354
        %1356 = vmatmul.bf16.gmra.mxu0 %v896
        %v1357 = vpop.f32.mrf.mxu0
        %v1358 = vadd.f32 %v1109, %v1357
        %v1359 = vpop.f32.mrf.mxu0
        %v1360 = vadd.f32 %v1111, %v1359
        %1361 = vmatmul.bf16.gmra.mxu0 %v899
        %v1362 = vpop.f32.mrf.mxu0
        %v1363 = vadd.f32 %v1114, %v1362
        %v1364 = vpop.f32.mrf.mxu0
        %v1365 = vadd.f32 %v1116, %v1364
        %1366 = vmatmul.bf16.gmra.mxu0 %v902
        %v1367 = vpop.f32.mrf.mxu0
        %v1368 = vadd.f32 %v1119, %v1367
        %v1369 = vpop.f32.mrf.mxu0
        %v1370 = vadd.f32 %v1121, %v1369
        %1371 = vmatmul.bf16.gmra.mxu0 %v905
        %v1372 = vpop.f32.mrf.mxu0
        %v1373 = vadd.f32 %v1124, %v1372
        %v1374 = vpop.f32.mrf.mxu0
        %v1375 = vadd.f32 %v1126, %v1374
        %1376 = vmatmul.bf16.gmra.mxu0 %v908
        %v1377 = vpop.f32.mrf.mxu0
        %v1378 = vadd.f32 %v1129, %v1377
        %v1379 = vpop.f32.mrf.mxu0
        %v1380 = vadd.f32 %v1131, %v1379
        %1381 = vmatmul.bf16.gmra.mxu0 %v911
        %v1382 = vpop.f32.mrf.mxu0
        %v1383 = vadd.f32 %v1134, %v1382
        %v1384 = vpop.f32.mrf.mxu0
        %v1385 = vadd.f32 %v1136, %v1384
        %1386 = vmatmul.bf16.gmra.mxu0 %v914
        %v1387 = vpop.f32.mrf.mxu0
        %v1388 = vadd.f32 %v1139, %v1387
        %v1389 = vpop.f32.mrf.mxu0
        %v1390 = vadd.f32 %v1141, %v1389
        %1391 = vmatmul.bf16.gmra.mxu0 %v917
        %v1392 = vpop.f32.mrf.mxu0
        %v1393 = vadd.f32 %v1144, %v1392
        %v1394 = vpop.f32.mrf.mxu0
        %v1395 = vadd.f32 %v1146, %v1394
        %1396 = vmatmul.bf16.gmra.mxu0 %v920
        %v1397 = vpop.f32.mrf.mxu0
        %v1398 = vadd.f32 %v1149, %v1397
        %v1399 = vpop.f32.mrf.mxu0
        %v1400 = vadd.f32 %v1151, %v1399
        %1401 = vmatmul.bf16.gmra.mxu0 %v923
        %v1402 = vpop.f32.mrf.mxu0
        %v1403 = vadd.f32 %v1154, %v1402
        %v1404 = vpop.f32.mrf.mxu0
        %v1405 = vadd.f32 %v1156, %v1404
        %1406 = vmatmul.bf16.gmra.mxu0 %v926
        %v1407 = vpop.f32.mrf.mxu0
        %v1408 = vadd.f32 %v1159, %v1407
        %v1409 = vpop.f32.mrf.mxu0
        %v1410 = vadd.f32 %v1161, %v1409
        %1411 = vmatmul.bf16.gmra.mxu0 %v929
        %v1412 = vpop.f32.mrf.mxu0
        %v1413 = vadd.f32 %v1164, %v1412
        %v1414 = vpop.f32.mrf.mxu0
        %v1415 = vadd.f32 %v1166, %v1414
        %1416 = vmatmul.bf16.gmra.mxu0 %v932
        %v1417 = vpop.f32.mrf.mxu0
        %v1418 = vadd.f32 %v1169, %v1417
        %v1419 = vpop.f32.mrf.mxu0
        %v1420 = vadd.f32 %v1171, %v1419
        %1421 = vmatmul.bf16.gmra.mxu0 %v935
        %v1422 = vpop.f32.mrf.mxu0
        %v1423 = vadd.f32 %v1174, %v1422
        %v1424 = vpop.f32.mrf.mxu0
        %v1425 = vadd.f32 %v1176, %v1424
        %1426 = vmatmul.bf16.gmra.mxu0 %v938
        %v1427 = vpop.f32.mrf.mxu0
        %v1428 = vadd.f32 %v1179, %v1427
        %v1429 = vpop.f32.mrf.mxu0
        %v1430 = vadd.f32 %v1181, %v1429
        %1431 = vmatmul.bf16.gmra.mxu0 %v941
        %v1432 = vpop.f32.mrf.mxu0
        %v1433 = vadd.f32 %v1184, %v1432
        %v1434 = vpop.f32.mrf.mxu0
        %v1435 = vadd.f32 %v1186, %v1434
        %1436 = vmatmul.bf16.gmra.mxu0 %v944
        %v1437 = vpop.f32.mrf.mxu0
        %v1438 = vadd.f32 %v1189, %v1437
        %v1439 = vpop.f32.mrf.mxu0
        %v1440 = vadd.f32 %v1191, %v1439
        %1441 = vmatmul.bf16.gmra.mxu0 %v947
        %v1442 = vpop.f32.mrf.mxu0
        %v1443 = vadd.f32 %v1194, %v1442
        %v1444 = vpop.f32.mrf.mxu0
        %v1445 = vadd.f32 %v1196, %v1444
        %1446 = vmatmul.bf16.gmra.mxu0 %v950
        %v1447 = vpop.f32.mrf.mxu0
        %v1448 = vadd.f32 %v1199, %v1447
        %v1449 = vpop.f32.mrf.mxu0
        %v1450 = vadd.f32 %v1201, %v1449
        %1451 = vmatmul.bf16.gmra.mxu0 %v953
        %v1452 = vpop.f32.mrf.mxu0
        %v1453 = vadd.f32 %v1204, %v1452
        %v1454 = vpop.f32.mrf.mxu0
        %v1455 = vadd.f32 %v1206, %v1454
        %1456 = vdwg.mxu0
        %vm1457 = vcmask 31744
        %1458 = vst.msk [vmem:[%s150] sm:$0xff] %vm1457, %v1218
        %1459 = vst.msk [vmem:[%s150 + $0x8] sm:$0xff] %vm1457, %v1220
        %1460 = vst.msk [vmem:[%s150 + $0x10] sm:$0xff] %vm1457, %v1223
        %1461 = vst.msk [vmem:[%s150 + $0x18] sm:$0xff] %vm1457, %v1225
        %1462 = vst.msk [vmem:[%s150 + $0x20] sm:$0xff] %vm1457, %v1228
        %1463 = vst.msk [vmem:[%s150 + $0x28] sm:$0xff] %vm1457, %v1230
        %1464 = vst.msk [vmem:[%s150 + $0x30] sm:$0xff] %vm1457, %v1233
        %1465 = vst.msk [vmem:[%s150 + $0x38] sm:$0xff] %vm1457, %v1235
        %1466 = vst.msk [vmem:[%s150 + $0x40] sm:$0xff] %vm1457, %v1238
        %1467 = vst.msk [vmem:[%s150 + $0x48] sm:$0xff] %vm1457, %v1240
        %1468 = vst.msk [vmem:[%s150 + $0x50] sm:$0xff] %vm1457, %v1243
        %1469 = vst.msk [vmem:[%s150 + $0x58] sm:$0xff] %vm1457, %v1245
        %1470 = vst.msk [vmem:[%s150 + $0x60] sm:$0xff] %vm1457, %v1248
        %1471 = vst.msk [vmem:[%s150 + $0x68] sm:$0xff] %vm1457, %v1250
        %1472 = vst.msk [vmem:[%s150 + $0x70] sm:$0xff] %vm1457, %v1253
        %1473 = vst.msk [vmem:[%s150 + $0x78] sm:$0xff] %vm1457, %v1255
        %1474 = vst.msk [vmem:[%s150 + $0x80] sm:$0xff] %vm1457, %v1258
        %1475 = vst.msk [vmem:[%s150 + $0x88] sm:$0xff] %vm1457, %v1260
        %1476 = vst.msk [vmem:[%s150 + $0x90] sm:$0xff] %vm1457, %v1263
        %1477 = vst.msk [vmem:[%s150 + $0x98] sm:$0xff] %vm1457, %v1265
        %1478 = vst.msk [vmem:[%s150 + $0xa0] sm:$0xff] %vm1457, %v1268
        %1479 = vst.msk [vmem:[%s150 + $0xa8] sm:$0xff] %vm1457, %v1270
        %1480 = vst.msk [vmem:[%s150 + $0xb0] sm:$0xff] %vm1457, %v1273
        %1481 = vst.msk [vmem:[%s150 + $0xb8] sm:$0xff] %vm1457, %v1275
        %1482 = vst.msk [vmem:[%s150 + $0xc0] sm:$0xff] %vm1457, %v1278
        %1483 = vst.msk [vmem:[%s150 + $0xc8] sm:$0xff] %vm1457, %v1280
        %1484 = vst.msk [vmem:[%s150 + $0xd0] sm:$0xff] %vm1457, %v1283
        %1485 = vst.msk [vmem:[%s150 + $0xd8] sm:$0xff] %vm1457, %v1285
        %1486 = vst.msk [vmem:[%s150 + $0xe0] sm:$0xff] %vm1457, %v1288
        %1487 = vst.msk [vmem:[%s150 + $0xe8] sm:$0xff] %vm1457, %v1290
        %1488 = vst.msk [vmem:[%s150 + $0xf0] sm:$0xff] %vm1457, %v1293
        %1489 = vst.msk [vmem:[%s150 + $0xf8] sm:$0xff] %vm1457, %v1295
        %1490 = vst.msk [vmem:[%s150 + $0x100] sm:$0xff] %vm1457, %v1298
        %1491 = vst.msk [vmem:[%s150 + $0x108] sm:$0xff] %vm1457, %v1300
        %1492 = vst.msk [vmem:[%s150 + $0x110] sm:$0xff] %vm1457, %v1303
        %1493 = vst.msk [vmem:[%s150 + $0x118] sm:$0xff] %vm1457, %v1305
        %1494 = vst.msk [vmem:[%s150 + $0x120] sm:$0xff] %vm1457, %v1308
        %1495 = vst.msk [vmem:[%s150 + $0x128] sm:$0xff] %vm1457, %v1310
        %1496 = vst.msk [vmem:[%s150 + $0x130] sm:$0xff] %vm1457, %v1313
        %1497 = vst.msk [vmem:[%s150 + $0x138] sm:$0xff] %vm1457, %v1315
        %1498 = vst.msk [vmem:[%s150 + $0x140] sm:$0xff] %vm1457, %v1318
        %1499 = vst.msk [vmem:[%s150 + $0x148] sm:$0xff] %vm1457, %v1320
        %1500 = vst.msk [vmem:[%s150 + $0x150] sm:$0xff] %vm1457, %v1323
        %1501 = vst.msk [vmem:[%s150 + $0x158] sm:$0xff] %vm1457, %v1325
        %1502 = vst.msk [vmem:[%s150 + $0x160] sm:$0xff] %vm1457, %v1328
        %1503 = vst.msk [vmem:[%s150 + $0x168] sm:$0xff] %vm1457, %v1330
        %1504 = vst.msk [vmem:[%s150 + $0x170] sm:$0xff] %vm1457, %v1333
        %1505 = vst.msk [vmem:[%s150 + $0x178] sm:$0xff] %vm1457, %v1335
        %1506 = vst.msk [vmem:[%s150 + $0x180] sm:$0xff] %vm1457, %v1338
        %1507 = vst.msk [vmem:[%s150 + $0x188] sm:$0xff] %vm1457, %v1340
        %1508 = vst.msk [vmem:[%s150 + $0x190] sm:$0xff] %vm1457, %v1343
        %1509 = vst.msk [vmem:[%s150 + $0x198] sm:$0xff] %vm1457, %v1345
        %1510 = vst.msk [vmem:[%s150 + $0x1a0] sm:$0xff] %vm1457, %v1348
        %1511 = vst.msk [vmem:[%s150 + $0x1a8] sm:$0xff] %vm1457, %v1350
        %1512 = vst.msk [vmem:[%s150 + $0x1b0] sm:$0xff] %vm1457, %v1353
        %1513 = vst.msk [vmem:[%s150 + $0x1b8] sm:$0xff] %vm1457, %v1355
        %1514 = vst.msk [vmem:[%s150 + $0x1c0] sm:$0xff] %vm1457, %v1358
        %1515 = vst.msk [vmem:[%s150 + $0x1c8] sm:$0xff] %vm1457, %v1360
        %1516 = vst.msk [vmem:[%s150 + $0x1d0] sm:$0xff] %vm1457, %v1363
        %1517 = vst.msk [vmem:[%s150 + $0x1d8] sm:$0xff] %vm1457, %v1365
        %1518 = vst.msk [vmem:[%s150 + $0x1e0] sm:$0xff] %vm1457, %v1368
        %1519 = vst.msk [vmem:[%s150 + $0x1e8] sm:$0xff] %vm1457, %v1370
        %1520 = vst.msk [vmem:[%s150 + $0x1f0] sm:$0xff] %vm1457, %v1373
        %1521 = vst.msk [vmem:[%s150 + $0x1f8] sm:$0xff] %vm1457, %v1375
        %1522 = vst.msk [vmem:[%s150 + $0x200] sm:$0xff] %vm1457, %v1378
        %1523 = vst.msk [vmem:[%s150 + $0x208] sm:$0xff] %vm1457, %v1380
        %1524 = vst.msk [vmem:[%s150 + $0x210] sm:$0xff] %vm1457, %v1383
        %1525 = vst.msk [vmem:[%s150 + $0x218] sm:$0xff] %vm1457, %v1385
        %1526 = vst.msk [vmem:[%s150 + $0x220] sm:$0xff] %vm1457, %v1388
        %1527 = vst.msk [vmem:[%s150 + $0x228] sm:$0xff] %vm1457, %v1390
        %1528 = vst.msk [vmem:[%s150 + $0x230] sm:$0xff] %vm1457, %v1393
        %1529 = vst.msk [vmem:[%s150 + $0x238] sm:$0xff] %vm1457, %v1395
        %1530 = vst.msk [vmem:[%s150 + $0x240] sm:$0xff] %vm1457, %v1398
        %1531 = vst.msk [vmem:[%s150 + $0x248] sm:$0xff] %vm1457, %v1400
        %1532 = vst.msk [vmem:[%s150 + $0x250] sm:$0xff] %vm1457, %v1403
        %1533 = vst.msk [vmem:[%s150 + $0x258] sm:$0xff] %vm1457, %v1405
        %1534 = vst.msk [vmem:[%s150 + $0x260] sm:$0xff] %vm1457, %v1408
        %1535 = vst.msk [vmem:[%s150 + $0x268] sm:$0xff] %vm1457, %v1410
        %1536 = vst.msk [vmem:[%s150 + $0x270] sm:$0xff] %vm1457, %v1413
        %1537 = vst.msk [vmem:[%s150 + $0x278] sm:$0xff] %vm1457, %v1415
        %1538 = vst.msk [vmem:[%s150 + $0x280] sm:$0xff] %vm1457, %v1418
        %1539 = vst.msk [vmem:[%s150 + $0x288] sm:$0xff] %vm1457, %v1420
        %1540 = vst.msk [vmem:[%s150 + $0x290] sm:$0xff] %vm1457, %v1423
        %1541 = vst.msk [vmem:[%s150 + $0x298] sm:$0xff] %vm1457, %v1425
        %1542 = vst.msk [vmem:[%s150 + $0x2a0] sm:$0xff] %vm1457, %v1428
        %1543 = vst.msk [vmem:[%s150 + $0x2a8] sm:$0xff] %vm1457, %v1430
        %1544 = vst.msk [vmem:[%s150 + $0x2b0] sm:$0xff] %vm1457, %v1433
        %1545 = vst.msk [vmem:[%s150 + $0x2b8] sm:$0xff] %vm1457, %v1435
        %1546 = vst.msk [vmem:[%s150 + $0x2c0] sm:$0xff] %vm1457, %v1438
        %1547 = vst.msk [vmem:[%s150 + $0x2c8] sm:$0xff] %vm1457, %v1440
        %1548 = vst.msk [vmem:[%s150 + $0x2d0] sm:$0xff] %vm1457, %v1443
        %1549 = vst.msk [vmem:[%s150 + $0x2d8] sm:$0xff] %vm1457, %v1445
        %1550 = vst.msk [vmem:[%s150 + $0x2e0] sm:$0xff] %vm1457, %v1448
        %1551 = vst.msk [vmem:[%s150 + $0x2e8] sm:$0xff] %vm1457, %v1450
        %1552 = vst.msk [vmem:[%s150 + $0x2f0] sm:$0xff] %vm1457, %v1453
        %1553 = vst.msk [vmem:[%s150 + $0x2f8] sm:$0xff] %vm1457, %v1455
        %s1554 = sand.u32 %s68, 1
        %s1555 = sand.u32 %s68, 1
        %s1556 = smul.addr %s1555, 768
        %s1557 = scalar_lea.vmem [#allocation2], %s1556
        // Predicated region
        $region29: #{forward.7} parent=27 // pred_check
          %p1558 = pneg %p78
        $region30: #{forward.7} parent=27 // pred_check_branch
          %1560 = sbr.rel (%p1558) target = $region32
        $region31: #{forward.7} parent=27 // pred_region
          %s1561 = smul.u32 96, %s13
          %s1562 = ssub.s32 182, %s1561
          %p1563 = scmp.lt.s32.totalorder %s1562, 96
          %s1564 = scalar_select %p1563, %s1562, 96
          %s1565 = smul.u32 8, %s1564
          %p1566 = scmp.ne.s32.totalorder 0, %s1565
          %s1567 = smul.addr %s1561, 8
          %s1568 = scalar_lea.vmem %s2, %s1567
          // Predicated region
          $region33: #{forward.7} parent=31 // pred_check
            %p1569 = pneg %p1566
          $region34: #{forward.7} parent=31 // pred_check_branch
            %1571 = sbr.rel (%p1569) target = $region36
          $region35: #{forward.7} parent=31 // pred_region
            // Predicated region
            $region37: #{forward.7} parent=35 // pred_check
              _
            $region38: #{forward.7} parent=35 // pred_check_branch
              %1573 = sbr.rel (0) target = $region40
            $region39: #{forward.7} parent=35 // pred_region
              // Predicated region
              $region59: #{forward.7} parent=39 // pred_check
                _
              $region60: #{forward.7} parent=39 // pred_check_branch
                %1685 = sbr.rel (0) target = $region62
              $region61: #{forward.7} parent=39 // pred_region
                %s1686 = sshrl.u32 %s1564, 5
                // While loop
                $region63: #{forward.7} parent=61 // loop_pre_header
                  _
                $region64: #{forward.7} parent=61 // loop_header
                  %s1688 = sphi 0, %s1690
                  %p1689 = scmp.ge.s32.totalorder %s1688, %s1686
                  %s1693 = sphi 0, %s1762
                  %s1694 = sphi %s1557, %s1765
                  %s1695 = sphi %s1568, %s1766
                $region65: #{forward.7} parent=61 // loop_header_branch
                  %1692 = sbr.rel (%p1689) target = $region69
                $region66: #{forward.7} parent=61 // loop_body
                  %v1696 = vld [vmem:[%s1694] sm:$0xff]
                  %1697 = vst [vmem:[%s1695] sm:$0xff] %v1696
                  %v1698 = vld [vmem:[%s1694 + $0x8] sm:$0xff]
                  %1699 = vst [vmem:[%s1695 + $0x8] sm:$0xff] %v1698
                  %v1700 = vld [vmem:[%s1694 + $0x10] sm:$0xff]
                  %1701 = vst [vmem:[%s1695 + $0x10] sm:$0xff] %v1700
                  %v1702 = vld [vmem:[%s1694 + $0x18] sm:$0xff]
                  %1703 = vst [vmem:[%s1695 + $0x18] sm:$0xff] %v1702
                  %v1704 = vld [vmem:[%s1694 + $0x20] sm:$0xff]
                  %1705 = vst [vmem:[%s1695 + $0x20] sm:$0xff] %v1704
                  %v1706 = vld [vmem:[%s1694 + $0x28] sm:$0xff]
                  %1707 = vst [vmem:[%s1695 + $0x28] sm:$0xff] %v1706
                  %v1708 = vld [vmem:[%s1694 + $0x30] sm:$0xff]
                  %1709 = vst [vmem:[%s1695 + $0x30] sm:$0xff] %v1708
                  %v1710 = vld [vmem:[%s1694 + $0x38] sm:$0xff]
                  %1711 = vst [vmem:[%s1695 + $0x38] sm:$0xff] %v1710
                  %v1712 = vld [vmem:[%s1694 + $0x40] sm:$0xff]
                  %1713 = vst [vmem:[%s1695 + $0x40] sm:$0xff] %v1712
                  %v1714 = vld [vmem:[%s1694 + $0x48] sm:$0xff]
                  %1715 = vst [vmem:[%s1695 + $0x48] sm:$0xff] %v1714
                  %v1716 = vld [vmem:[%s1694 + $0x50] sm:$0xff]
                  %1717 = vst [vmem:[%s1695 + $0x50] sm:$0xff] %v1716
                  %v1718 = vld [vmem:[%s1694 + $0x58] sm:$0xff]
                  %1719 = vst [vmem:[%s1695 + $0x58] sm:$0xff] %v1718
                  %v1720 = vld [vmem:[%s1694 + $0x60] sm:$0xff]
                  %1721 = vst [vmem:[%s1695 + $0x60] sm:$0xff] %v1720
                  %v1722 = vld [vmem:[%s1694 + $0x68] sm:$0xff]
                  %1723 = vst [vmem:[%s1695 + $0x68] sm:$0xff] %v1722
                  %v1724 = vld [vmem:[%s1694 + $0x70] sm:$0xff]
                  %1725 = vst [vmem:[%s1695 + $0x70] sm:$0xff] %v1724
                  %v1726 = vld [vmem:[%s1694 + $0x78] sm:$0xff]
                  %1727 = vst [vmem:[%s1695 + $0x78] sm:$0xff] %v1726
                  %v1728 = vld [vmem:[%s1694 + $0x80] sm:$0xff]
                  %1729 = vst [vmem:[%s1695 + $0x80] sm:$0xff] %v1728
                  %v1730 = vld [vmem:[%s1694 + $0x88] sm:$0xff]
                  %1731 = vst [vmem:[%s1695 + $0x88] sm:$0xff] %v1730
                  %v1732 = vld [vmem:[%s1694 + $0x90] sm:$0xff]
                  %1733 = vst [vmem:[%s1695 + $0x90] sm:$0xff] %v1732
                  %v1734 = vld [vmem:[%s1694 + $0x98] sm:$0xff]
                  %1735 = vst [vmem:[%s1695 + $0x98] sm:$0xff] %v1734
                  %v1736 = vld [vmem:[%s1694 + $0xa0] sm:$0xff]
                  %1737 = vst [vmem:[%s1695 + $0xa0] sm:$0xff] %v1736
                  %v1738 = vld [vmem:[%s1694 + $0xa8] sm:$0xff]
                  %1739 = vst [vmem:[%s1695 + $0xa8] sm:$0xff] %v1738
                  %v1740 = vld [vmem:[%s1694 + $0xb0] sm:$0xff]
                  %1741 = vst [vmem:[%s1695 + $0xb0] sm:$0xff] %v1740
                  %v1742 = vld [vmem:[%s1694 + $0xb8] sm:$0xff]
                  %1743 = vst [vmem:[%s1695 + $0xb8] sm:$0xff] %v1742
                  %v1744 = vld [vmem:[%s1694 + $0xc0] sm:$0xff]
                  %1745 = vst [vmem:[%s1695 + $0xc0] sm:$0xff] %v1744
                  %v1746 = vld [vmem:[%s1694 + $0xc8] sm:$0xff]
                  %1747 = vst [vmem:[%s1695 + $0xc8] sm:$0xff] %v1746
                  %v1748 = vld [vmem:[%s1694 + $0xd0] sm:$0xff]
                  %1749 = vst [vmem:[%s1695 + $0xd0] sm:$0xff] %v1748
                  %v1750 = vld [vmem:[%s1694 + $0xd8] sm:$0xff]
                  %1751 = vst [vmem:[%s1695 + $0xd8] sm:$0xff] %v1750
                  %v1752 = vld [vmem:[%s1694 + $0xe0] sm:$0xff]
                  %1753 = vst [vmem:[%s1695 + $0xe0] sm:$0xff] %v1752
                  %v1754 = vld [vmem:[%s1694 + $0xe8] sm:$0xff]
                  %1755 = vst [vmem:[%s1695 + $0xe8] sm:$0xff] %v1754
                  %v1756 = vld [vmem:[%s1694 + $0xf0] sm:$0xff]
                  %1757 = vst [vmem:[%s1695 + $0xf0] sm:$0xff] %v1756
                  %v1758 = vld [vmem:[%s1694 + $0xf8] sm:$0xff]
                  %1759 = vst [vmem:[%s1695 + $0xf8] sm:$0xff] %v1758
                  %s1760 = sadd.s32 1, %s1693
                  %p1761 = scmp.ge.s32.totalorder %s1760, %s1686
                  %s1762 = scalar_select %p1761, 0, %s1760
                  %s1763 = smul.u32 %s1762, 256
                  %s1764 = smul.u32 %s1762, 256
                  %s1765 = scalar_lea.vmem %s1557, %s1763 [#allocation2]
                  %s1766 = scalar_lea.vmem %s1568, %s1764
                $region67: #{forward.7} parent=61 // loop_footer
                  %s1690 = sadd.s32 %s1688, 1
                $region68: #{forward.7} parent=61 // loop_footer_branch
                  %1687 = sbr.rel target = $region64
                $region69: #{forward.7} parent=61 // loop_exit
                  _
                %s1767 = sshrl.u32 %s1564, 5
                %s1768 = sand.u32 %s1564, 31
                %s1769 = smul.u32 %s1767, 32
                %s1770 = smul.u32 8, %s1769
                %s1771 = scalar_lea.vmem %s1557, %s1770 [#allocation2]
                %s1772 = smul.u32 8, %s1769
                %s1773 = scalar_lea.vmem %s1568, %s1772
                // While loop
                $region70: #{forward.7} parent=61 // loop_pre_header
                  _
                $region71: #{forward.7} parent=61 // loop_header
                  %s1775 = sphi 0, %s1777
                  %p1776 = scmp.ge.s32.totalorder %s1775, %s1768
                  %s1780 = sphi 0, %s1787
                  %s1781 = sphi %s1771, %s1790
                  %s1782 = sphi %s1773, %s1791
                $region72: #{forward.7} parent=61 // loop_header_branch
                  %1779 = sbr.rel (%p1776) target = $region76
                $region73: #{forward.7} parent=61 // loop_body
                  %v1783 = vld [vmem:[%s1781] sm:$0xff]
                  %1784 = vst [vmem:[%s1782] sm:$0xff] %v1783
                  %s1785 = sadd.s32 1, %s1780
                  %p1786 = scmp.ge.s32.totalorder %s1785, %s1768
                  %s1787 = scalar_select %p1786, 0, %s1785
                  %s1788 = smul.u32 %s1787, 8
                  %s1789 = smul.u32 %s1787, 8
                  %s1790 = scalar_lea.vmem %s1771, %s1788 [#allocation2]
                  %s1791 = scalar_lea.vmem %s1773, %s1789
                $region74: #{forward.7} parent=61 // loop_footer
                  %s1777 = sadd.s32 %s1775, 1
                $region75: #{forward.7} parent=61 // loop_footer_branch
                  %1774 = sbr.rel target = $region71
                $region76: #{forward.7} parent=61 // loop_exit
                  _
              $region62: #{forward.7} parent=39 // pred_fallthru
                _
              // Predicated region
              $region77: #{forward.7} parent=39 // pred_check
                _
              $region78: #{forward.7} parent=39 // pred_check_branch
                %1793 = sbr.rel target = $region80
              $region79: #{forward.7} parent=39 // pred_region
                _
              $region80: #{forward.7} parent=39 // pred_fallthru
                _
            $region40: #{forward.7} parent=35 // pred_fallthru
              _
            // Predicated region
            $region41: #{forward.7} parent=35 // pred_check
              _
            $region42: #{forward.7} parent=35 // pred_check_branch
              %1575 = sbr.rel target = $region44
            $region43: #{forward.7} parent=35 // pred_region
              %s1577 = ssub.s32 256, 1
              %s1578 = sshrl.u32 %s1564, 5
              // While loop
              $region45: #{forward.7} parent=43 // loop_pre_header
                _
              $region46: #{forward.7} parent=43 // loop_header
                %s1580 = sphi 0, %s1582
                %p1581 = scmp.ge.s32.totalorder %s1580, %s1578
                %s1585 = sphi 0, %s1654
                %s1586 = sphi %s1557, %s1657
                %s1587 = sphi %s1568, %s1658
              $region47: #{forward.7} parent=43 // loop_header_branch
                %1584 = sbr.rel (%p1581) target = $region51
              $region48: #{forward.7} parent=43 // loop_body
                %v1588 = vld [vmem:[%s1586] sm:%s1577]
                %1589 = vst [vmem:[%s1587] sm:%s1577] %v1588
                %v1590 = vld [vmem:[%s1586 + $0x8] sm:%s1577]
                %1591 = vst [vmem:[%s1587 + $0x8] sm:%s1577] %v1590
                %v1592 = vld [vmem:[%s1586 + $0x10] sm:%s1577]
                %1593 = vst [vmem:[%s1587 + $0x10] sm:%s1577] %v1592
                %v1594 = vld [vmem:[%s1586 + $0x18] sm:%s1577]
                %1595 = vst [vmem:[%s1587 + $0x18] sm:%s1577] %v1594
                %v1596 = vld [vmem:[%s1586 + $0x20] sm:%s1577]
                %1597 = vst [vmem:[%s1587 + $0x20] sm:%s1577] %v1596
                %v1598 = vld [vmem:[%s1586 + $0x28] sm:%s1577]
                %1599 = vst [vmem:[%s1587 + $0x28] sm:%s1577] %v1598
                %v1600 = vld [vmem:[%s1586 + $0x30] sm:%s1577]
                %1601 = vst [vmem:[%s1587 + $0x30] sm:%s1577] %v1600
                %v1602 = vld [vmem:[%s1586 + $0x38] sm:%s1577]
                %1603 = vst [vmem:[%s1587 + $0x38] sm:%s1577] %v1602
                %v1604 = vld [vmem:[%s1586 + $0x40] sm:%s1577]
                %1605 = vst [vmem:[%s1587 + $0x40] sm:%s1577] %v1604
                %v1606 = vld [vmem:[%s1586 + $0x48] sm:%s1577]
                %1607 = vst [vmem:[%s1587 + $0x48] sm:%s1577] %v1606
                %v1608 = vld [vmem:[%s1586 + $0x50] sm:%s1577]
                %1609 = vst [vmem:[%s1587 + $0x50] sm:%s1577] %v1608
                %v1610 = vld [vmem:[%s1586 + $0x58] sm:%s1577]
                %1611 = vst [vmem:[%s1587 + $0x58] sm:%s1577] %v1610
                %v1612 = vld [vmem:[%s1586 + $0x60] sm:%s1577]
                %1613 = vst [vmem:[%s1587 + $0x60] sm:%s1577] %v1612
                %v1614 = vld [vmem:[%s1586 + $0x68] sm:%s1577]
                %1615 = vst [vmem:[%s1587 + $0x68] sm:%s1577] %v1614
                %v1616 = vld [vmem:[%s1586 + $0x70] sm:%s1577]
                %1617 = vst [vmem:[%s1587 + $0x70] sm:%s1577] %v1616
                %v1618 = vld [vmem:[%s1586 + $0x78] sm:%s1577]
                %1619 = vst [vmem:[%s1587 + $0x78] sm:%s1577] %v1618
                %v1620 = vld [vmem:[%s1586 + $0x80] sm:%s1577]
                %1621 = vst [vmem:[%s1587 + $0x80] sm:%s1577] %v1620
                %v1622 = vld [vmem:[%s1586 + $0x88] sm:%s1577]
                %1623 = vst [vmem:[%s1587 + $0x88] sm:%s1577] %v1622
                %v1624 = vld [vmem:[%s1586 + $0x90] sm:%s1577]
                %1625 = vst [vmem:[%s1587 + $0x90] sm:%s1577] %v1624
                %v1626 = vld [vmem:[%s1586 + $0x98] sm:%s1577]
                %1627 = vst [vmem:[%s1587 + $0x98] sm:%s1577] %v1626
                %v1628 = vld [vmem:[%s1586 + $0xa0] sm:%s1577]
                %1629 = vst [vmem:[%s1587 + $0xa0] sm:%s1577] %v1628
                %v1630 = vld [vmem:[%s1586 + $0xa8] sm:%s1577]
                %1631 = vst [vmem:[%s1587 + $0xa8] sm:%s1577] %v1630
                %v1632 = vld [vmem:[%s1586 + $0xb0] sm:%s1577]
                %1633 = vst [vmem:[%s1587 + $0xb0] sm:%s1577] %v1632
                %v1634 = vld [vmem:[%s1586 + $0xb8] sm:%s1577]
                %1635 = vst [vmem:[%s1587 + $0xb8] sm:%s1577] %v1634
                %v1636 = vld [vmem:[%s1586 + $0xc0] sm:%s1577]
                %1637 = vst [vmem:[%s1587 + $0xc0] sm:%s1577] %v1636
                %v1638 = vld [vmem:[%s1586 + $0xc8] sm:%s1577]
                %1639 = vst [vmem:[%s1587 + $0xc8] sm:%s1577] %v1638
                %v1640 = vld [vmem:[%s1586 + $0xd0] sm:%s1577]
                %1641 = vst [vmem:[%s1587 + $0xd0] sm:%s1577] %v1640
                %v1642 = vld [vmem:[%s1586 + $0xd8] sm:%s1577]
                %1643 = vst [vmem:[%s1587 + $0xd8] sm:%s1577] %v1642
                %v1644 = vld [vmem:[%s1586 + $0xe0] sm:%s1577]
                %1645 = vst [vmem:[%s1587 + $0xe0] sm:%s1577] %v1644
                %v1646 = vld [vmem:[%s1586 + $0xe8] sm:%s1577]
                %1647 = vst [vmem:[%s1587 + $0xe8] sm:%s1577] %v1646
                %v1648 = vld [vmem:[%s1586 + $0xf0] sm:%s1577]
                %1649 = vst [vmem:[%s1587 + $0xf0] sm:%s1577] %v1648
                %v1650 = vld [vmem:[%s1586 + $0xf8] sm:%s1577]
                %1651 = vst [vmem:[%s1587 + $0xf8] sm:%s1577] %v1650
                %s1652 = sadd.s32 1, %s1585
                %p1653 = scmp.ge.s32.totalorder %s1652, %s1578
                %s1654 = scalar_select %p1653, 0, %s1652
                %s1655 = smul.u32 %s1654, 256
                %s1656 = smul.u32 %s1654, 256
                %s1657 = scalar_lea.vmem %s1557, %s1655 [#allocation2]
                %s1658 = scalar_lea.vmem %s1568, %s1656
              $region49: #{forward.7} parent=43 // loop_footer
                %s1582 = sadd.s32 %s1580, 1
              $region50: #{forward.7} parent=43 // loop_footer_branch
                %1579 = sbr.rel target = $region46
              $region51: #{forward.7} parent=43 // loop_exit
                _
              %s1659 = sshrl.u32 %s1564, 5
              %s1660 = sand.u32 %s1564, 31
              %s1661 = smul.u32 %s1659, 32
              %s1662 = smul.u32 8, %s1661
              %s1663 = scalar_lea.vmem %s1557, %s1662 [#allocation2]
              %s1664 = smul.u32 8, %s1661
              %s1665 = scalar_lea.vmem %s1568, %s1664
              // While loop
              $region52: #{forward.7} parent=43 // loop_pre_header
                _
              $region53: #{forward.7} parent=43 // loop_header
                %s1667 = sphi 0, %s1669
                %p1668 = scmp.ge.s32.totalorder %s1667, %s1660
                %s1672 = sphi 0, %s1679
                %s1673 = sphi %s1663, %s1682
                %s1674 = sphi %s1665, %s1683
              $region54: #{forward.7} parent=43 // loop_header_branch
                %1671 = sbr.rel (%p1668) target = $region58
              $region55: #{forward.7} parent=43 // loop_body
                %v1675 = vld [vmem:[%s1673] sm:%s1577]
                %1676 = vst [vmem:[%s1674] sm:%s1577] %v1675
                %s1677 = sadd.s32 1, %s1672
                %p1678 = scmp.ge.s32.totalorder %s1677, %s1660
                %s1679 = scalar_select %p1678, 0, %s1677
                %s1680 = smul.u32 %s1679, 8
                %s1681 = smul.u32 %s1679, 8
                %s1682 = scalar_lea.vmem %s1663, %s1680 [#allocation2]
                %s1683 = scalar_lea.vmem %s1665, %s1681
              $region56: #{forward.7} parent=43 // loop_footer
                %s1669 = sadd.s32 %s1667, 1
              $region57: #{forward.7} parent=43 // loop_footer_branch
                %1666 = sbr.rel target = $region53
              $region58: #{forward.7} parent=43 // loop_exit
                _
            $region44: #{forward.7} parent=35 // pred_fallthru
              _
          $region36: #{forward.7} parent=31 // pred_fallthru
            _
          %1794 = vnop
        $region32: #{forward.7} parent=27 // pred_fallthru
          _
      $region28: #{forward.7} parent=5 // pred_fallthru
        _
      %p1795 = scmp.le.s32.totalorder 2, %s8
      // Predicated region
      $region81: #{forward.7} parent=5 // pred_check
        %p1796 = pneg %p1795
      $region82: #{forward.7} parent=5 // pred_check_branch
        %1798 = sbr.rel (%p1796) target = $region84
      $region83: #{forward.7} parent=5 // pred_region
        %s1799 = ssub.s32 %s8, 2
        // Predicated region
        $region85: #{forward.7} parent=83 // pred_check
          %p1800 = pneg %p84
        $region86: #{forward.7} parent=83 // pred_check_branch
          %1802 = sbr.rel (%p1800) target = $region88
        $region87: #{forward.7} parent=83 // pred_region
          %s1803 = sand.u32 %s69, 1
          %s1804 = sand.u32 %s69, 1
          %s1805 = smul.addr %s1804, 768
          %s1806 = scalar_lea.vmem [#allocation2], %s1805
        $region88: #{forward.7} parent=83 // pred_fallthru
          _
      $region84: #{forward.7} parent=5 // pred_fallthru
        _
    $region6: #{forward.7} parent=1 // loop_footer
      %s12 = sadd.s32 1, %s8
    $region7: #{forward.7} parent=1 // loop_footer_branch
      %7 = sbr.rel target = $region3
    $region8: #{forward.7} parent=1 // loop_exit
      _

</llo_original>
